<compile_context>
chip_gen: v5e
topology: v5e:2x2
jax: 0.10.0
libtpu: 0.0.40
codegen_flags: <defaults>
</compile_context>

<pallas_src>
import jax
import jax.numpy as jnp
from jax import lax
from jax.experimental import pallas as pl
from jax.experimental.pallas import tpu as pltpu

DILATIONS = (6, 12, 18)
MAXPAD = 18          # pad once with the max dilation; every tap is a slice of it
EPS = 1e-5


def _pick_tile_h(H, W, tile_rows):
    """Largest divisor of H whose tile (TH*W rows) stays under tile_rows."""
    best = 1
    for th in range(1, H + 1):
        if H % th == 0 and th * W <= tile_rows:
            best = th
    return best


def _aspp_kernel_factory(TH, W, Cin, Cout, compute_dtype):
    THW = TH * W

    def kernel(xp_ref, w1_ref, w33_ref, wf_ref, bvec_ref, fbias_ref, o_ref):
        j = pl.program_id(1)
        h0 = MAXPAD + j * TH            # padded-H offset of this tile's center window
        bvec = bvec_ref[...]            # (4, Cout) f32 per-branch BN biases

        def tap(dh, dw):
            # Shifted (TH, W, Cin) window of the resident padded image -> (THW, Cin).
            return xp_ref[0, pl.ds(h0 + dh, TH),
                          pl.ds(MAXPAD + dw, W), :].reshape(THW, Cin)

        # The center tap is shared by the 1x1 branch and all three 3x3 convs: slice once.
        center = tap(0, 0)

        def bn_relu(y, i):
            # Per-branch BN bias (scale already folded into the weights) + ReLU, then
            # cast for the bf16 fusion matmul.
            return jnp.maximum(y + bvec[i:i + 1], 0.0).astype(compute_dtype)

        # Branch 1: 1x1 conv (BN scale folded into weights).
        branches = [bn_relu(
            jnp.dot(center, w1_ref[...], preferred_element_type=jnp.float32), 0)]

        # Branches 2-4: dilated 3x3 conv == ONE K=9*Cin matmul each (im2col built
        # in-kernel from 9 shifted slices; accumulation over taps stays in the MXU).
        for di, d in enumerate(DILATIONS):
            taps = [center if (kh == 1 and kw == 1)
                    else tap((kh - 1) * d, (kw - 1) * d)
                    for kh in range(3) for kw in range(3)]
            im2col = jnp.concatenate(taps, axis=-1)                 # (THW, 9*Cin)
            branches.append(bn_relu(
                jnp.dot(im2col, w33_ref[di], preferred_element_type=jnp.float32),
                di + 1))

        # Fusion 1x1 conv over branches 1-4 as a single K=4*Cout matmul.
        cat = jnp.concatenate(branches, axis=-1)                    # (THW, 4*Cout)
        acc = jnp.dot(cat, wf_ref[...], preferred_element_type=jnp.float32)

        # Branch 5 (global pool) fusion contribution + final BN bias are pre-folded
        # into the per-batch fbias row in the wrapper.  Dropout(0.5): eval identity.
        out = jnp.maximum(acc + fbias_ref[0], 0.0)
        o_ref[0] = out.reshape(TH, W, Cout).astype(o_ref.dtype)

    return kernel


def aspp_pallas(x_nchw, params, *, compute_dtype=jnp.bfloat16,
                tile_rows=2048, vmem_limit_bytes=None):
    w1, w3s, w5, wf_full, (gamma, beta, mean, var) = params
    N, Cin, H, W = x_nchw.shape
    Cout = w1.shape[-1]
    Hp, Wp = H + 2 * MAXPAD, W + 2 * MAXPAD
    TH = _pick_tile_h(H, W, tile_rows)

    x = jnp.transpose(x_nchw, (0, 2, 3, 1)).astype(jnp.float32)           # NHWC f32

    # BatchNorm eval-mode folding (exact algebra): bn(y) = y*scale + bias.
    scale = gamma / jnp.sqrt(var + EPS)                                   # (6, Cout)
    bias = beta - mean * scale

    # Fold BN scales into the conv / fusion weights; cast MXU operands to compute dtype.
    w1_f = (w1 * scale[0]).astype(compute_dtype)                          # (Cin, Cout)
    w33_f = (w3s * scale[1:4][:, None, None, None, :]) \
        .reshape(3, 9 * Cin, Cout).astype(compute_dtype)                  # (3, 9Cin, Cout)
    wf_fold = wf_full * scale[5][None, :]                                 # (5Cout, Cout)
    wf_f = wf_fold[:4 * Cout].astype(compute_dtype)                       # (4Cout, Cout)

    # Global-average-pool branch hoisted out of the kernel (f32, tiny); its fusion
    # contribution and the final BN bias become a per-batch bias row.
    pooled = jnp.mean(x, axis=(1, 2))                                     # (N, Cin)
    b5 = jnp.maximum(
        jnp.dot(pooled, w5, precision=lax.Precision.HIGHEST) * scale[4] + bias[4], 0.0)
    fbias = (jnp.dot(b5, wf_fold[4 * Cout:], precision=lax.Precision.HIGHEST)
             + bias[5]).astype(jnp.float32)[:, None, :]                   # (N, 1, Cout)
    bvec = bias[:4].astype(jnp.float32)                                   # (4, Cout)

    # Pad once with the max dilation; every shifted tap is an in-kernel slice.
    xp = jnp.pad(x.astype(compute_dtype),
                 ((0, 0), (MAXPAD, MAXPAD), (MAXPAD, MAXPAD), (0, 0)))

    kernel = _aspp_kernel_factory(TH, W, Cin, Cout, compute_dtype)
    out = pl.pallas_call(
        kernel,
        out_shape=jax.ShapeDtypeStruct((N, H, W, Cout), jnp.float32),
        grid_spec=pltpu.PrefetchScalarGridSpec(
            num_scalar_prefetch=0,
            grid=(N, H // TH),
            in_specs=[
                # Whole padded image per batch; block index only changes with n, so it
                # is DMA'd once per batch and stays resident across the H tiles.
                pl.BlockSpec((1, Hp, Wp, Cin), lambda n, j: (n, 0, 0, 0)),
                # Resident weights / biases (constant index_map).
                pl.BlockSpec((Cin, Cout), lambda n, j: (0, 0)),
                pl.BlockSpec((3, 9 * Cin, Cout), lambda n, j: (0, 0, 0)),
                pl.BlockSpec((4 * Cout, Cout), lambda n, j: (0, 0)),
                pl.BlockSpec((4, Cout), lambda n, j: (0, 0)),
                pl.BlockSpec((1, 1, Cout), lambda n, j: (n, 0, 0)),
            ],
            out_specs=pl.BlockSpec((1, TH, W, Cout), lambda n, j: (n, j, 0, 0)),
        ),
        compiler_params=pltpu.CompilerParams(
            dimension_semantics=("parallel", "parallel"),
            vmem_limit_bytes=vmem_limit_bytes),
    )(xp, w1_f, w33_f, wf_f, bvec, fbias)

    return jnp.transpose(out, (0, 3, 1, 2))                               # back to NCHW


def init_params(key, Cin, Cout):
    ks = jax.random.split(key, 8)
    w1 = jax.random.normal(ks[0], (Cin, Cout), jnp.float32) * 0.1           # 1x1 branch
    w3s = jax.random.normal(ks[1], (3, 3, 3, Cin, Cout), jnp.float32) * 0.1  # 3 dilated 3x3
    w5 = jax.random.normal(ks[2], (Cin, Cout), jnp.float32) * 0.1            # pool branch 1x1
    wf_full = jax.random.normal(ks[3], (5 * Cout, Cout), jnp.float32) * 0.1  # fusion 1x1
    gamma = 0.5 + jax.random.uniform(ks[4], (6, Cout), dtype=jnp.float32)    # 6 BN layers
    beta = jax.random.normal(ks[5], (6, Cout), jnp.float32) * 0.1
    mean = jax.random.normal(ks[6], (6, Cout), jnp.float32) * 0.1
    var = 0.5 + jax.random.uniform(ks[7], (6, Cout), dtype=jnp.float32)
    return (w1, w3s, w5, wf_full, (gamma, beta, mean, var))


def aspp_reference(x_nchw, params):
    """Pure-JAX f32 reference matching the PyTorch forward (eval mode)."""
    w1, w3s, w5, wf_full, (gamma, beta, mean, var) = params
    scale = gamma / jnp.sqrt(var + EPS)
    bias = beta - mean * scale
    x = jnp.transpose(x_nchw, (0, 2, 3, 1)).astype(jnp.float32)
    N, H, W, Cin = x.shape
    Cout = w1.shape[-1]

    def conv(inp, w_hwio, dil):
        pad = dil if w_hwio.shape[0] == 3 else 0
        return lax.conv_general_dilated(
            inp, w_hwio, (1, 1), [(pad, pad), (pad, pad)],
            rhs_dilation=(dil, dil),
            dimension_numbers=("NHWC", "HWIO", "NHWC"),
            precision=lax.Precision.HIGHEST)

    def bn_relu(y, i):
        return jnp.maximum(y * scale[i] + bias[i], 0.0)

    b1 = bn_relu(conv(x, w1.reshape(1, 1, Cin, Cout), 1), 0)
    b2 = bn_relu(conv(x, w3s[0], 6), 1)
    b3 = bn_relu(conv(x, w3s[1], 12), 2)
    b4 = bn_relu(conv(x, w3s[2], 18), 3)
    pooled = jnp.mean(x, axis=(1, 2), keepdims=True)
    b5 = bn_relu(conv(pooled, w5.reshape(1, 1, Cin, Cout), 1), 4)
    b5 = jnp.broadcast_to(b5, (N, H, W, Cout))       # 1x1 bilinear upsample == broadcast
    cat = jnp.concatenate([b1, b2, b3, b4, b5], axis=-1)
    out = bn_relu(conv(cat, wf_full.reshape(1, 1, 5 * Cout, Cout), 1), 5)
    return jnp.transpose(out, (0, 3, 1, 2))


if __name__ == "__main__":
    key = jax.random.PRNGKey(0)
    kx, kp = jax.random.split(key)
    N, Cin, Cout, H, W = 2, 4, 8, 16, 16
    x = jax.random.normal(kx, (N, Cin, H, W), jnp.float32)
    params = init_params(kp, Cin, Cout)

    ref = jax.block_until_ready(aspp_reference(x, params))

    aspp_jit = jax.jit(aspp_pallas,
                       static_argnames=("compute_dtype", "tile_rows",
                                        "vmem_limit_bytes"))

    # tile_rows=128 forces multiple H tiles at this tiny shape so the tiled /
    # dynamic-slice path is exercised.
    out_f32 = jax.block_until_ready(
        aspp_jit(x, params, compute_dtype=jnp.float32, tile_rows=128))
    assert out_f32.shape == (N, Cout, H, W), out_f32.shape
    if not jnp.allclose(out_f32, ref, atol=1e-3, rtol=1e-3):
        raise AssertionError(
            f"f32 mismatch: max abs err {float(jnp.max(jnp.abs(out_f32 - ref)))}")

    # bf16 run uses the default tiling (single H tile per batch at this size),
    # i.e. the performant configuration.
    out_bf16 = jax.block_until_ready(
        aspp_jit(x, params, compute_dtype=jnp.bfloat16))
    assert out_bf16.shape == (N, Cout, H, W), out_bf16.shape
    if not jnp.allclose(out_bf16, ref, atol=5e-2, rtol=5e-2):
        raise AssertionError(
            f"bf16 mismatch: max abs err {float(jnp.max(jnp.abs(out_bf16 - ref)))}")

    print("KERNEL_OK")
</pallas_src>

<mosaic_0001>
module attributes {stable_mosaic.version = 11 : i64} {
  func.func @kernel(%arg0: i32, %arg1: i32, %arg2: memref<1x52x52x4xf32, #tpu.memory_space<vmem>>, %arg3: memref<4x8xf32, #tpu.memory_space<vmem>>, %arg4: memref<3x36x8xf32, #tpu.memory_space<vmem>>, %arg5: memref<32x8xf32, #tpu.memory_space<vmem>>, %arg6: memref<4x8xf32, #tpu.memory_space<vmem>>, %arg7: memref<1x1x8xf32, #tpu.memory_space<vmem>>, %arg8: memref<1x8x16x8xf32, #tpu.memory_space<vmem>>) attributes {dimension_semantics = [#tpu.dimension_semantics<parallel>, #tpu.dimension_semantics<parallel>], iteration_bounds = array<i64: 2, 2>, scalar_prefetch = 0 : i64, scratch_operands = 0 : i64, tpu.core_type = #tpu.core_type<tc>, window_params = [{transform_indices = @transform_0, window_bounds = array<i64: 1, 52, 52, 4>}, {pipeline_mode = #tpu.pipeline_mode<synchronous>, transform_indices = @transform_1, window_bounds = array<i64: 4, 8>}, {pipeline_mode = #tpu.pipeline_mode<synchronous>, transform_indices = @transform_2, window_bounds = array<i64: 3, 36, 8>}, {pipeline_mode = #tpu.pipeline_mode<synchronous>, transform_indices = @transform_3, window_bounds = array<i64: 32, 8>}, {pipeline_mode = #tpu.pipeline_mode<synchronous>, transform_indices = @transform_4, window_bounds = array<i64: 4, 8>}, {transform_indices = @transform_5, window_bounds = array<i64: 1, 1, 8>}, {transform_indices = @transform_6, window_bounds = array<i64: 1, 8, 16, 8>}]} {
    %c8_i32 = arith.constant 8 : i32
    %0 = arith.muli %arg1, %c8_i32 : i32
    %c18_i32 = arith.constant 18 : i32
    %1 = arith.addi %c18_i32, %0 : i32
    %c0 = arith.constant 0 : index
    %c0_0 = arith.constant 0 : index
    %2 = vector.load %arg6[%c0, %c0_0] : memref<4x8xf32, #tpu.memory_space<vmem>>, vector<4x8xf32>
    %c0_i32 = arith.constant 0 : i32
    %3 = arith.addi %1, %c0_i32 : i32
    %c0_1 = arith.constant 0 : index
    %4 = arith.index_cast %3 : i32 to index
    %c18 = arith.constant 18 : index
    %c0_2 = arith.constant 0 : index
    %5 = vector.load %arg2[%c0_1, %4, %c18, %c0_2] : memref<1x52x52x4xf32, #tpu.memory_space<vmem>>, vector<1x8x16x4xf32>
    %6 = vector.shape_cast %5 : vector<1x8x16x4xf32> to vector<8x16x4xf32>
    %7 = vector.shape_cast %6 : vector<8x16x4xf32> to vector<128x4xf32>
    %c0_3 = arith.constant 0 : index
    %c0_4 = arith.constant 0 : index
    %8 = vector.load %arg3[%c0_3, %c0_4] : memref<4x8xf32, #tpu.memory_space<vmem>>, vector<4x8xf32>
    %cst = arith.constant dense<0.000000e+00> : vector<128x8xf32>
    %9 = tpu.matmul %7, %8, %cst {dimension_numbers = #tpu.dot_dimension_numbers<[1], [0], [0], [1], [0, 0, 1, 1], [], []>} : vector<128x4xf32>, vector<4x8xf32>, vector<128x8xf32> -> vector<128x8xf32>
    %10 = vector.extract_strided_slice %2 {offsets = [0, 0], sizes = [1, 8], strides = [1, 1]} : vector<4x8xf32> to vector<1x8xf32>
    %11 = vector.broadcast %10 : vector<1x8xf32> to vector<128x8xf32>
    %12 = arith.addf %9, %11 : vector<128x8xf32>
    %cst_5 = arith.constant 0.000000e+00 : f32
    %13 = vector.broadcast %cst_5 : f32 to vector<128x8xf32>
    %14 = arith.maximumf %12, %13 : vector<128x8xf32>
    %c-6_i32 = arith.constant -6 : i32
    %15 = arith.addi %1, %c-6_i32 : i32
    %c0_6 = arith.constant 0 : index
    %16 = arith.index_cast %15 : i32 to index
    %c12 = arith.constant 12 : index
    %c0_7 = arith.constant 0 : index
    %17 = vector.load %arg2[%c0_6, %16, %c12, %c0_7] : memref<1x52x52x4xf32, #tpu.memory_space<vmem>>, vector<1x8x16x4xf32>
    %18 = vector.shape_cast %17 : vector<1x8x16x4xf32> to vector<8x16x4xf32>
    %19 = vector.shape_cast %18 : vector<8x16x4xf32> to vector<128x4xf32>
    %c-6_i32_8 = arith.constant -6 : i32
    %20 = arith.addi %1, %c-6_i32_8 : i32
    %c0_9 = arith.constant 0 : index
    %21 = arith.index_cast %20 : i32 to index
    %c18_10 = arith.constant 18 : index
    %c0_11 = arith.constant 0 : index
    %22 = vector.load %arg2[%c0_9, %21, %c18_10, %c0_11] : memref<1x52x52x4xf32, #tpu.memory_space<vmem>>, vector<1x8x16x4xf32>
    %23 = vector.shape_cast %22 : vector<1x8x16x4xf32> to vector<8x16x4xf32>
    %24 = vector.shape_cast %23 : vector<8x16x4xf32> to vector<128x4xf32>
    %c-6_i32_12 = arith.constant -6 : i32
    %25 = arith.addi %1, %c-6_i32_12 : i32
    %c0_13 = arith.constant 0 : index
    %26 = arith.index_cast %25 : i32 to index
    %c24 = arith.constant 24 : index
    %c0_14 = arith.constant 0 : index
    %27 = vector.load %arg2[%c0_13, %26, %c24, %c0_14] : memref<1x52x52x4xf32, #tpu.memory_space<vmem>>, vector<1x8x16x4xf32>
    %28 = vector.shape_cast %27 : vector<1x8x16x4xf32> to vector<8x16x4xf32>
    %29 = vector.shape_cast %28 : vector<8x16x4xf32> to vector<128x4xf32>
    %c0_i32_15 = arith.constant 0 : i32
    %30 = arith.addi %1, %c0_i32_15 : i32
    %c0_16 = arith.constant 0 : index
    %31 = arith.index_cast %30 : i32 to index
    %c12_17 = arith.constant 12 : index
    %c0_18 = arith.constant 0 : index
    %32 = vector.load %arg2[%c0_16, %31, %c12_17, %c0_18] : memref<1x52x52x4xf32, #tpu.memory_space<vmem>>, vector<1x8x16x4xf32>
    %33 = vector.shape_cast %32 : vector<1x8x16x4xf32> to vector<8x16x4xf32>
    %34 = vector.shape_cast %33 : vector<8x16x4xf32> to vector<128x4xf32>
    %c0_i32_19 = arith.constant 0 : i32
    %35 = arith.addi %1, %c0_i32_19 : i32
    %c0_20 = arith.constant 0 : index
    %36 = arith.index_cast %35 : i32 to index
    %c24_21 = arith.constant 24 : index
    %c0_22 = arith.constant 0 : index
    %37 = vector.load %arg2[%c0_20, %36, %c24_21, %c0_22] : memref<1x52x52x4xf32, #tpu.memory_space<vmem>>, vector<1x8x16x4xf32>
    %38 = vector.shape_cast %37 : vector<1x8x16x4xf32> to vector<8x16x4xf32>
    %39 = vector.shape_cast %38 : vector<8x16x4xf32> to vector<128x4xf32>
    %c6_i32 = arith.constant 6 : i32
    %40 = arith.addi %1, %c6_i32 : i32
    %c0_23 = arith.constant 0 : index
    %41 = arith.index_cast %40 : i32 to index
    %c12_24 = arith.constant 12 : index
    %c0_25 = arith.constant 0 : index
    %42 = vector.load %arg2[%c0_23, %41, %c12_24, %c0_25] : memref<1x52x52x4xf32, #tpu.memory_space<vmem>>, vector<1x8x16x4xf32>
    %43 = vector.shape_cast %42 : vector<1x8x16x4xf32> to vector<8x16x4xf32>
    %44 = vector.shape_cast %43 : vector<8x16x4xf32> to vector<128x4xf32>
    %c6_i32_26 = arith.constant 6 : i32
    %45 = arith.addi %1, %c6_i32_26 : i32
    %c0_27 = arith.constant 0 : index
    %46 = arith.index_cast %45 : i32 to index
    %c18_28 = arith.constant 18 : index
    %c0_29 = arith.constant 0 : index
    %47 = vector.load %arg2[%c0_27, %46, %c18_28, %c0_29] : memref<1x52x52x4xf32, #tpu.memory_space<vmem>>, vector<1x8x16x4xf32>
    %48 = vector.shape_cast %47 : vector<1x8x16x4xf32> to vector<8x16x4xf32>
    %49 = vector.shape_cast %48 : vector<8x16x4xf32> to vector<128x4xf32>
    %c6_i32_30 = arith.constant 6 : i32
    %50 = arith.addi %1, %c6_i32_30 : i32
    %c0_31 = arith.constant 0 : index
    %51 = arith.index_cast %50 : i32 to index
    %c24_32 = arith.constant 24 : index
    %c0_33 = arith.constant 0 : index
    %52 = vector.load %arg2[%c0_31, %51, %c24_32, %c0_33] : memref<1x52x52x4xf32, #tpu.memory_space<vmem>>, vector<1x8x16x4xf32>
    %53 = vector.shape_cast %52 : vector<1x8x16x4xf32> to vector<8x16x4xf32>
    %54 = vector.shape_cast %53 : vector<8x16x4xf32> to vector<128x4xf32>
    %55 = tpu.concatenate %19, %24, %29, %34, %7, %39, %44, %49, %54 in 1 : vector<128x4xf32>, vector<128x4xf32>, vector<128x4xf32>, vector<128x4xf32>, vector<128x4xf32>, vector<128x4xf32>, vector<128x4xf32>, vector<128x4xf32>, vector<128x4xf32> -> vector<128x36xf32>
    %c0_34 = arith.constant 0 : index
    %c0_35 = arith.constant 0 : index
    %c0_36 = arith.constant 0 : index
    %56 = vector.load %arg4[%c0_34, %c0_35, %c0_36] : memref<3x36x8xf32, #tpu.memory_space<vmem>>, vector<1x36x8xf32>
    %57 = vector.shape_cast %56 : vector<1x36x8xf32> to vector<36x8xf32>
    %cst_37 = arith.constant dense<0.000000e+00> : vector<128x8xf32>
    %58 = tpu.matmul %55, %57, %cst_37 {dimension_numbers = #tpu.dot_dimension_numbers<[1], [0], [0], [1], [0, 0, 1, 1], [], []>} : vector<128x36xf32>, vector<36x8xf32>, vector<128x8xf32> -> vector<128x8xf32>
    %59 = vector.extract_strided_slice %2 {offsets = [1, 0], sizes = [1, 8], strides = [1, 1]} : vector<4x8xf32> to vector<1x8xf32>
    %60 = vector.broadcast %59 : vector<1x8xf32> to vector<128x8xf32>
    %61 = arith.addf %58, %60 : vector<128x8xf32>
    %cst_38 = arith.constant 0.000000e+00 : f32
    %62 = vector.broadcast %cst_38 : f32 to vector<128x8xf32>
    %63 = arith.maximumf %61, %62 : vector<128x8xf32>
    %c-12_i32 = arith.constant -12 : i32
    %64 = arith.addi %1, %c-12_i32 : i32
    %c0_39 = arith.constant 0 : index
    %65 = arith.index_cast %64 : i32 to index
    %c6 = arith.constant 6 : index
    %c0_40 = arith.constant 0 : index
    %66 = vector.load %arg2[%c0_39, %65, %c6, %c0_40] : memref<1x52x52x4xf32, #tpu.memory_space<vmem>>, vector<1x8x16x4xf32>
    %67 = vector.shape_cast %66 : vector<1x8x16x4xf32> to vector<8x16x4xf32>
    %68 = vector.shape_cast %67 : vector<8x16x4xf32> to vector<128x4xf32>
    %c-12_i32_41 = arith.constant -12 : i32
    %69 = arith.addi %1, %c-12_i32_41 : i32
    %c0_42 = arith.constant 0 : index
    %70 = arith.index_cast %69 : i32 to index
    %c18_43 = arith.constant 18 : index
    %c0_44 = arith.constant 0 : index
    %71 = vector.load %arg2[%c0_42, %70, %c18_43, %c0_44] : memref<1x52x52x4xf32, #tpu.memory_space<vmem>>, vector<1x8x16x4xf32>
    %72 = vector.shape_cast %71 : vector<1x8x16x4xf32> to vector<8x16x4xf32>
    %73 = vector.shape_cast %72 : vector<8x16x4xf32> to vector<128x4xf32>
    %c-12_i32_45 = arith.constant -12 : i32
    %74 = arith.addi %1, %c-12_i32_45 : i32
    %c0_46 = arith.constant 0 : index
    %75 = arith.index_cast %74 : i32 to index
    %c30 = arith.constant 30 : index
    %c0_47 = arith.constant 0 : index
    %76 = vector.load %arg2[%c0_46, %75, %c30, %c0_47] : memref<1x52x52x4xf32, #tpu.memory_space<vmem>>, vector<1x8x16x4xf32>
    %77 = vector.shape_cast %76 : vector<1x8x16x4xf32> to vector<8x16x4xf32>
    %78 = vector.shape_cast %77 : vector<8x16x4xf32> to vector<128x4xf32>
    %c0_i32_48 = arith.constant 0 : i32
    %79 = arith.addi %1, %c0_i32_48 : i32
    %c0_49 = arith.constant 0 : index
    %80 = arith.index_cast %79 : i32 to index
    %c6_50 = arith.constant 6 : index
    %c0_51 = arith.constant 0 : index
    %81 = vector.load %arg2[%c0_49, %80, %c6_50, %c0_51] : memref<1x52x52x4xf32, #tpu.memory_space<vmem>>, vector<1x8x16x4xf32>
    %82 = vector.shape_cast %81 : vector<1x8x16x4xf32> to vector<8x16x4xf32>
    %83 = vector.shape_cast %82 : vector<8x16x4xf32> to vector<128x4xf32>
    %c0_i32_52 = arith.constant 0 : i32
    %84 = arith.addi %1, %c0_i32_52 : i32
    %c0_53 = arith.constant 0 : index
    %85 = arith.index_cast %84 : i32 to index
    %c30_54 = arith.constant 30 : index
    %c0_55 = arith.constant 0 : index
    %86 = vector.load %arg2[%c0_53, %85, %c30_54, %c0_55] : memref<1x52x52x4xf32, #tpu.memory_space<vmem>>, vector<1x8x16x4xf32>
    %87 = vector.shape_cast %86 : vector<1x8x16x4xf32> to vector<8x16x4xf32>
    %88 = vector.shape_cast %87 : vector<8x16x4xf32> to vector<128x4xf32>
    %c12_i32 = arith.constant 12 : i32
    %89 = arith.addi %1, %c12_i32 : i32
    %c0_56 = arith.constant 0 : index
    %90 = arith.index_cast %89 : i32 to index
    %c6_57 = arith.constant 6 : index
    %c0_58 = arith.constant 0 : index
    %91 = vector.load %arg2[%c0_56, %90, %c6_57, %c0_58] : memref<1x52x52x4xf32, #tpu.memory_space<vmem>>, vector<1x8x16x4xf32>
    %92 = vector.shape_cast %91 : vector<1x8x16x4xf32> to vector<8x16x4xf32>
    %93 = vector.shape_cast %92 : vector<8x16x4xf32> to vector<128x4xf32>
    %c12_i32_59 = arith.constant 12 : i32
    %94 = arith.addi %1, %c12_i32_59 : i32
    %c0_60 = arith.constant 0 : index
    %95 = arith.index_cast %94 : i32 to index
    %c18_61 = arith.constant 18 : index
    %c0_62 = arith.constant 0 : index
    %96 = vector.load %arg2[%c0_60, %95, %c18_61, %c0_62] : memref<1x52x52x4xf32, #tpu.memory_space<vmem>>, vector<1x8x16x4xf32>
    %97 = vector.shape_cast %96 : vector<1x8x16x4xf32> to vector<8x16x4xf32>
    %98 = vector.shape_cast %97 : vector<8x16x4xf32> to vector<128x4xf32>
    %c12_i32_63 = arith.constant 12 : i32
    %99 = arith.addi %1, %c12_i32_63 : i32
    %c0_64 = arith.constant 0 : index
    %100 = arith.index_cast %99 : i32 to index
    %c30_65 = arith.constant 30 : index
    %c0_66 = arith.constant 0 : index
    %101 = vector.load %arg2[%c0_64, %100, %c30_65, %c0_66] : memref<1x52x52x4xf32, #tpu.memory_space<vmem>>, vector<1x8x16x4xf32>
    %102 = vector.shape_cast %101 : vector<1x8x16x4xf32> to vector<8x16x4xf32>
    %103 = vector.shape_cast %102 : vector<8x16x4xf32> to vector<128x4xf32>
    %104 = tpu.concatenate %68, %73, %78, %83, %7, %88, %93, %98, %103 in 1 : vector<128x4xf32>, vector<128x4xf32>, vector<128x4xf32>, vector<128x4xf32>, vector<128x4xf32>, vector<128x4xf32>, vector<128x4xf32>, vector<128x4xf32>, vector<128x4xf32> -> vector<128x36xf32>
    %c1 = arith.constant 1 : index
    %c0_67 = arith.constant 0 : index
    %c0_68 = arith.constant 0 : index
    %105 = vector.load %arg4[%c1, %c0_67, %c0_68] : memref<3x36x8xf32, #tpu.memory_space<vmem>>, vector<1x36x8xf32>
    %106 = vector.shape_cast %105 : vector<1x36x8xf32> to vector<36x8xf32>
    %cst_69 = arith.constant dense<0.000000e+00> : vector<128x8xf32>
    %107 = tpu.matmul %104, %106, %cst_69 {dimension_numbers = #tpu.dot_dimension_numbers<[1], [0], [0], [1], [0, 0, 1, 1], [], []>} : vector<128x36xf32>, vector<36x8xf32>, vector<128x8xf32> -> vector<128x8xf32>
    %108 = vector.extract_strided_slice %2 {offsets = [2, 0], sizes = [1, 8], strides = [1, 1]} : vector<4x8xf32> to vector<1x8xf32>
    %109 = vector.broadcast %108 : vector<1x8xf32> to vector<128x8xf32>
    %110 = arith.addf %107, %109 : vector<128x8xf32>
    %cst_70 = arith.constant 0.000000e+00 : f32
    %111 = vector.broadcast %cst_70 : f32 to vector<128x8xf32>
    %112 = arith.maximumf %110, %111 : vector<128x8xf32>
    %c-18_i32 = arith.constant -18 : i32
    %113 = arith.addi %1, %c-18_i32 : i32
    %c0_71 = arith.constant 0 : index
    %114 = arith.index_cast %113 : i32 to index
    %c0_72 = arith.constant 0 : index
    %c0_73 = arith.constant 0 : index
    %115 = vector.load %arg2[%c0_71, %114, %c0_72, %c0_73] : memref<1x52x52x4xf32, #tpu.memory_space<vmem>>, vector<1x8x16x4xf32>
    %116 = vector.shape_cast %115 : vector<1x8x16x4xf32> to vector<8x16x4xf32>
    %117 = vector.shape_cast %116 : vector<8x16x4xf32> to vector<128x4xf32>
    %c-18_i32_74 = arith.constant -18 : i32
    %118 = arith.addi %1, %c-18_i32_74 : i32
    %c0_75 = arith.constant 0 : index
    %119 = arith.index_cast %118 : i32 to index
    %c18_76 = arith.constant 18 : index
    %c0_77 = arith.constant 0 : index
    %120 = vector.load %arg2[%c0_75, %119, %c18_76, %c0_77] : memref<1x52x52x4xf32, #tpu.memory_space<vmem>>, vector<1x8x16x4xf32>
    %121 = vector.shape_cast %120 : vector<1x8x16x4xf32> to vector<8x16x4xf32>
    %122 = vector.shape_cast %121 : vector<8x16x4xf32> to vector<128x4xf32>
    %c-18_i32_78 = arith.constant -18 : i32
    %123 = arith.addi %1, %c-18_i32_78 : i32
    %c0_79 = arith.constant 0 : index
    %124 = arith.index_cast %123 : i32 to index
    %c36 = arith.constant 36 : index
    %c0_80 = arith.constant 0 : index
    %125 = vector.load %arg2[%c0_79, %124, %c36, %c0_80] : memref<1x52x52x4xf32, #tpu.memory_space<vmem>>, vector<1x8x16x4xf32>
    %126 = vector.shape_cast %125 : vector<1x8x16x4xf32> to vector<8x16x4xf32>
    %127 = vector.shape_cast %126 : vector<8x16x4xf32> to vector<128x4xf32>
    %c0_i32_81 = arith.constant 0 : i32
    %128 = arith.addi %1, %c0_i32_81 : i32
    %c0_82 = arith.constant 0 : index
    %129 = arith.index_cast %128 : i32 to index
    %c0_83 = arith.constant 0 : index
    %c0_84 = arith.constant 0 : index
    %130 = vector.load %arg2[%c0_82, %129, %c0_83, %c0_84] : memref<1x52x52x4xf32, #tpu.memory_space<vmem>>, vector<1x8x16x4xf32>
    %131 = vector.shape_cast %130 : vector<1x8x16x4xf32> to vector<8x16x4xf32>
    %132 = vector.shape_cast %131 : vector<8x16x4xf32> to vector<128x4xf32>
    %c0_i32_85 = arith.constant 0 : i32
    %133 = arith.addi %1, %c0_i32_85 : i32
    %c0_86 = arith.constant 0 : index
    %134 = arith.index_cast %133 : i32 to index
    %c36_87 = arith.constant 36 : index
    %c0_88 = arith.constant 0 : index
    %135 = vector.load %arg2[%c0_86, %134, %c36_87, %c0_88] : memref<1x52x52x4xf32, #tpu.memory_space<vmem>>, vector<1x8x16x4xf32>
    %136 = vector.shape_cast %135 : vector<1x8x16x4xf32> to vector<8x16x4xf32>
    %137 = vector.shape_cast %136 : vector<8x16x4xf32> to vector<128x4xf32>
    %c18_i32_89 = arith.constant 18 : i32
    %138 = arith.addi %1, %c18_i32_89 : i32
    %c0_90 = arith.constant 0 : index
    %139 = arith.index_cast %138 : i32 to index
    %c0_91 = arith.constant 0 : index
    %c0_92 = arith.constant 0 : index
    %140 = vector.load %arg2[%c0_90, %139, %c0_91, %c0_92] : memref<1x52x52x4xf32, #tpu.memory_space<vmem>>, vector<1x8x16x4xf32>
    %141 = vector.shape_cast %140 : vector<1x8x16x4xf32> to vector<8x16x4xf32>
    %142 = vector.shape_cast %141 : vector<8x16x4xf32> to vector<128x4xf32>
    %c18_i32_93 = arith.constant 18 : i32
    %143 = arith.addi %1, %c18_i32_93 : i32
    %c0_94 = arith.constant 0 : index
    %144 = arith.index_cast %143 : i32 to index
    %c18_95 = arith.constant 18 : index
    %c0_96 = arith.constant 0 : index
    %145 = vector.load %arg2[%c0_94, %144, %c18_95, %c0_96] : memref<1x52x52x4xf32, #tpu.memory_space<vmem>>, vector<1x8x16x4xf32>
    %146 = vector.shape_cast %145 : vector<1x8x16x4xf32> to vector<8x16x4xf32>
    %147 = vector.shape_cast %146 : vector<8x16x4xf32> to vector<128x4xf32>
    %c18_i32_97 = arith.constant 18 : i32
    %148 = arith.addi %1, %c18_i32_97 : i32
    %c0_98 = arith.constant 0 : index
    %149 = arith.index_cast %148 : i32 to index
    %c36_99 = arith.constant 36 : index
    %c0_100 = arith.constant 0 : index
    %150 = vector.load %arg2[%c0_98, %149, %c36_99, %c0_100] : memref<1x52x52x4xf32, #tpu.memory_space<vmem>>, vector<1x8x16x4xf32>
    %151 = vector.shape_cast %150 : vector<1x8x16x4xf32> to vector<8x16x4xf32>
    %152 = vector.shape_cast %151 : vector<8x16x4xf32> to vector<128x4xf32>
    %153 = tpu.concatenate %117, %122, %127, %132, %7, %137, %142, %147, %152 in 1 : vector<128x4xf32>, vector<128x4xf32>, vector<128x4xf32>, vector<128x4xf32>, vector<128x4xf32>, vector<128x4xf32>, vector<128x4xf32>, vector<128x4xf32>, vector<128x4xf32> -> vector<128x36xf32>
    %c2 = arith.constant 2 : index
    %c0_101 = arith.constant 0 : index
    %c0_102 = arith.constant 0 : index
    %154 = vector.load %arg4[%c2, %c0_101, %c0_102] : memref<3x36x8xf32, #tpu.memory_space<vmem>>, vector<1x36x8xf32>
    %155 = vector.shape_cast %154 : vector<1x36x8xf32> to vector<36x8xf32>
    %cst_103 = arith.constant dense<0.000000e+00> : vector<128x8xf32>
    %156 = tpu.matmul %153, %155, %cst_103 {dimension_numbers = #tpu.dot_dimension_numbers<[1], [0], [0], [1], [0, 0, 1, 1], [], []>} : vector<128x36xf32>, vector<36x8xf32>, vector<128x8xf32> -> vector<128x8xf32>
    %157 = vector.extract_strided_slice %2 {offsets = [3, 0], sizes = [1, 8], strides = [1, 1]} : vector<4x8xf32> to vector<1x8xf32>
    %158 = vector.broadcast %157 : vector<1x8xf32> to vector<128x8xf32>
    %159 = arith.addf %156, %158 : vector<128x8xf32>
    %cst_104 = arith.constant 0.000000e+00 : f32
    %160 = vector.broadcast %cst_104 : f32 to vector<128x8xf32>
    %161 = arith.maximumf %159, %160 : vector<128x8xf32>
    %162 = tpu.concatenate %14, %63, %112, %161 in 1 : vector<128x8xf32>, vector<128x8xf32>, vector<128x8xf32>, vector<128x8xf32> -> vector<128x32xf32>
    %c0_105 = arith.constant 0 : index
    %c0_106 = arith.constant 0 : index
    %163 = vector.load %arg5[%c0_105, %c0_106] : memref<32x8xf32, #tpu.memory_space<vmem>>, vector<32x8xf32>
    %cst_107 = arith.constant dense<0.000000e+00> : vector<128x8xf32>
    %164 = tpu.matmul %162, %163, %cst_107 {dimension_numbers = #tpu.dot_dimension_numbers<[1], [0], [0], [1], [0, 0, 1, 1], [], []>} : vector<128x32xf32>, vector<32x8xf32>, vector<128x8xf32> -> vector<128x8xf32>
    %c0_108 = arith.constant 0 : index
    %c0_109 = arith.constant 0 : index
    %c0_110 = arith.constant 0 : index
    %165 = vector.load %arg7[%c0_108, %c0_109, %c0_110] : memref<1x1x8xf32, #tpu.memory_space<vmem>>, vector<1x1x8xf32>
    %166 = vector.shape_cast %165 : vector<1x1x8xf32> to vector<1x8xf32>
    %167 = vector.broadcast %166 : vector<1x8xf32> to vector<128x8xf32>
    %168 = arith.addf %164, %167 : vector<128x8xf32>
    %cst_111 = arith.constant 0.000000e+00 : f32
    %169 = vector.broadcast %cst_111 : f32 to vector<128x8xf32>
    %170 = arith.maximumf %168, %169 : vector<128x8xf32>
    %171 = vector.shape_cast %170 : vector<128x8xf32> to vector<8x16x8xf32>
    %c0_112 = arith.constant 0 : index
    %c0_113 = arith.constant 0 : index
    %c0_114 = arith.constant 0 : index
    %c0_115 = arith.constant 0 : index
    %172 = vector.load %arg8[%c0_112, %c0_113, %c0_114, %c0_115] : memref<1x8x16x8xf32, #tpu.memory_space<vmem>>, vector<1x8x16x8xf32>
    %173 = vector.shape_cast %172 : vector<1x8x16x8xf32> to vector<8x16x8xf32>
    %174 = vector.shape_cast %171 : vector<8x16x8xf32> to vector<1x8x16x8xf32>
    tpu.vector_store %arg8[%c0_112, %c0_113, %c0_114, %c0_115], %174 {strides = array<i32>} : memref<1x8x16x8xf32, #tpu.memory_space<vmem>>, vector<1x8x16x8xf32>,
    return
  }
  func.func @transform_0(%arg0: i32, %arg1: i32) -> (i32, i32, i32, i32) {
    %c0_i32 = arith.constant 0 : i32
    %c0_i32_0 = arith.constant 0 : i32
    %c0_i32_1 = arith.constant 0 : i32
    %c0_i32_2 = arith.constant 0 : i32
    return %arg0, %c0_i32, %c0_i32_0, %c0_i32_1 : i32, i32, i32, i32
  }
  func.func @transform_1(%arg0: i32, %arg1: i32) -> (i32, i32) {
    %c0_i32 = arith.constant 0 : i32
    %c0_i32_0 = arith.constant 0 : i32
    %c0_i32_1 = arith.constant 0 : i32
    return %c0_i32, %c0_i32_0 : i32, i32
  }
  func.func @transform_2(%arg0: i32, %arg1: i32) -> (i32, i32, i32) {
    %c0_i32 = arith.constant 0 : i32
    %c0_i32_0 = arith.constant 0 : i32
    %c0_i32_1 = arith.constant 0 : i32
    %c0_i32_2 = arith.constant 0 : i32
    return %c0_i32, %c0_i32_0, %c0_i32_1 : i32, i32, i32
  }
  func.func @transform_3(%arg0: i32, %arg1: i32) -> (i32, i32) {
    %c0_i32 = arith.constant 0 : i32
    %c0_i32_0 = arith.constant 0 : i32
    %c0_i32_1 = arith.constant 0 : i32
    return %c0_i32, %c0_i32_0 : i32, i32
  }
  func.func @transform_4(%arg0: i32, %arg1: i32) -> (i32, i32) {
    %c0_i32 = arith.constant 0 : i32
    %c0_i32_0 = arith.constant 0 : i32
    %c0_i32_1 = arith.constant 0 : i32
    return %c0_i32, %c0_i32_0 : i32, i32
  }
  func.func @transform_5(%arg0: i32, %arg1: i32) -> (i32, i32, i32) {
    %c0_i32 = arith.constant 0 : i32
    %c0_i32_0 = arith.constant 0 : i32
    %c0_i32_1 = arith.constant 0 : i32
    return %arg0, %c0_i32, %c0_i32_0 : i32, i32, i32
  }
  func.func @transform_6(%arg0: i32, %arg1: i32) -> (i32, i32, i32, i32) {
    %c0_i32 = arith.constant 0 : i32
    %c0_i32_0 = arith.constant 0 : i32
    %c0_i32_1 = arith.constant 0 : i32
    return %arg0, %arg1, %c0_i32, %c0_i32_0 : i32, i32, i32, i32
  }
}

</mosaic_0001>

<llo_original>
// kernel: aspp_pallas.1
$region0: #{aspp_pallas.1}
  #allocation0 [shape = 'u32[]', space=smem, size = 0x4, offset = 0x4, fixed_abs, tag = 'smem constant byte address 0x4 - core index']
  #allocation1 [shape = 'u32[72,128]{1,0:T(1,128)}', space=vmem, size = 0x9000, scoped, tag = 'internal scratch']
  %s0 = inlined_call_operand.vmem [shape: f32[2,52,52,4], index: 0, kind: input, shape index: {}]
  %s1 = inlined_call_operand.vmem [shape: f32[4,8], index: 1, kind: input, shape index: {}]
  %s2 = inlined_call_operand.vmem [shape: f32[3,36,8], index: 2, kind: input, shape index: {}]
  %s3 = inlined_call_operand.vmem [shape: f32[32,8], index: 3, kind: input, shape index: {}]
  %s4 = inlined_call_operand.vmem [shape: f32[4,8], index: 4, kind: input, shape index: {}]
  %s5 = inlined_call_operand.vmem [shape: f32[2,1,8], index: 5, kind: input, shape index: {}]
  %s6 = inlined_call_operand.vmem [shape: f32[2,16,16,8], index: 6, kind: output, shape index: {}]
  %s7 = sld [smem:[#allocation0]]
  $region57: #{aspp_pallas.1} parent=0
    _
  %s9 = ssub.s32 1, %s7
  %s10 = scalar_select 0, %s9, %s7
  loop: start=0, step=1, limit=6
  $region2: #{aspp_pallas.1} parent=0 // loop_pre_header
    _
  $region3: #{aspp_pallas.1} parent=0 // loop_header
    %s12 = sphi 0, %s16
    %p13 = scmp.ge.s32.totalorder %s12, 6
    %s19 = sphi 0, %s31
    %s20 = sphi 0, %s27
    %s21 = sphi 0, %s19
    %s22 = sphi 0, %s20
    %s23 = sphi 0, %s21
    %s24 = sphi 0, %s22
    %s34 = sphi 0, %s36
    %s37 = sphi 0, %s34
    %s38 = sphi 0, %s37
    %s54 = sphi 0, %s38
    %s58 = sphi 0, %s58
    %s60 = sphi 0, %s58
    %s61 = sphi 0, %s60
    %s75 = sphi 0, %s61
    %s79 = sphi 0, %s79
    %s81 = sphi 0, %s79
    %s82 = sphi 0, %s81
    %s96 = sphi 0, %s82
    %s100 = sphi 0, %s100
    %s102 = sphi 0, %s100
    %s103 = sphi 0, %s102
    %s117 = sphi 0, %s103
    %s121 = sphi 0, %s121
    %s123 = sphi 0, %s121
    %s124 = sphi 0, %s123
    %s138 = sphi 0, %s124
    %s144 = sphi 0, %s146
    %s147 = sphi 0, %s144
    %s148 = sphi 0, %s147
    %s164 = sphi 0, %s148
    %s172 = sphi 0, %s174
    %s175 = sphi 0, %s172
    %s176 = sphi 0, %s175
    %s192 = sphi 0, %s176
  $region4: #{aspp_pallas.1} parent=0 // loop_header_branch
    %15 = sbr.rel (%p13) target = $region8
  $region5: #{aspp_pallas.1} parent=0 // loop_body
    %s17 = ssub.s32 %s12, 1
    %s18 = ssub.s32 %s12, 2
    %s25 = sadd.s32 1, %s20
    %p26 = scmp.ge.s32.totalorder %s25, 2
    %s27 = scalar_select %p26, 0, %s25
    %s28 = sadd.s32 1, %s19
    %s29 = scalar_select %p26, %s28, %s19
    %p30 = scmp.ge.s32.totalorder %s29, 2
    %s31 = scalar_select %p30, 0, %s29
    %s32 = ssub.s32 %s19, %s31
    %p33 = scmp.eq.s32.totalorder %s32, 0
    %s35 = sadd.s32 %s34, 1
    %s36 = scalar_select %p33, %s34, %s35
    %p39 = pneg %p33
    %p40 = scmp.eq.s32.totalorder %s12, 3
    %p41 = por %p39, %p40
    %p42 = scmp.ne.s32.totalorder %s34, %s37
    %p43 = scmp.eq.s32.totalorder %s12, 0
    %p44 = por %p42, %p43
    %p45 = scmp.ne.s32.totalorder %s34, %s37
    %p46 = scmp.eq.s32.totalorder %s17, 3
    %p47 = por %p45, %p46
    %p48 = scmp.ne.s32.totalorder %s37, %s38
    %p49 = scmp.eq.s32.totalorder %s17, 0
    %p50 = por %p48, %p49
    %p51 = scmp.ne.s32.totalorder %s37, %s38
    %p52 = scmp.eq.s32.totalorder %s18, 3
    %p53 = por %p51, %p52
    %p55 = scmp.ne.s32.totalorder %s38, %s54
    %p56 = scmp.eq.s32.totalorder %s18, 0
    %p57 = por %p55, %p56
    %s59 = sadd.s32 %s58, 1
    %p62 = scmp.eq.s32.totalorder %s12, 3
    %p63 = scmp.ne.s32.totalorder %s58, %s60
    %p64 = scmp.eq.s32.totalorder %s12, 0
    %p65 = por %p63, %p64
    %p66 = scmp.ne.s32.totalorder %s58, %s60
    %p67 = scmp.eq.s32.totalorder %s17, 3
    %p68 = por %p66, %p67
    %p69 = scmp.ne.s32.totalorder %s60, %s61
    %p70 = scmp.eq.s32.totalorder %s17, 0
    %p71 = por %p69, %p70
    %p72 = scmp.ne.s32.totalorder %s60, %s61
    %p73 = scmp.eq.s32.totalorder %s18, 3
    %p74 = por %p72, %p73
    %p76 = scmp.ne.s32.totalorder %s61, %s75
    %p77 = scmp.eq.s32.totalorder %s18, 0
    %p78 = por %p76, %p77
    %s80 = sadd.s32 %s79, 1
    %p83 = scmp.eq.s32.totalorder %s12, 3
    %p84 = scmp.ne.s32.totalorder %s79, %s81
    %p85 = scmp.eq.s32.totalorder %s12, 0
    %p86 = por %p84, %p85
    %p87 = scmp.ne.s32.totalorder %s79, %s81
    %p88 = scmp.eq.s32.totalorder %s17, 3
    %p89 = por %p87, %p88
    %p90 = scmp.ne.s32.totalorder %s81, %s82
    %p91 = scmp.eq.s32.totalorder %s17, 0
    %p92 = por %p90, %p91
    %p93 = scmp.ne.s32.totalorder %s81, %s82
    %p94 = scmp.eq.s32.totalorder %s18, 3
    %p95 = por %p93, %p94
    %p97 = scmp.ne.s32.totalorder %s82, %s96
    %p98 = scmp.eq.s32.totalorder %s18, 0
    %p99 = por %p97, %p98
    %s101 = sadd.s32 %s100, 1
    %p104 = scmp.eq.s32.totalorder %s12, 3
    %p105 = scmp.ne.s32.totalorder %s100, %s102
    %p106 = scmp.eq.s32.totalorder %s12, 0
    %p107 = por %p105, %p106
    %p108 = scmp.ne.s32.totalorder %s100, %s102
    %p109 = scmp.eq.s32.totalorder %s17, 3
    %p110 = por %p108, %p109
    %p111 = scmp.ne.s32.totalorder %s102, %s103
    %p112 = scmp.eq.s32.totalorder %s17, 0
    %p113 = por %p111, %p112
    %p114 = scmp.ne.s32.totalorder %s102, %s103
    %p115 = scmp.eq.s32.totalorder %s18, 3
    %p116 = por %p114, %p115
    %p118 = scmp.ne.s32.totalorder %s103, %s117
    %p119 = scmp.eq.s32.totalorder %s18, 0
    %p120 = por %p118, %p119
    %s122 = sadd.s32 %s121, 1
    %p125 = scmp.eq.s32.totalorder %s12, 3
    %p126 = scmp.ne.s32.totalorder %s121, %s123
    %p127 = scmp.eq.s32.totalorder %s12, 0
    %p128 = por %p126, %p127
    %p129 = scmp.ne.s32.totalorder %s121, %s123
    %p130 = scmp.eq.s32.totalorder %s17, 3
    %p131 = por %p129, %p130
    %p132 = scmp.ne.s32.totalorder %s123, %s124
    %p133 = scmp.eq.s32.totalorder %s17, 0
    %p134 = por %p132, %p133
    %p135 = scmp.ne.s32.totalorder %s123, %s124
    %p136 = scmp.eq.s32.totalorder %s18, 3
    %p137 = por %p135, %p136
    %p139 = scmp.ne.s32.totalorder %s124, %s138
    %p140 = scmp.eq.s32.totalorder %s18, 0
    %p141 = por %p139, %p140
    %s142 = ssub.s32 %s19, %s31
    %p143 = scmp.eq.s32.totalorder %s142, 0
    %s145 = sadd.s32 %s144, 1
    %s146 = scalar_select %p143, %s144, %s145
    %p149 = pneg %p143
    %p150 = scmp.eq.s32.totalorder %s12, 3
    %p151 = por %p149, %p150
    %p152 = scmp.ne.s32.totalorder %s144, %s147
    %p153 = scmp.eq.s32.totalorder %s12, 0
    %p154 = por %p152, %p153
    %p155 = scmp.ne.s32.totalorder %s144, %s147
    %p156 = scmp.eq.s32.totalorder %s17, 3
    %p157 = por %p155, %p156
    %p158 = scmp.ne.s32.totalorder %s147, %s148
    %p159 = scmp.eq.s32.totalorder %s17, 0
    %p160 = por %p158, %p159
    %p161 = scmp.ne.s32.totalorder %s147, %s148
    %p162 = scmp.eq.s32.totalorder %s18, 3
    %p163 = por %p161, %p162
    %p165 = scmp.ne.s32.totalorder %s148, %s164
    %p166 = scmp.eq.s32.totalorder %s18, 0
    %p167 = por %p165, %p166
    %s168 = ssub.s32 %s19, %s31
    %s169 = ssub.s32 %s20, %s27
    %s170 = sor.u32 %s168, %s169
    %p171 = scmp.eq.s32.totalorder %s170, 0
    %s173 = sadd.s32 %s172, 1
    %s174 = scalar_select %p171, %s172, %s173
    %p177 = pneg %p171
    %p178 = scmp.eq.s32.totalorder %s12, 3
    %p179 = por %p177, %p178
    %p180 = scmp.ne.s32.totalorder %s172, %s175
    %p181 = scmp.eq.s32.totalorder %s12, 0
    %p182 = por %p180, %p181
    %p183 = scmp.ne.s32.totalorder %s172, %s175
    %p184 = scmp.eq.s32.totalorder %s17, 3
    %p185 = por %p183, %p184
    %p186 = scmp.ne.s32.totalorder %s175, %s176
    %p187 = scmp.eq.s32.totalorder %s17, 0
    %p188 = por %p186, %p187
    %p189 = scmp.ne.s32.totalorder %s175, %s176
    %p190 = scmp.eq.s32.totalorder %s18, 3
    %p191 = por %p189, %p190
    %p193 = scmp.ne.s32.totalorder %s176, %s192
    %p194 = scmp.eq.s32.totalorder %s18, 0
    %p195 = por %p193, %p194
    %p196 = scmp.le.s32.totalorder 1, %s12
    %p197 = scmp.lt.s32.totalorder %s12, 5
    %p198 = pnand %p196, %p197
    %p199 = pneg %p198
    // Predicated region
    $region9: #{aspp_pallas.1} parent=5 // pred_check
      _
    $region10: #{aspp_pallas.1} parent=5 // pred_check_branch
      %201 = sbr.rel (%p198) target = $region12
    $region11: #{aspp_pallas.1} parent=5 // pred_region
      %s202 = ssub.s32 %s12, 1
      // Predicated region
      $region13: #{aspp_pallas.1} parent=11 // pred_check
        %p203 = pneg %p71
      $region14: #{aspp_pallas.1} parent=11 // pred_check_branch
        %205 = sbr.rel (%p203) target = $region16
      $region15: #{aspp_pallas.1} parent=11 // pred_region
        _
      $region16: #{aspp_pallas.1} parent=11 // pred_fallthru
        _
      // Predicated region
      $region17: #{aspp_pallas.1} parent=11 // pred_check
        %p206 = pneg %p92
      $region18: #{aspp_pallas.1} parent=11 // pred_check_branch
        %208 = sbr.rel (%p206) target = $region20
      $region19: #{aspp_pallas.1} parent=11 // pred_region
        _
      $region20: #{aspp_pallas.1} parent=11 // pred_fallthru
        _
      // Predicated region
      $region21: #{aspp_pallas.1} parent=11 // pred_check
        %p209 = pneg %p113
      $region22: #{aspp_pallas.1} parent=11 // pred_check_branch
        %211 = sbr.rel (%p209) target = $region24
      $region23: #{aspp_pallas.1} parent=11 // pred_region
        _
      $region24: #{aspp_pallas.1} parent=11 // pred_fallthru
        _
      // Predicated region
      $region25: #{aspp_pallas.1} parent=11 // pred_check
        %p212 = pneg %p134
      $region26: #{aspp_pallas.1} parent=11 // pred_check_branch
        %214 = sbr.rel (%p212) target = $region28
      $region27: #{aspp_pallas.1} parent=11 // pred_region
        _
      $region28: #{aspp_pallas.1} parent=11 // pred_fallthru
        _
    $region12: #{aspp_pallas.1} parent=5 // pred_fallthru
      _
    %p215 = scmp.lt.s32.totalorder %s12, 4
    // Predicated region
    $region29: #{aspp_pallas.1} parent=5 // pred_check
      %p216 = pneg %p215
    $region30: #{aspp_pallas.1} parent=5 // pred_check_branch
      %218 = sbr.rel (%p216) target = $region32
    $region31: #{aspp_pallas.1} parent=5 // pred_region
      // Predicated region
      $region33: #{aspp_pallas.1} parent=31 // pred_check
        %p219 = pneg %p44
      $region34: #{aspp_pallas.1} parent=31 // pred_check_branch
        %221 = sbr.rel (%p219) target = $region36
      $region35: #{aspp_pallas.1} parent=31 // pred_region
        %p222 = scmp.lt.s32.totalorder %s19, 1
        %s223 = scalar_select %p222, %s19, 1
        %s224 = smul.addr %s223, 364
        %s225 = smul.addr %s224, 8
        %s226 = scalar_lea.vmem %s0, %s225
      $region36: #{aspp_pallas.1} parent=31 // pred_fallthru
        _
      // Predicated region
      $region37: #{aspp_pallas.1} parent=31 // pred_check
        %p227 = pneg %p154
      $region38: #{aspp_pallas.1} parent=31 // pred_check_branch
        %229 = sbr.rel (%p227) target = $region40
      $region39: #{aspp_pallas.1} parent=31 // pred_region
        %p230 = scmp.lt.s32.totalorder %s19, 1
        %s231 = scalar_select %p230, %s19, 1
        %s232 = scalar_lea.vmem %s5, %s231
      $region40: #{aspp_pallas.1} parent=31 // pred_fallthru
        _
    $region32: #{aspp_pallas.1} parent=5 // pred_fallthru
      _
    %p233 = scmp.le.s32.totalorder 1, %s12
    %p234 = scmp.lt.s32.totalorder %s12, 5
    %p235 = pnand %p233, %p234
    %p236 = pneg %p235
    // Predicated region
    $region41: #{aspp_pallas.1} parent=5 // pred_check
      _
    $region42: #{aspp_pallas.1} parent=5 // pred_check_branch
      %238 = sbr.rel (%p235) target = $region44
    $region43: #{aspp_pallas.1} parent=5 // pred_region
      %s239 = ssub.s32 %s12, 1
      %p240 = scmp.lt.s32.totalorder %s21, 1
      %s241 = scalar_select %p240, %s21, 1
      %s242 = smul.addr %s241, 364
      %s243 = smul.addr %s242, 8
      %s244 = scalar_lea.vmem %s0, %s243
      %p245 = pneg %p50
      %p246 = pneg %p47
      %p247 = pneg %p71
      %p248 = pneg %p68
      %p249 = pneg %p92
      %p250 = pneg %p89
      %p251 = pneg %p113
      %p252 = pneg %p110
      %p253 = pneg %p134
      %p254 = pneg %p131
      %p255 = scmp.lt.s32.totalorder %s21, 1
      %s256 = scalar_select %p255, %s21, 1
      %s257 = scalar_lea.vmem %s5, %s256
      %p258 = pneg %p160
      %p259 = pneg %p157
      %p260 = pneg %p188
      %p261 = pneg %p185
      %s262 = smul.u32 8, %s22
      %p263 = scmp.lt.s32.totalorder %s21, 1
      %s264 = scalar_select %p263, %s21, 1
      %p265 = scmp.lt.s32.totalorder %s262, 15
      %s266 = scalar_select %p265, %s262, 15
      %s267 = smul.addr %s266, 2
      %s268 = smul.addr %s264, 32
      %s269 = sadd.s32 %s267, %s268
      %s270 = smul.addr %s269, 8
      %s271 = scalar_lea.vmem %s6, %s270
      %p272 = scmp.lt.s32.totalorder %s21, 1
      %s273 = scalar_select %p272, %s21, 1
      %s274 = smul.addr %s273, 364
      %s275 = smul.addr %s274, 8
      %s276 = scalar_lea.vmem %s0, %s275
      %p277 = scmp.lt.s32.totalorder %s21, 1
      %s278 = scalar_select %p277, %s21, 1
      %s279 = scalar_lea.vmem %s5, %s278
      %s280 = smul.u32 8, %s22
      %p281 = scmp.lt.s32.totalorder %s21, 1
      %s282 = scalar_select %p281, %s21, 1
      %p283 = scmp.lt.s32.totalorder %s280, 15
      %s284 = scalar_select %p283, %s280, 15
      %s285 = smul.addr %s284, 2
      %s286 = smul.addr %s282, 32
      %s287 = sadd.s32 %s285, %s286
      %s288 = smul.addr %s287, 8
      %s289 = scalar_lea.vmem %s6, %s288
      %s290 = smul.u32 8, %s22
      %s291 = smul.u32 %s22, 8
      %s292 = sadd.s32 %s291, 18
      %v293 = vld [vmem:[%s4] sm:$0xf]
      %s294 = smul.u32 %s292, 56
      %s295 = scalar_lea.vmem %s276, %s294
      %v296 = vld [vmem:[%s295 + $0x12] sm:$0xff]
      %v297 = vld [vmem:[%s295 + $0x1a] sm:$0xff]
      %v298 = vld [vmem:[%s295 + $0x4a] sm:$0xff]
      %v299 = vld [vmem:[%s295 + $0x52] sm:$0xff]
      %v300 = vld [vmem:[%s295 + $0x82] sm:$0xff]
      %v301 = vld [vmem:[%s295 + $0x8a] sm:$0xff]
      %v302 = vld [vmem:[%s295 + $0xba] sm:$0xff]
      %v303 = vld [vmem:[%s295 + $0xc2] sm:$0xff]
      %v304 = vld [vmem:[%s295 + $0xf2] sm:$0xff]
      %v305 = vld [vmem:[%s295 + $0xfa] sm:$0xff]
      %v306 = vld [vmem:[%s295 + $0x12a] sm:$0xff]
      %v307 = vld [vmem:[%s295 + $0x132] sm:$0xff]
      %v308 = vld [vmem:[%s295 + $0x162] sm:$0xff]
      %v309 = vld [vmem:[%s295 + $0x16a] sm:$0xff]
      %v310 = vld [vmem:[%s295 + $0x19a] sm:$0xff]
      %v311 = vld [vmem:[%s295 + $0x1a2] sm:$0xff]
      %v312 = vld [vmem:[%s1] sm:$0xf]
      %v313 = vperm.slane %v293, 0
      %vm314 = vcmask 31744
      %v316 = vsel %vm314, %v296, 0
      %v319 = vsel %vm314, %v297, 0
      %v322 = vsel %vm314, %v298, 0
      %v325 = vsel %vm314, %v299, 0
      %v328 = vsel %vm314, %v300, 0
      %v331 = vsel %vm314, %v301, 0
      %v334 = vsel %vm314, %v302, 0
      %v337 = vsel %vm314, %v303, 0
      %v340 = vsel %vm314, %v304, 0
      %v343 = vsel %vm314, %v305, 0
      %v346 = vsel %vm314, %v306, 0
      %v349 = vsel %vm314, %v307, 0
      %v352 = vsel %vm314, %v308, 0
      %v355 = vsel %vm314, %v309, 0
      %v358 = vsel %vm314, %v310, 0
      %v361 = vsel %vm314, %v311, 0
      %vm363 = vcmask 1043456
      %v365 = vsel %vm363, %v312, 0
      %367 = vmatpush.msra.mxu0 0.0
      %368 = vmatpush.msra.mxu0 0.0
      %369 = vmatpush.msra.mxu0 0.0
      %370 = vmatpush.msra.mxu0 0.0
      %371 = vmatpush.msra.mxu0 0.0
      %372 = vmatpush.msra.mxu0 0.0
      %373 = vmatpush.msra.mxu0 0.0
      %374 = vmatpush.msra.mxu0 0.0
      %375 = vmatpush.msra.mxu0 0.0
      %376 = vmatpush.msra.mxu0 0.0
      %377 = vmatpush.msra.mxu0 0.0
      %378 = vmatpush.msra.mxu0 0.0
      %379 = vmatpush.msra.mxu0 0.0
      %380 = vmatpush.msra.mxu0 0.0
      %381 = vmatpush.msra.mxu0 0.0
      %382 = vmatpush.msra.mxu0 %v365
      %383 = vmatmul.f32.gmra.mxu0 %v316
      %v384 = vpop.f32.mrf.mxu0
      %v385 = vadd.f32 %v313, %v384
      %386 = vmatmul.f32.gmra.mxu0 %v319
      %v387 = vpop.f32.mrf.mxu0
      %v388 = vadd.f32 %v313, %v387
      %389 = vmatmul.f32.gmra.mxu0 %v322
      %v390 = vpop.f32.mrf.mxu0
      %v391 = vadd.f32 %v313, %v390
      %392 = vmatmul.f32.gmra.mxu0 %v325
      %v393 = vpop.f32.mrf.mxu0
      %v394 = vadd.f32 %v313, %v393
      %395 = vmatmul.f32.gmra.mxu0 %v328
      %v396 = vpop.f32.mrf.mxu0
      %v397 = vadd.f32 %v313, %v396
      %398 = vmatmul.f32.gmra.mxu0 %v331
      %v399 = vpop.f32.mrf.mxu0
      %v400 = vadd.f32 %v313, %v399
      %401 = vmatmul.f32.gmra.mxu0 %v334
      %v402 = vpop.f32.mrf.mxu0
      %v403 = vadd.f32 %v313, %v402
      %404 = vmatmul.f32.gmra.mxu0 %v337
      %v405 = vpop.f32.mrf.mxu0
      %v406 = vadd.f32 %v313, %v405
      %407 = vmatmul.f32.gmra.mxu0 %v340
      %v408 = vpop.f32.mrf.mxu0
      %v409 = vadd.f32 %v313, %v408
      %410 = vmatmul.f32.gmra.mxu0 %v343
      %v411 = vpop.f32.mrf.mxu0
      %v412 = vadd.f32 %v313, %v411
      %413 = vmatmul.f32.gmra.mxu0 %v346
      %v414 = vpop.f32.mrf.mxu0
      %v415 = vadd.f32 %v313, %v414
      %416 = vmatmul.f32.gmra.mxu0 %v349
      %v417 = vpop.f32.mrf.mxu0
      %v418 = vadd.f32 %v313, %v417
      %419 = vmatmul.f32.gmra.mxu0 %v352
      %v420 = vpop.f32.mrf.mxu0
      %v421 = vadd.f32 %v313, %v420
      %422 = vmatmul.f32.gmra.mxu0 %v355
      %v423 = vpop.f32.mrf.mxu0
      %v424 = vadd.f32 %v313, %v423
      %425 = vmatmul.f32.gmra.mxu0 %v358
      %v426 = vpop.f32.mrf.mxu0
      %v427 = vadd.f32 %v313, %v426
      %428 = vmatmul.f32.gmra.mxu0 %v361
      %v429 = vpop.f32.mrf.mxu0
      %v430 = vadd.f32 %v313, %v429
      %431 = vdwg.mxu0
      %v432 = vmax.f32 %v385, 0.0
      %v433 = vmax.f32 %v388, 0.0
      %v434 = vmax.f32 %v391, 0.0
      %v435 = vmax.f32 %v394, 0.0
      %v436 = vmax.f32 %v397, 0.0
      %v437 = vmax.f32 %v400, 0.0
      %v438 = vmax.f32 %v403, 0.0
      %v439 = vmax.f32 %v406, 0.0
      %v440 = vmax.f32 %v409, 0.0
      %v441 = vmax.f32 %v412, 0.0
      %v442 = vmax.f32 %v415, 0.0
      %v443 = vmax.f32 %v418, 0.0
      %v444 = vmax.f32 %v421, 0.0
      %v445 = vmax.f32 %v424, 0.0
      %v446 = vmax.f32 %v427, 0.0
      %v447 = vmax.f32 %v430, 0.0
      %s448 = sadd.s32 %s291, 12
      %s449 = smul.u32 %s448, 56
      %s450 = scalar_lea.vmem %s276, %s449
      %v451 = vld [vmem:[%s450 + $0xc] sm:$0xff]
      %v452 = vld [vmem:[%s450 + $0x14] sm:$0xff]
      %v453 = vld [vmem:[%s450 + $0x44] sm:$0xff]
      %v454 = vld [vmem:[%s450 + $0x4c] sm:$0xff]
      %v455 = vld [vmem:[%s450 + $0x7c] sm:$0xff]
      %v456 = vld [vmem:[%s450 + $0x84] sm:$0xff]
      %v457 = vld [vmem:[%s450 + $0xb4] sm:$0xff]
      %v458 = vld [vmem:[%s450 + $0xbc] sm:$0xff]
      %v459 = vld [vmem:[%s450 + $0xec] sm:$0xff]
      %v460 = vld [vmem:[%s450 + $0xf4] sm:$0xff]
      %v461 = vld [vmem:[%s450 + $0x124] sm:$0xff]
      %v462 = vld [vmem:[%s450 + $0x12c] sm:$0xff]
      %v463 = vld [vmem:[%s450 + $0x15c] sm:$0xff]
      %v464 = vld [vmem:[%s450 + $0x164] sm:$0xff]
      %v465 = vld [vmem:[%s450 + $0x194] sm:$0xff]
      %v466 = vld [vmem:[%s450 + $0x19c] sm:$0xff]
      %v467 = vld [vmem:[%s450 + $0x12] sm:$0xff]
      %v468 = vld [vmem:[%s450 + $0x1a] sm:$0xff]
      %v469 = vld [vmem:[%s450 + $0x4a] sm:$0xff]
      %v470 = vld [vmem:[%s450 + $0x52] sm:$0xff]
      %v471 = vld [vmem:[%s450 + $0x82] sm:$0xff]
      %v472 = vld [vmem:[%s450 + $0x8a] sm:$0xff]
      %v473 = vld [vmem:[%s450 + $0xba] sm:$0xff]
      %v474 = vld [vmem:[%s450 + $0xc2] sm:$0xff]
      %v475 = vld [vmem:[%s450 + $0xf2] sm:$0xff]
      %v476 = vld [vmem:[%s450 + $0xfa] sm:$0xff]
      %v477 = vld [vmem:[%s450 + $0x12a] sm:$0xff]
      %v478 = vld [vmem:[%s450 + $0x132] sm:$0xff]
      %v479 = vld [vmem:[%s450 + $0x162] sm:$0xff]
      %v480 = vld [vmem:[%s450 + $0x16a] sm:$0xff]
      %v481 = vld [vmem:[%s450 + $0x19a] sm:$0xff]
      %v482 = vld [vmem:[%s450 + $0x1a2] sm:$0xff]
      %v483 = vld [vmem:[%s450 + $0x18] sm:$0xff]
      %v484 = vld [vmem:[%s450 + $0x20] sm:$0xff]
      %v485 = vld [vmem:[%s450 + $0x50] sm:$0xff]
      %v486 = vld [vmem:[%s450 + $0x58] sm:$0xff]
      %v487 = vld [vmem:[%s450 + $0x88] sm:$0xff]
      %v488 = vld [vmem:[%s450 + $0x90] sm:$0xff]
      %v489 = vld [vmem:[%s450 + $0xc0] sm:$0xff]
      %v490 = vld [vmem:[%s450 + $0xc8] sm:$0xff]
      %v491 = vld [vmem:[%s450 + $0xf8] sm:$0xff]
      %v492 = vld [vmem:[%s450 + $0x100] sm:$0xff]
      %v493 = vld [vmem:[%s450 + $0x130] sm:$0xff]
      %v494 = vld [vmem:[%s450 + $0x138] sm:$0xff]
      %v495 = vld [vmem:[%s450 + $0x168] sm:$0xff]
      %v496 = vld [vmem:[%s450 + $0x170] sm:$0xff]
      %v497 = vld [vmem:[%s450 + $0x1a0] sm:$0xff]
      %v498 = vld [vmem:[%s450 + $0x1a8] sm:$0xff]
      %v499 = vld [vmem:[%s295 + $0xc] sm:$0xff]
      %v500 = vld [vmem:[%s295 + $0x14] sm:$0xff]
      %v501 = vld [vmem:[%s295 + $0x44] sm:$0xff]
      %v502 = vld [vmem:[%s295 + $0x4c] sm:$0xff]
      %v503 = vld [vmem:[%s295 + $0x7c] sm:$0xff]
      %v504 = vld [vmem:[%s295 + $0x84] sm:$0xff]
      %v505 = vld [vmem:[%s295 + $0xb4] sm:$0xff]
      %v506 = vld [vmem:[%s295 + $0xbc] sm:$0xff]
      %v507 = vld [vmem:[%s295 + $0xec] sm:$0xff]
      %v508 = vld [vmem:[%s295 + $0xf4] sm:$0xff]
      %v509 = vld [vmem:[%s295 + $0x124] sm:$0xff]
      %v510 = vld [vmem:[%s295 + $0x12c] sm:$0xff]
      %v511 = vld [vmem:[%s295 + $0x15c] sm:$0xff]
      %v512 = vld [vmem:[%s295 + $0x164] sm:$0xff]
      %v513 = vld [vmem:[%s295 + $0x194] sm:$0xff]
      %v514 = vld [vmem:[%s295 + $0x19c] sm:$0xff]
      %v515 = vld [vmem:[%s295 + $0x18] sm:$0xff]
      %v516 = vld [vmem:[%s295 + $0x20] sm:$0xff]
      %v517 = vld [vmem:[%s295 + $0x50] sm:$0xff]
      %v518 = vld [vmem:[%s295 + $0x58] sm:$0xff]
      %v519 = vld [vmem:[%s295 + $0x88] sm:$0xff]
      %v520 = vld [vmem:[%s295 + $0x90] sm:$0xff]
      %v521 = vld [vmem:[%s295 + $0xc0] sm:$0xff]
      %v522 = vld [vmem:[%s295 + $0xc8] sm:$0xff]
      %v523 = vld [vmem:[%s295 + $0xf8] sm:$0xff]
      %v524 = vld [vmem:[%s295 + $0x100] sm:$0xff]
      %v525 = vld [vmem:[%s295 + $0x130] sm:$0xff]
      %v526 = vld [vmem:[%s295 + $0x138] sm:$0xff]
      %v527 = vld [vmem:[%s295 + $0x168] sm:$0xff]
      %v528 = vld [vmem:[%s295 + $0x170] sm:$0xff]
      %v529 = vld [vmem:[%s295 + $0x1a0] sm:$0xff]
      %v530 = vld [vmem:[%s295 + $0x1a8] sm:$0xff]
      %s531 = sadd.s32 %s291, 24
      %s532 = smul.u32 %s531, 56
      %s533 = scalar_lea.vmem %s276, %s532
      %v534 = vld [vmem:[%s533 + $0xc] sm:$0xff]
      %v535 = vld [vmem:[%s533 + $0x14] sm:$0xff]
      %v536 = vld [vmem:[%s533 + $0x44] sm:$0xff]
      %v537 = vld [vmem:[%s533 + $0x4c] sm:$0xff]
      %v538 = vld [vmem:[%s533 + $0x7c] sm:$0xff]
      %v539 = vld [vmem:[%s533 + $0x84] sm:$0xff]
      %v540 = vld [vmem:[%s533 + $0xb4] sm:$0xff]
      %v541 = vld [vmem:[%s533 + $0xbc] sm:$0xff]
      %v542 = vld [vmem:[%s533 + $0xec] sm:$0xff]
      %v543 = vld [vmem:[%s533 + $0xf4] sm:$0xff]
      %v544 = vld [vmem:[%s533 + $0x124] sm:$0xff]
      %v545 = vld [vmem:[%s533 + $0x12c] sm:$0xff]
      %v546 = vld [vmem:[%s533 + $0x15c] sm:$0xff]
      %v547 = vld [vmem:[%s533 + $0x164] sm:$0xff]
      %v548 = vld [vmem:[%s533 + $0x194] sm:$0xff]
      %v549 = vld [vmem:[%s533 + $0x19c] sm:$0xff]
      %v550 = vld [vmem:[%s533 + $0x12] sm:$0xff]
      %v551 = vld [vmem:[%s533 + $0x1a] sm:$0xff]
      %v552 = vld [vmem:[%s533 + $0x4a] sm:$0xff]
      %v553 = vld [vmem:[%s533 + $0x52] sm:$0xff]
      %v554 = vld [vmem:[%s533 + $0x82] sm:$0xff]
      %v555 = vld [vmem:[%s533 + $0x8a] sm:$0xff]
      %v556 = vld [vmem:[%s533 + $0xba] sm:$0xff]
      %v557 = vld [vmem:[%s533 + $0xc2] sm:$0xff]
      %v558 = vld [vmem:[%s533 + $0xf2] sm:$0xff]
      %v559 = vld [vmem:[%s533 + $0xfa] sm:$0xff]
      %v560 = vld [vmem:[%s533 + $0x12a] sm:$0xff]
      %v561 = vld [vmem:[%s533 + $0x132] sm:$0xff]
      %v562 = vld [vmem:[%s533 + $0x162] sm:$0xff]
      %v563 = vld [vmem:[%s533 + $0x16a] sm:$0xff]
      %v564 = vld [vmem:[%s533 + $0x19a] sm:$0xff]
      %v565 = vld [vmem:[%s533 + $0x1a2] sm:$0xff]
      %v566 = vld [vmem:[%s533 + $0x18] sm:$0xff]
      %v567 = vld [vmem:[%s533 + $0x20] sm:$0xff]
      %v568 = vld [vmem:[%s533 + $0x50] sm:$0xff]
      %v569 = vld [vmem:[%s533 + $0x58] sm:$0xff]
      %v570 = vld [vmem:[%s533 + $0x88] sm:$0xff]
      %v571 = vld [vmem:[%s533 + $0x90] sm:$0xff]
      %v572 = vld [vmem:[%s533 + $0xc0] sm:$0xff]
      %v573 = vld [vmem:[%s533 + $0xc8] sm:$0xff]
      %v574 = vld [vmem:[%s533 + $0xf8] sm:$0xff]
      %v575 = vld [vmem:[%s533 + $0x100] sm:$0xff]
      %v576 = vld [vmem:[%s533 + $0x130] sm:$0xff]
      %v577 = vld [vmem:[%s533 + $0x138] sm:$0xff]
      %v578 = vld [vmem:[%s533 + $0x168] sm:$0xff]
      %v579 = vld [vmem:[%s533 + $0x170] sm:$0xff]
      %v580 = vld [vmem:[%s533 + $0x1a0] sm:$0xff]
      %v581 = vld [vmem:[%s533 + $0x1a8] sm:$0xff]
      %598 = vrot.lane.b32.xlu0 %v467, 4
      %v599 = vpop.permute.xlu0 %598
      %600 = vrot.lane.b32.xlu0 %v468, 4
      %v601 = vpop.permute.xlu0 %600
      %602 = vrot.lane.b32.xlu0 %v469, 4
      %v603 = vpop.permute.xlu0 %602
      %604 = vrot.lane.b32.xlu0 %v470, 4
      %v605 = vpop.permute.xlu0 %604
      %606 = vrot.lane.b32.xlu0 %v471, 4
      %v607 = vpop.permute.xlu0 %606
      %608 = vrot.lane.b32.xlu0 %v472, 4
      %v609 = vpop.permute.xlu0 %608
      %610 = vrot.lane.b32.xlu0 %v473, 4
      %v611 = vpop.permute.xlu0 %610
      %612 = vrot.lane.b32.xlu0 %v474, 4
      %v613 = vpop.permute.xlu0 %612
      %614 = vrot.lane.b32.xlu0 %v475, 4
      %v615 = vpop.permute.xlu0 %614
      %616 = vrot.lane.b32.xlu0 %v476, 4
      %v617 = vpop.permute.xlu0 %616
      %618 = vrot.lane.b32.xlu0 %v477, 4
      %v619 = vpop.permute.xlu0 %618
      %620 = vrot.lane.b32.xlu0 %v478, 4
      %v621 = vpop.permute.xlu0 %620
      %622 = vrot.lane.b32.xlu0 %v479, 4
      %v623 = vpop.permute.xlu0 %622
      %624 = vrot.lane.b32.xlu0 %v480, 4
      %v625 = vpop.permute.xlu0 %624
      %626 = vrot.lane.b32.xlu0 %v481, 4
      %v627 = vpop.permute.xlu0 %626
      %628 = vrot.lane.b32.xlu0 %v482, 4
      %v629 = vpop.permute.xlu0 %628
      %662 = vrot.lane.b32.xlu0 %v483, 8
      %v663 = vpop.permute.xlu0 %662
      %664 = vrot.lane.b32.xlu0 %v484, 8
      %v665 = vpop.permute.xlu0 %664
      %666 = vrot.lane.b32.xlu0 %v485, 8
      %v667 = vpop.permute.xlu0 %666
      %668 = vrot.lane.b32.xlu0 %v486, 8
      %v669 = vpop.permute.xlu0 %668
      %670 = vrot.lane.b32.xlu0 %v487, 8
      %v671 = vpop.permute.xlu0 %670
      %672 = vrot.lane.b32.xlu0 %v488, 8
      %v673 = vpop.permute.xlu0 %672
      %674 = vrot.lane.b32.xlu0 %v489, 8
      %v675 = vpop.permute.xlu0 %674
      %676 = vrot.lane.b32.xlu0 %v490, 8
      %v677 = vpop.permute.xlu0 %676
      %678 = vrot.lane.b32.xlu0 %v491, 8
      %v679 = vpop.permute.xlu0 %678
      %680 = vrot.lane.b32.xlu0 %v492, 8
      %v681 = vpop.permute.xlu0 %680
      %682 = vrot.lane.b32.xlu0 %v493, 8
      %v683 = vpop.permute.xlu0 %682
      %684 = vrot.lane.b32.xlu0 %v494, 8
      %v685 = vpop.permute.xlu0 %684
      %686 = vrot.lane.b32.xlu0 %v495, 8
      %v687 = vpop.permute.xlu0 %686
      %688 = vrot.lane.b32.xlu0 %v496, 8
      %v689 = vpop.permute.xlu0 %688
      %690 = vrot.lane.b32.xlu0 %v497, 8
      %v691 = vpop.permute.xlu0 %690
      %692 = vrot.lane.b32.xlu0 %v498, 8
      %v693 = vpop.permute.xlu0 %692
      %726 = vrot.lane.b32.xlu0 %v499, 12
      %v727 = vpop.permute.xlu0 %726
      %728 = vrot.lane.b32.xlu0 %v500, 12
      %v729 = vpop.permute.xlu0 %728
      %730 = vrot.lane.b32.xlu0 %v501, 12
      %v731 = vpop.permute.xlu0 %730
      %732 = vrot.lane.b32.xlu0 %v502, 12
      %v733 = vpop.permute.xlu0 %732
      %734 = vrot.lane.b32.xlu0 %v503, 12
      %v735 = vpop.permute.xlu0 %734
      %736 = vrot.lane.b32.xlu0 %v504, 12
      %v737 = vpop.permute.xlu0 %736
      %738 = vrot.lane.b32.xlu0 %v505, 12
      %v739 = vpop.permute.xlu0 %738
      %740 = vrot.lane.b32.xlu0 %v506, 12
      %v741 = vpop.permute.xlu0 %740
      %742 = vrot.lane.b32.xlu0 %v507, 12
      %v743 = vpop.permute.xlu0 %742
      %744 = vrot.lane.b32.xlu0 %v508, 12
      %v745 = vpop.permute.xlu0 %744
      %746 = vrot.lane.b32.xlu0 %v509, 12
      %v747 = vpop.permute.xlu0 %746
      %748 = vrot.lane.b32.xlu0 %v510, 12
      %v749 = vpop.permute.xlu0 %748
      %750 = vrot.lane.b32.xlu0 %v511, 12
      %v751 = vpop.permute.xlu0 %750
      %752 = vrot.lane.b32.xlu0 %v512, 12
      %v753 = vpop.permute.xlu0 %752
      %754 = vrot.lane.b32.xlu0 %v513, 12
      %v755 = vpop.permute.xlu0 %754
      %756 = vrot.lane.b32.xlu0 %v514, 12
      %v757 = vpop.permute.xlu0 %756
      %774 = vrot.lane.b32.xlu0 %v296, 16
      %v775 = vpop.permute.xlu0 %774
      %776 = vrot.lane.b32.xlu0 %v297, 16
      %v777 = vpop.permute.xlu0 %776
      %778 = vrot.lane.b32.xlu0 %v298, 16
      %v779 = vpop.permute.xlu0 %778
      %780 = vrot.lane.b32.xlu0 %v299, 16
      %v781 = vpop.permute.xlu0 %780
      %782 = vrot.lane.b32.xlu0 %v300, 16
      %v783 = vpop.permute.xlu0 %782
      %784 = vrot.lane.b32.xlu0 %v301, 16
      %v785 = vpop.permute.xlu0 %784
      %786 = vrot.lane.b32.xlu0 %v302, 16
      %v787 = vpop.permute.xlu0 %786
      %788 = vrot.lane.b32.xlu0 %v303, 16
      %v789 = vpop.permute.xlu0 %788
      %790 = vrot.lane.b32.xlu0 %v304, 16
      %v791 = vpop.permute.xlu0 %790
      %792 = vrot.lane.b32.xlu0 %v305, 16
      %v793 = vpop.permute.xlu0 %792
      %794 = vrot.lane.b32.xlu0 %v306, 16
      %v795 = vpop.permute.xlu0 %794
      %796 = vrot.lane.b32.xlu0 %v307, 16
      %v797 = vpop.permute.xlu0 %796
      %798 = vrot.lane.b32.xlu0 %v308, 16
      %v799 = vpop.permute.xlu0 %798
      %800 = vrot.lane.b32.xlu0 %v309, 16
      %v801 = vpop.permute.xlu0 %800
      %802 = vrot.lane.b32.xlu0 %v310, 16
      %v803 = vpop.permute.xlu0 %802
      %804 = vrot.lane.b32.xlu0 %v311, 16
      %v805 = vpop.permute.xlu0 %804
      %838 = vrot.lane.b32.xlu0 %v515, 20
      %v839 = vpop.permute.xlu0 %838
      %840 = vrot.lane.b32.xlu0 %v516, 20
      %v841 = vpop.permute.xlu0 %840
      %842 = vrot.lane.b32.xlu0 %v517, 20
      %v843 = vpop.permute.xlu0 %842
      %844 = vrot.lane.b32.xlu0 %v518, 20
      %v845 = vpop.permute.xlu0 %844
      %846 = vrot.lane.b32.xlu0 %v519, 20
      %v847 = vpop.permute.xlu0 %846
      %848 = vrot.lane.b32.xlu0 %v520, 20
      %v849 = vpop.permute.xlu0 %848
      %850 = vrot.lane.b32.xlu0 %v521, 20
      %v851 = vpop.permute.xlu0 %850
      %852 = vrot.lane.b32.xlu0 %v522, 20
      %v853 = vpop.permute.xlu0 %852
      %854 = vrot.lane.b32.xlu0 %v523, 20
      %v855 = vpop.permute.xlu0 %854
      %856 = vrot.lane.b32.xlu0 %v524, 20
      %v857 = vpop.permute.xlu0 %856
      %858 = vrot.lane.b32.xlu0 %v525, 20
      %v859 = vpop.permute.xlu0 %858
      %860 = vrot.lane.b32.xlu0 %v526, 20
      %v861 = vpop.permute.xlu0 %860
      %862 = vrot.lane.b32.xlu0 %v527, 20
      %v863 = vpop.permute.xlu0 %862
      %864 = vrot.lane.b32.xlu0 %v528, 20
      %v865 = vpop.permute.xlu0 %864
      %866 = vrot.lane.b32.xlu0 %v529, 20
      %v867 = vpop.permute.xlu0 %866
      %868 = vrot.lane.b32.xlu0 %v530, 20
      %v869 = vpop.permute.xlu0 %868
      %902 = vrot.lane.b32.xlu0 %v534, 24
      %v903 = vpop.permute.xlu0 %902
      %904 = vrot.lane.b32.xlu0 %v535, 24
      %v905 = vpop.permute.xlu0 %904
      %906 = vrot.lane.b32.xlu0 %v536, 24
      %v907 = vpop.permute.xlu0 %906
      %908 = vrot.lane.b32.xlu0 %v537, 24
      %v909 = vpop.permute.xlu0 %908
      %910 = vrot.lane.b32.xlu0 %v538, 24
      %v911 = vpop.permute.xlu0 %910
      %912 = vrot.lane.b32.xlu0 %v539, 24
      %v913 = vpop.permute.xlu0 %912
      %914 = vrot.lane.b32.xlu0 %v540, 24
      %v915 = vpop.permute.xlu0 %914
      %916 = vrot.lane.b32.xlu0 %v541, 24
      %v917 = vpop.permute.xlu0 %916
      %918 = vrot.lane.b32.xlu0 %v542, 24
      %v919 = vpop.permute.xlu0 %918
      %920 = vrot.lane.b32.xlu0 %v543, 24
      %v921 = vpop.permute.xlu0 %920
      %922 = vrot.lane.b32.xlu0 %v544, 24
      %v923 = vpop.permute.xlu0 %922
      %924 = vrot.lane.b32.xlu0 %v545, 24
      %v925 = vpop.permute.xlu0 %924
      %926 = vrot.lane.b32.xlu0 %v546, 24
      %v927 = vpop.permute.xlu0 %926
      %928 = vrot.lane.b32.xlu0 %v547, 24
      %v929 = vpop.permute.xlu0 %928
      %930 = vrot.lane.b32.xlu0 %v548, 24
      %v931 = vpop.permute.xlu0 %930
      %932 = vrot.lane.b32.xlu0 %v549, 24
      %v933 = vpop.permute.xlu0 %932
      %966 = vrot.lane.b32.xlu0 %v550, 28
      %v967 = vpop.permute.xlu0 %966
      %968 = vrot.lane.b32.xlu0 %v551, 28
      %v969 = vpop.permute.xlu0 %968
      %970 = vrot.lane.b32.xlu0 %v552, 28
      %v971 = vpop.permute.xlu0 %970
      %972 = vrot.lane.b32.xlu0 %v553, 28
      %v973 = vpop.permute.xlu0 %972
      %974 = vrot.lane.b32.xlu0 %v554, 28
      %v975 = vpop.permute.xlu0 %974
      %976 = vrot.lane.b32.xlu0 %v555, 28
      %v977 = vpop.permute.xlu0 %976
      %978 = vrot.lane.b32.xlu0 %v556, 28
      %v979 = vpop.permute.xlu0 %978
      %980 = vrot.lane.b32.xlu0 %v557, 28
      %v981 = vpop.permute.xlu0 %980
      %982 = vrot.lane.b32.xlu0 %v558, 28
      %v983 = vpop.permute.xlu0 %982
      %984 = vrot.lane.b32.xlu0 %v559, 28
      %v985 = vpop.permute.xlu0 %984
      %986 = vrot.lane.b32.xlu0 %v560, 28
      %v987 = vpop.permute.xlu0 %986
      %988 = vrot.lane.b32.xlu0 %v561, 28
      %v989 = vpop.permute.xlu0 %988
      %990 = vrot.lane.b32.xlu0 %v562, 28
      %v991 = vpop.permute.xlu0 %990
      %992 = vrot.lane.b32.xlu0 %v563, 28
      %v993 = vpop.permute.xlu0 %992
      %994 = vrot.lane.b32.xlu0 %v564, 28
      %v995 = vpop.permute.xlu0 %994
      %996 = vrot.lane.b32.xlu0 %v565, 28
      %v997 = vpop.permute.xlu0 %996
      %1030 = vrot.lane.b32.xlu0 %v566, 32
      %v1031 = vpop.permute.xlu0 %1030
      %1032 = vrot.lane.b32.xlu0 %v567, 32
      %v1033 = vpop.permute.xlu0 %1032
      %1034 = vrot.lane.b32.xlu0 %v568, 32
      %v1035 = vpop.permute.xlu0 %1034
      %1036 = vrot.lane.b32.xlu0 %v569, 32
      %v1037 = vpop.permute.xlu0 %1036
      %1038 = vrot.lane.b32.xlu0 %v570, 32
      %v1039 = vpop.permute.xlu0 %1038
      %1040 = vrot.lane.b32.xlu0 %v571, 32
      %v1041 = vpop.permute.xlu0 %1040
      %1042 = vrot.lane.b32.xlu0 %v572, 32
      %v1043 = vpop.permute.xlu0 %1042
      %1044 = vrot.lane.b32.xlu0 %v573, 32
      %v1045 = vpop.permute.xlu0 %1044
      %1046 = vrot.lane.b32.xlu0 %v574, 32
      %v1047 = vpop.permute.xlu0 %1046
      %1048 = vrot.lane.b32.xlu0 %v575, 32
      %v1049 = vpop.permute.xlu0 %1048
      %1050 = vrot.lane.b32.xlu0 %v576, 32
      %v1051 = vpop.permute.xlu0 %1050
      %1052 = vrot.lane.b32.xlu0 %v577, 32
      %v1053 = vpop.permute.xlu0 %1052
      %1054 = vrot.lane.b32.xlu0 %v578, 32
      %v1055 = vpop.permute.xlu0 %1054
      %1056 = vrot.lane.b32.xlu0 %v579, 32
      %v1057 = vpop.permute.xlu0 %1056
      %1058 = vrot.lane.b32.xlu0 %v580, 32
      %v1059 = vpop.permute.xlu0 %1058
      %1060 = vrot.lane.b32.xlu0 %v581, 32
      %v1061 = vpop.permute.xlu0 %1060
      %v1078 = vsel %vm314, %v451, %v599
      %v1079 = vsel %vm314, %v452, %v601
      %v1080 = vsel %vm314, %v453, %v603
      %v1081 = vsel %vm314, %v454, %v605
      %v1082 = vsel %vm314, %v455, %v607
      %v1083 = vsel %vm314, %v456, %v609
      %v1084 = vsel %vm314, %v457, %v611
      %v1085 = vsel %vm314, %v458, %v613
      %v1086 = vsel %vm314, %v459, %v615
      %v1087 = vsel %vm314, %v460, %v617
      %v1088 = vsel %vm314, %v461, %v619
      %v1089 = vsel %vm314, %v462, %v621
      %v1090 = vsel %vm314, %v463, %v623
      %v1091 = vsel %vm314, %v464, %v625
      %v1092 = vsel %vm314, %v465, %v627
      %v1093 = vsel %vm314, %v466, %v629
      %vm1094 = vcmask 64512
      %v1095 = vsel %vm1094, %v1078, %v663
      %v1096 = vsel %vm1094, %v1079, %v665
      %v1097 = vsel %vm1094, %v1080, %v667
      %v1098 = vsel %vm1094, %v1081, %v669
      %v1099 = vsel %vm1094, %v1082, %v671
      %v1100 = vsel %vm1094, %v1083, %v673
      %v1101 = vsel %vm1094, %v1084, %v675
      %v1102 = vsel %vm1094, %v1085, %v677
      %v1103 = vsel %vm1094, %v1086, %v679
      %v1104 = vsel %vm1094, %v1087, %v681
      %v1105 = vsel %vm1094, %v1088, %v683
      %v1106 = vsel %vm1094, %v1089, %v685
      %v1107 = vsel %vm1094, %v1090, %v687
      %v1108 = vsel %vm1094, %v1091, %v689
      %v1109 = vsel %vm1094, %v1092, %v691
      %v1110 = vsel %vm1094, %v1093, %v693
      %vm1111 = vcmask 97280
      %v1112 = vsel %vm1111, %v1095, %v727
      %v1113 = vsel %vm1111, %v1096, %v729
      %v1114 = vsel %vm1111, %v1097, %v731
      %v1115 = vsel %vm1111, %v1098, %v733
      %v1116 = vsel %vm1111, %v1099, %v735
      %v1117 = vsel %vm1111, %v1100, %v737
      %v1118 = vsel %vm1111, %v1101, %v739
      %v1119 = vsel %vm1111, %v1102, %v741
      %v1120 = vsel %vm1111, %v1103, %v743
      %v1121 = vsel %vm1111, %v1104, %v745
      %v1122 = vsel %vm1111, %v1105, %v747
      %v1123 = vsel %vm1111, %v1106, %v749
      %v1124 = vsel %vm1111, %v1107, %v751
      %v1125 = vsel %vm1111, %v1108, %v753
      %v1126 = vsel %vm1111, %v1109, %v755
      %v1127 = vsel %vm1111, %v1110, %v757
      %vm1128 = vcmask 130048
      %v1129 = vsel %vm1128, %v1112, %v775
      %v1130 = vsel %vm1128, %v1113, %v777
      %v1131 = vsel %vm1128, %v1114, %v779
      %v1132 = vsel %vm1128, %v1115, %v781
      %v1133 = vsel %vm1128, %v1116, %v783
      %v1134 = vsel %vm1128, %v1117, %v785
      %v1135 = vsel %vm1128, %v1118, %v787
      %v1136 = vsel %vm1128, %v1119, %v789
      %v1137 = vsel %vm1128, %v1120, %v791
      %v1138 = vsel %vm1128, %v1121, %v793
      %v1139 = vsel %vm1128, %v1122, %v795
      %v1140 = vsel %vm1128, %v1123, %v797
      %v1141 = vsel %vm1128, %v1124, %v799
      %v1142 = vsel %vm1128, %v1125, %v801
      %v1143 = vsel %vm1128, %v1126, %v803
      %v1144 = vsel %vm1128, %v1127, %v805
      %vm1145 = vcmask 162816
      %v1146 = vsel %vm1145, %v1129, %v839
      %v1147 = vsel %vm1145, %v1130, %v841
      %v1148 = vsel %vm1145, %v1131, %v843
      %v1149 = vsel %vm1145, %v1132, %v845
      %v1150 = vsel %vm1145, %v1133, %v847
      %v1151 = vsel %vm1145, %v1134, %v849
      %v1152 = vsel %vm1145, %v1135, %v851
      %v1153 = vsel %vm1145, %v1136, %v853
      %v1154 = vsel %vm1145, %v1137, %v855
      %v1155 = vsel %vm1145, %v1138, %v857
      %v1156 = vsel %vm1145, %v1139, %v859
      %v1157 = vsel %vm1145, %v1140, %v861
      %v1158 = vsel %vm1145, %v1141, %v863
      %v1159 = vsel %vm1145, %v1142, %v865
      %v1160 = vsel %vm1145, %v1143, %v867
      %v1161 = vsel %vm1145, %v1144, %v869
      %vm1162 = vcmask 195584
      %v1163 = vsel %vm1162, %v1146, %v903
      %v1164 = vsel %vm1162, %v1147, %v905
      %v1165 = vsel %vm1162, %v1148, %v907
      %v1166 = vsel %vm1162, %v1149, %v909
      %v1167 = vsel %vm1162, %v1150, %v911
      %v1168 = vsel %vm1162, %v1151, %v913
      %v1169 = vsel %vm1162, %v1152, %v915
      %v1170 = vsel %vm1162, %v1153, %v917
      %v1171 = vsel %vm1162, %v1154, %v919
      %v1172 = vsel %vm1162, %v1155, %v921
      %v1173 = vsel %vm1162, %v1156, %v923
      %v1174 = vsel %vm1162, %v1157, %v925
      %v1175 = vsel %vm1162, %v1158, %v927
      %v1176 = vsel %vm1162, %v1159, %v929
      %v1177 = vsel %vm1162, %v1160, %v931
      %v1178 = vsel %vm1162, %v1161, %v933
      %vm1179 = vcmask 228352
      %v1180 = vsel %vm1179, %v1163, %v967
      %v1181 = vsel %vm1179, %v1164, %v969
      %v1182 = vsel %vm1179, %v1165, %v971
      %v1183 = vsel %vm1179, %v1166, %v973
      %v1184 = vsel %vm1179, %v1167, %v975
      %v1185 = vsel %vm1179, %v1168, %v977
      %v1186 = vsel %vm1179, %v1169, %v979
      %v1187 = vsel %vm1179, %v1170, %v981
      %v1188 = vsel %vm1179, %v1171, %v983
      %v1189 = vsel %vm1179, %v1172, %v985
      %v1190 = vsel %vm1179, %v1173, %v987
      %v1191 = vsel %vm1179, %v1174, %v989
      %v1192 = vsel %vm1179, %v1175, %v991
      %v1193 = vsel %vm1179, %v1176, %v993
      %v1194 = vsel %vm1179, %v1177, %v995
      %v1195 = vsel %vm1179, %v1178, %v997
      %vm1196 = vcmask 261120
      %v1197 = vsel %vm1196, %v1180, %v1031
      %v1198 = vsel %vm1196, %v1181, %v1033
      %v1199 = vsel %vm1196, %v1182, %v1035
      %v1200 = vsel %vm1196, %v1183, %v1037
      %v1201 = vsel %vm1196, %v1184, %v1039
      %v1202 = vsel %vm1196, %v1185, %v1041
      %v1203 = vsel %vm1196, %v1186, %v1043
      %v1204 = vsel %vm1196, %v1187, %v1045
      %v1205 = vsel %vm1196, %v1188, %v1047
      %v1206 = vsel %vm1196, %v1189, %v1049
      %v1207 = vsel %vm1196, %v1190, %v1051
      %v1208 = vsel %vm1196, %v1191, %v1053
      %v1209 = vsel %vm1196, %v1192, %v1055
      %v1210 = vsel %vm1196, %v1193, %v1057
      %v1211 = vsel %vm1196, %v1194, %v1059
      %v1212 = vsel %vm1196, %v1195, %v1061
      %v1213 = vld [vmem:[%s2] sm:$0xff]
      %v1214 = vld [vmem:[%s2 + $0x8] sm:$0xff]
      %v1215 = vld [vmem:[%s2 + $0x10] sm:$0xff]
      %v1216 = vld [vmem:[%s2 + $0x18] sm:$0xff]
      %v1217 = vld [vmem:[%s2 + $0x20] sm:$0xf]
      %v1218 = vperm.slane %v293, 1
      %vm1219 = vcmask 293888
      %v1221 = vsel %vm1219, %v1197, 0
      %v1224 = vsel %vm1219, %v1198, 0
      %v1227 = vsel %vm1219, %v1199, 0
      %v1230 = vsel %vm1219, %v1200, 0
      %v1233 = vsel %vm1219, %v1201, 0
      %v1236 = vsel %vm1219, %v1202, 0
      %v1239 = vsel %vm1219, %v1203, 0
      %v1242 = vsel %vm1219, %v1204, 0
      %v1245 = vsel %vm1219, %v1205, 0
      %v1248 = vsel %vm1219, %v1206, 0
      %v1251 = vsel %vm1219, %v1207, 0
      %v1254 = vsel %vm1219, %v1208, 0
      %v1257 = vsel %vm1219, %v1209, 0
      %v1260 = vsel %vm1219, %v1210, 0
      %v1263 = vsel %vm1219, %v1211, 0
      %v1266 = vsel %vm1219, %v1212, 0
      %v1269 = vsel %vm363, %v1217, 0
      %1271 = vmatpush.msra.mxu0 0.0
      %1272 = vmatpush.msra.mxu0 0.0
      %1273 = vmatpush.msra.mxu0 0.0
      %1274 = vmatpush.msra.mxu0 0.0
      %1275 = vmatpush.msra.mxu0 0.0
      %1276 = vmatpush.msra.mxu0 0.0
      %1277 = vmatpush.msra.mxu0 0.0
      %1278 = vmatpush.msra.mxu0 0.0
      %1279 = vmatpush.msra.mxu0 0.0
      %1280 = vmatpush.msra.mxu0 0.0
      %1281 = vmatpush.msra.mxu0 0.0
      %1282 = vmatpush.msra.mxu0 %v1269
      %1283 = vmatpush.msra.mxu0 %v1216
      %1284 = vmatpush.msra.mxu0 %v1215
      %1285 = vmatpush.msra.mxu0 %v1214
      %1286 = vmatpush.msra.mxu0 %v1213
      %1287 = vmatmul.f32.gmra.mxu0 %v1221
      %v1288 = vpop.f32.mrf.mxu0
      %v1289 = vadd.f32 %v1218, %v1288
      %1290 = vmatmul.f32.gmra.mxu0 %v1224
      %v1291 = vpop.f32.mrf.mxu0
      %v1292 = vadd.f32 %v1218, %v1291
      %1293 = vmatmul.f32.gmra.mxu0 %v1227
      %v1294 = vpop.f32.mrf.mxu0
      %v1295 = vadd.f32 %v1218, %v1294
      %1296 = vmatmul.f32.gmra.mxu0 %v1230
      %v1297 = vpop.f32.mrf.mxu0
      %v1298 = vadd.f32 %v1218, %v1297
      %1299 = vmatmul.f32.gmra.mxu0 %v1233
      %v1300 = vpop.f32.mrf.mxu0
      %v1301 = vadd.f32 %v1218, %v1300
      %1302 = vmatmul.f32.gmra.mxu0 %v1236
      %v1303 = vpop.f32.mrf.mxu0
      %v1304 = vadd.f32 %v1218, %v1303
      %1305 = vmatmul.f32.gmra.mxu0 %v1239
      %v1306 = vpop.f32.mrf.mxu0
      %v1307 = vadd.f32 %v1218, %v1306
      %1308 = vmatmul.f32.gmra.mxu0 %v1242
      %v1309 = vpop.f32.mrf.mxu0
      %v1310 = vadd.f32 %v1218, %v1309
      %1311 = vmatmul.f32.gmra.mxu0 %v1245
      %v1312 = vpop.f32.mrf.mxu0
      %v1313 = vadd.f32 %v1218, %v1312
      %1314 = vmatmul.f32.gmra.mxu0 %v1248
      %v1315 = vpop.f32.mrf.mxu0
      %v1316 = vadd.f32 %v1218, %v1315
      %1317 = vmatmul.f32.gmra.mxu0 %v1251
      %v1318 = vpop.f32.mrf.mxu0
      %v1319 = vadd.f32 %v1218, %v1318
      %1320 = vmatmul.f32.gmra.mxu0 %v1254
      %v1321 = vpop.f32.mrf.mxu0
      %v1322 = vadd.f32 %v1218, %v1321
      %1323 = vmatmul.f32.gmra.mxu0 %v1257
      %v1324 = vpop.f32.mrf.mxu0
      %v1325 = vadd.f32 %v1218, %v1324
      %1326 = vmatmul.f32.gmra.mxu0 %v1260
      %v1327 = vpop.f32.mrf.mxu0
      %v1328 = vadd.f32 %v1218, %v1327
      %1329 = vmatmul.f32.gmra.mxu0 %v1263
      %v1330 = vpop.f32.mrf.mxu0
      %v1331 = vadd.f32 %v1218, %v1330
      %1332 = vmatmul.f32.gmra.mxu0 %v1266
      %v1333 = vpop.f32.mrf.mxu0
      %v1334 = vadd.f32 %v1218, %v1333
      %1335 = vdwg.mxu0
      %v1336 = vmax.f32 %v1289, 0.0
      %v1337 = vmax.f32 %v1292, 0.0
      %v1338 = vmax.f32 %v1295, 0.0
      %v1339 = vmax.f32 %v1298, 0.0
      %v1340 = vmax.f32 %v1301, 0.0
      %v1341 = vmax.f32 %v1304, 0.0
      %v1342 = vmax.f32 %v1307, 0.0
      %v1343 = vmax.f32 %v1310, 0.0
      %v1344 = vmax.f32 %v1313, 0.0
      %v1345 = vmax.f32 %v1316, 0.0
      %v1346 = vmax.f32 %v1319, 0.0
      %v1347 = vmax.f32 %v1322, 0.0
      %v1348 = vmax.f32 %v1325, 0.0
      %v1349 = vmax.f32 %v1328, 0.0
      %v1350 = vmax.f32 %v1331, 0.0
      %v1351 = vmax.f32 %v1334, 0.0
      %s1352 = sadd.s32 %s291, 6
      %s1353 = smul.u32 %s1352, 56
      %s1354 = scalar_lea.vmem %s276, %s1353
      %v1355 = vld [vmem:[%s1354 + $0x6] sm:$0xff]
      %v1356 = vld [vmem:[%s1354 + $0xe] sm:$0xff]
      %v1357 = vld [vmem:[%s1354 + $0x3e] sm:$0xff]
      %v1358 = vld [vmem:[%s1354 + $0x46] sm:$0xff]
      %v1359 = vld [vmem:[%s1354 + $0x76] sm:$0xff]
      %v1360 = vld [vmem:[%s1354 + $0x7e] sm:$0xff]
      %v1361 = vld [vmem:[%s1354 + $0xae] sm:$0xff]
      %v1362 = vld [vmem:[%s1354 + $0xb6] sm:$0xff]
      %v1363 = vld [vmem:[%s1354 + $0xe6] sm:$0xff]
      %v1364 = vld [vmem:[%s1354 + $0xee] sm:$0xff]
      %v1365 = vld [vmem:[%s1354 + $0x11e] sm:$0xff]
      %v1366 = vld [vmem:[%s1354 + $0x126] sm:$0xff]
      %v1367 = vld [vmem:[%s1354 + $0x156] sm:$0xff]
      %v1368 = vld [vmem:[%s1354 + $0x15e] sm:$0xff]
      %v1369 = vld [vmem:[%s1354 + $0x18e] sm:$0xff]
      %v1370 = vld [vmem:[%s1354 + $0x196] sm:$0xff]
      %v1371 = vld [vmem:[%s1354 + $0x12] sm:$0xff]
      %v1372 = vld [vmem:[%s1354 + $0x1a] sm:$0xff]
      %v1373 = vld [vmem:[%s1354 + $0x4a] sm:$0xff]
      %v1374 = vld [vmem:[%s1354 + $0x52] sm:$0xff]
      %v1375 = vld [vmem:[%s1354 + $0x82] sm:$0xff]
      %v1376 = vld [vmem:[%s1354 + $0x8a] sm:$0xff]
      %v1377 = vld [vmem:[%s1354 + $0xba] sm:$0xff]
      %v1378 = vld [vmem:[%s1354 + $0xc2] sm:$0xff]
      %v1379 = vld [vmem:[%s1354 + $0xf2] sm:$0xff]
      %v1380 = vld [vmem:[%s1354 + $0xfa] sm:$0xff]
      %v1381 = vld [vmem:[%s1354 + $0x12a] sm:$0xff]
      %v1382 = vld [vmem:[%s1354 + $0x132] sm:$0xff]
      %v1383 = vld [vmem:[%s1354 + $0x162] sm:$0xff]
      %v1384 = vld [vmem:[%s1354 + $0x16a] sm:$0xff]
      %v1385 = vld [vmem:[%s1354 + $0x19a] sm:$0xff]
      %v1386 = vld [vmem:[%s1354 + $0x1a2] sm:$0xff]
      %v1387 = vld [vmem:[%s1354 + $0x1e] sm:$0xff]
      %v1388 = vld [vmem:[%s1354 + $0x26] sm:$0xff]
      %v1389 = vld [vmem:[%s1354 + $0x56] sm:$0xff]
      %v1390 = vld [vmem:[%s1354 + $0x5e] sm:$0xff]
      %v1391 = vld [vmem:[%s1354 + $0x8e] sm:$0xff]
      %v1392 = vld [vmem:[%s1354 + $0x96] sm:$0xff]
      %v1393 = vld [vmem:[%s1354 + $0xc6] sm:$0xff]
      %v1394 = vld [vmem:[%s1354 + $0xce] sm:$0xff]
      %v1395 = vld [vmem:[%s1354 + $0xfe] sm:$0xff]
      %v1396 = vld [vmem:[%s1354 + $0x106] sm:$0xff]
      %v1397 = vld [vmem:[%s1354 + $0x136] sm:$0xff]
      %v1398 = vld [vmem:[%s1354 + $0x13e] sm:$0xff]
      %v1399 = vld [vmem:[%s1354 + $0x16e] sm:$0xff]
      %v1400 = vld [vmem:[%s1354 + $0x176] sm:$0xff]
      %v1401 = vld [vmem:[%s1354 + $0x1a6] sm:$0xff]
      %v1402 = vld [vmem:[%s1354 + $0x1ae] sm:$0xff]
      %v1403 = vld [vmem:[%s295 + $0x6] sm:$0xff]
      %v1404 = vld [vmem:[%s295 + $0xe] sm:$0xff]
      %v1405 = vld [vmem:[%s295 + $0x3e] sm:$0xff]
      %v1406 = vld [vmem:[%s295 + $0x46] sm:$0xff]
      %v1407 = vld [vmem:[%s295 + $0x76] sm:$0xff]
      %v1408 = vld [vmem:[%s295 + $0x7e] sm:$0xff]
      %v1409 = vld [vmem:[%s295 + $0xae] sm:$0xff]
      %v1410 = vld [vmem:[%s295 + $0xb6] sm:$0xff]
      %v1411 = vld [vmem:[%s295 + $0xe6] sm:$0xff]
      %v1412 = vld [vmem:[%s295 + $0xee] sm:$0xff]
      %v1413 = vld [vmem:[%s295 + $0x11e] sm:$0xff]
      %v1414 = vld [vmem:[%s295 + $0x126] sm:$0xff]
      %v1415 = vld [vmem:[%s295 + $0x156] sm:$0xff]
      %v1416 = vld [vmem:[%s295 + $0x15e] sm:$0xff]
      %v1417 = vld [vmem:[%s295 + $0x18e] sm:$0xff]
      %v1418 = vld [vmem:[%s295 + $0x196] sm:$0xff]
      %v1419 = vld [vmem:[%s295 + $0x1e] sm:$0xff]
      %v1420 = vld [vmem:[%s295 + $0x26] sm:$0xff]
      %v1421 = vld [vmem:[%s295 + $0x56] sm:$0xff]
      %v1422 = vld [vmem:[%s295 + $0x5e] sm:$0xff]
      %v1423 = vld [vmem:[%s295 + $0x8e] sm:$0xff]
      %v1424 = vld [vmem:[%s295 + $0x96] sm:$0xff]
      %v1425 = vld [vmem:[%s295 + $0xc6] sm:$0xff]
      %v1426 = vld [vmem:[%s295 + $0xce] sm:$0xff]
      %v1427 = vld [vmem:[%s295 + $0xfe] sm:$0xff]
      %v1428 = vld [vmem:[%s295 + $0x106] sm:$0xff]
      %v1429 = vld [vmem:[%s295 + $0x136] sm:$0xff]
      %v1430 = vld [vmem:[%s295 + $0x13e] sm:$0xff]
      %v1431 = vld [vmem:[%s295 + $0x16e] sm:$0xff]
      %v1432 = vld [vmem:[%s295 + $0x176] sm:$0xff]
      %v1433 = vld [vmem:[%s295 + $0x1a6] sm:$0xff]
      %v1434 = vld [vmem:[%s295 + $0x1ae] sm:$0xff]
      %s1435 = sadd.s32 %s291, 30
      %s1436 = smul.u32 %s1435, 56
      %s1437 = scalar_lea.vmem %s276, %s1436
      %v1438 = vld [vmem:[%s1437 + $0x6] sm:$0xff]
      %v1439 = vld [vmem:[%s1437 + $0xe] sm:$0xff]
      %v1440 = vld [vmem:[%s1437 + $0x3e] sm:$0xff]
      %v1441 = vld [vmem:[%s1437 + $0x46] sm:$0xff]
      %v1442 = vld [vmem:[%s1437 + $0x76] sm:$0xff]
      %v1443 = vld [vmem:[%s1437 + $0x7e] sm:$0xff]
      %v1444 = vld [vmem:[%s1437 + $0xae] sm:$0xff]
      %v1445 = vld [vmem:[%s1437 + $0xb6] sm:$0xff]
      %v1446 = vld [vmem:[%s1437 + $0xe6] sm:$0xff]
      %v1447 = vld [vmem:[%s1437 + $0xee] sm:$0xff]
      %v1448 = vld [vmem:[%s1437 + $0x11e] sm:$0xff]
      %v1449 = vld [vmem:[%s1437 + $0x126] sm:$0xff]
      %v1450 = vld [vmem:[%s1437 + $0x156] sm:$0xff]
      %v1451 = vld [vmem:[%s1437 + $0x15e] sm:$0xff]
      %v1452 = vld [vmem:[%s1437 + $0x18e] sm:$0xff]
      %v1453 = vld [vmem:[%s1437 + $0x196] sm:$0xff]
      %v1454 = vld [vmem:[%s1437 + $0x12] sm:$0xff]
      %v1455 = vld [vmem:[%s1437 + $0x1a] sm:$0xff]
      %v1456 = vld [vmem:[%s1437 + $0x4a] sm:$0xff]
      %v1457 = vld [vmem:[%s1437 + $0x52] sm:$0xff]
      %v1458 = vld [vmem:[%s1437 + $0x82] sm:$0xff]
      %v1459 = vld [vmem:[%s1437 + $0x8a] sm:$0xff]
      %v1460 = vld [vmem:[%s1437 + $0xba] sm:$0xff]
      %v1461 = vld [vmem:[%s1437 + $0xc2] sm:$0xff]
      %v1462 = vld [vmem:[%s1437 + $0xf2] sm:$0xff]
      %v1463 = vld [vmem:[%s1437 + $0xfa] sm:$0xff]
      %v1464 = vld [vmem:[%s1437 + $0x12a] sm:$0xff]
      %v1465 = vld [vmem:[%s1437 + $0x132] sm:$0xff]
      %v1466 = vld [vmem:[%s1437 + $0x162] sm:$0xff]
      %v1467 = vld [vmem:[%s1437 + $0x16a] sm:$0xff]
      %v1468 = vld [vmem:[%s1437 + $0x19a] sm:$0xff]
      %v1469 = vld [vmem:[%s1437 + $0x1a2] sm:$0xff]
      %v1470 = vld [vmem:[%s1437 + $0x1e] sm:$0xff]
      %v1471 = vld [vmem:[%s1437 + $0x26] sm:$0xff]
      %v1472 = vld [vmem:[%s1437 + $0x56] sm:$0xff]
      %v1473 = vld [vmem:[%s1437 + $0x5e] sm:$0xff]
      %v1474 = vld [vmem:[%s1437 + $0x8e] sm:$0xff]
      %v1475 = vld [vmem:[%s1437 + $0x96] sm:$0xff]
      %v1476 = vld [vmem:[%s1437 + $0xc6] sm:$0xff]
      %v1477 = vld [vmem:[%s1437 + $0xce] sm:$0xff]
      %v1478 = vld [vmem:[%s1437 + $0xfe] sm:$0xff]
      %v1479 = vld [vmem:[%s1437 + $0x106] sm:$0xff]
      %v1480 = vld [vmem:[%s1437 + $0x136] sm:$0xff]
      %v1481 = vld [vmem:[%s1437 + $0x13e] sm:$0xff]
      %v1482 = vld [vmem:[%s1437 + $0x16e] sm:$0xff]
      %v1483 = vld [vmem:[%s1437 + $0x176] sm:$0xff]
      %v1484 = vld [vmem:[%s1437 + $0x1a6] sm:$0xff]
      %v1485 = vld [vmem:[%s1437 + $0x1ae] sm:$0xff]
      %1502 = vrot.lane.b32.xlu0 %v1371, 4
      %v1503 = vpop.permute.xlu0 %1502
      %1504 = vrot.lane.b32.xlu0 %v1372, 4
      %v1505 = vpop.permute.xlu0 %1504
      %1506 = vrot.lane.b32.xlu0 %v1373, 4
      %v1507 = vpop.permute.xlu0 %1506
      %1508 = vrot.lane.b32.xlu0 %v1374, 4
      %v1509 = vpop.permute.xlu0 %1508
      %1510 = vrot.lane.b32.xlu0 %v1375, 4
      %v1511 = vpop.permute.xlu0 %1510
      %1512 = vrot.lane.b32.xlu0 %v1376, 4
      %v1513 = vpop.permute.xlu0 %1512
      %1514 = vrot.lane.b32.xlu0 %v1377, 4
      %v1515 = vpop.permute.xlu0 %1514
      %1516 = vrot.lane.b32.xlu0 %v1378, 4
      %v1517 = vpop.permute.xlu0 %1516
      %1518 = vrot.lane.b32.xlu0 %v1379, 4
      %v1519 = vpop.permute.xlu0 %1518
      %1520 = vrot.lane.b32.xlu0 %v1380, 4
      %v1521 = vpop.permute.xlu0 %1520
      %1522 = vrot.lane.b32.xlu0 %v1381, 4
      %v1523 = vpop.permute.xlu0 %1522
      %1524 = vrot.lane.b32.xlu0 %v1382, 4
      %v1525 = vpop.permute.xlu0 %1524
      %1526 = vrot.lane.b32.xlu0 %v1383, 4
      %v1527 = vpop.permute.xlu0 %1526
      %1528 = vrot.lane.b32.xlu0 %v1384, 4
      %v1529 = vpop.permute.xlu0 %1528
      %1530 = vrot.lane.b32.xlu0 %v1385, 4
      %v1531 = vpop.permute.xlu0 %1530
      %1532 = vrot.lane.b32.xlu0 %v1386, 4
      %v1533 = vpop.permute.xlu0 %1532
      %1566 = vrot.lane.b32.xlu0 %v1387, 8
      %v1567 = vpop.permute.xlu0 %1566
      %1568 = vrot.lane.b32.xlu0 %v1388, 8
      %v1569 = vpop.permute.xlu0 %1568
      %1570 = vrot.lane.b32.xlu0 %v1389, 8
      %v1571 = vpop.permute.xlu0 %1570
      %1572 = vrot.lane.b32.xlu0 %v1390, 8
      %v1573 = vpop.permute.xlu0 %1572
      %1574 = vrot.lane.b32.xlu0 %v1391, 8
      %v1575 = vpop.permute.xlu0 %1574
      %1576 = vrot.lane.b32.xlu0 %v1392, 8
      %v1577 = vpop.permute.xlu0 %1576
      %1578 = vrot.lane.b32.xlu0 %v1393, 8
      %v1579 = vpop.permute.xlu0 %1578
      %1580 = vrot.lane.b32.xlu0 %v1394, 8
      %v1581 = vpop.permute.xlu0 %1580
      %1582 = vrot.lane.b32.xlu0 %v1395, 8
      %v1583 = vpop.permute.xlu0 %1582
      %1584 = vrot.lane.b32.xlu0 %v1396, 8
      %v1585 = vpop.permute.xlu0 %1584
      %1586 = vrot.lane.b32.xlu0 %v1397, 8
      %v1587 = vpop.permute.xlu0 %1586
      %1588 = vrot.lane.b32.xlu0 %v1398, 8
      %v1589 = vpop.permute.xlu0 %1588
      %1590 = vrot.lane.b32.xlu0 %v1399, 8
      %v1591 = vpop.permute.xlu0 %1590
      %1592 = vrot.lane.b32.xlu0 %v1400, 8
      %v1593 = vpop.permute.xlu0 %1592
      %1594 = vrot.lane.b32.xlu0 %v1401, 8
      %v1595 = vpop.permute.xlu0 %1594
      %1596 = vrot.lane.b32.xlu0 %v1402, 8
      %v1597 = vpop.permute.xlu0 %1596
      %1630 = vrot.lane.b32.xlu0 %v1403, 12
      %v1631 = vpop.permute.xlu0 %1630
      %1632 = vrot.lane.b32.xlu0 %v1404, 12
      %v1633 = vpop.permute.xlu0 %1632
      %1634 = vrot.lane.b32.xlu0 %v1405, 12
      %v1635 = vpop.permute.xlu0 %1634
      %1636 = vrot.lane.b32.xlu0 %v1406, 12
      %v1637 = vpop.permute.xlu0 %1636
      %1638 = vrot.lane.b32.xlu0 %v1407, 12
      %v1639 = vpop.permute.xlu0 %1638
      %1640 = vrot.lane.b32.xlu0 %v1408, 12
      %v1641 = vpop.permute.xlu0 %1640
      %1642 = vrot.lane.b32.xlu0 %v1409, 12
      %v1643 = vpop.permute.xlu0 %1642
      %1644 = vrot.lane.b32.xlu0 %v1410, 12
      %v1645 = vpop.permute.xlu0 %1644
      %1646 = vrot.lane.b32.xlu0 %v1411, 12
      %v1647 = vpop.permute.xlu0 %1646
      %1648 = vrot.lane.b32.xlu0 %v1412, 12
      %v1649 = vpop.permute.xlu0 %1648
      %1650 = vrot.lane.b32.xlu0 %v1413, 12
      %v1651 = vpop.permute.xlu0 %1650
      %1652 = vrot.lane.b32.xlu0 %v1414, 12
      %v1653 = vpop.permute.xlu0 %1652
      %1654 = vrot.lane.b32.xlu0 %v1415, 12
      %v1655 = vpop.permute.xlu0 %1654
      %1656 = vrot.lane.b32.xlu0 %v1416, 12
      %v1657 = vpop.permute.xlu0 %1656
      %1658 = vrot.lane.b32.xlu0 %v1417, 12
      %v1659 = vpop.permute.xlu0 %1658
      %1660 = vrot.lane.b32.xlu0 %v1418, 12
      %v1661 = vpop.permute.xlu0 %1660
      %1694 = vrot.lane.b32.xlu0 %v1419, 20
      %v1695 = vpop.permute.xlu0 %1694
      %1696 = vrot.lane.b32.xlu0 %v1420, 20
      %v1697 = vpop.permute.xlu0 %1696
      %1698 = vrot.lane.b32.xlu0 %v1421, 20
      %v1699 = vpop.permute.xlu0 %1698
      %1700 = vrot.lane.b32.xlu0 %v1422, 20
      %v1701 = vpop.permute.xlu0 %1700
      %1702 = vrot.lane.b32.xlu0 %v1423, 20
      %v1703 = vpop.permute.xlu0 %1702
      %1704 = vrot.lane.b32.xlu0 %v1424, 20
      %v1705 = vpop.permute.xlu0 %1704
      %1706 = vrot.lane.b32.xlu0 %v1425, 20
      %v1707 = vpop.permute.xlu0 %1706
      %1708 = vrot.lane.b32.xlu0 %v1426, 20
      %v1709 = vpop.permute.xlu0 %1708
      %1710 = vrot.lane.b32.xlu0 %v1427, 20
      %v1711 = vpop.permute.xlu0 %1710
      %1712 = vrot.lane.b32.xlu0 %v1428, 20
      %v1713 = vpop.permute.xlu0 %1712
      %1714 = vrot.lane.b32.xlu0 %v1429, 20
      %v1715 = vpop.permute.xlu0 %1714
      %1716 = vrot.lane.b32.xlu0 %v1430, 20
      %v1717 = vpop.permute.xlu0 %1716
      %1718 = vrot.lane.b32.xlu0 %v1431, 20
      %v1719 = vpop.permute.xlu0 %1718
      %1720 = vrot.lane.b32.xlu0 %v1432, 20
      %v1721 = vpop.permute.xlu0 %1720
      %1722 = vrot.lane.b32.xlu0 %v1433, 20
      %v1723 = vpop.permute.xlu0 %1722
      %1724 = vrot.lane.b32.xlu0 %v1434, 20
      %v1725 = vpop.permute.xlu0 %1724
      %1758 = vrot.lane.b32.xlu0 %v1438, 24
      %v1759 = vpop.permute.xlu0 %1758
      %1760 = vrot.lane.b32.xlu0 %v1439, 24
      %v1761 = vpop.permute.xlu0 %1760
      %1762 = vrot.lane.b32.xlu0 %v1440, 24
      %v1763 = vpop.permute.xlu0 %1762
      %1764 = vrot.lane.b32.xlu0 %v1441, 24
      %v1765 = vpop.permute.xlu0 %1764
      %1766 = vrot.lane.b32.xlu0 %v1442, 24
      %v1767 = vpop.permute.xlu0 %1766
      %1768 = vrot.lane.b32.xlu0 %v1443, 24
      %v1769 = vpop.permute.xlu0 %1768
      %1770 = vrot.lane.b32.xlu0 %v1444, 24
      %v1771 = vpop.permute.xlu0 %1770
      %1772 = vrot.lane.b32.xlu0 %v1445, 24
      %v1773 = vpop.permute.xlu0 %1772
      %1774 = vrot.lane.b32.xlu0 %v1446, 24
      %v1775 = vpop.permute.xlu0 %1774
      %1776 = vrot.lane.b32.xlu0 %v1447, 24
      %v1777 = vpop.permute.xlu0 %1776
      %1778 = vrot.lane.b32.xlu0 %v1448, 24
      %v1779 = vpop.permute.xlu0 %1778
      %1780 = vrot.lane.b32.xlu0 %v1449, 24
      %v1781 = vpop.permute.xlu0 %1780
      %1782 = vrot.lane.b32.xlu0 %v1450, 24
      %v1783 = vpop.permute.xlu0 %1782
      %1784 = vrot.lane.b32.xlu0 %v1451, 24
      %v1785 = vpop.permute.xlu0 %1784
      %1786 = vrot.lane.b32.xlu0 %v1452, 24
      %v1787 = vpop.permute.xlu0 %1786
      %1788 = vrot.lane.b32.xlu0 %v1453, 24
      %v1789 = vpop.permute.xlu0 %1788
      %1822 = vrot.lane.b32.xlu0 %v1454, 28
      %v1823 = vpop.permute.xlu0 %1822
      %1824 = vrot.lane.b32.xlu0 %v1455, 28
      %v1825 = vpop.permute.xlu0 %1824
      %1826 = vrot.lane.b32.xlu0 %v1456, 28
      %v1827 = vpop.permute.xlu0 %1826
      %1828 = vrot.lane.b32.xlu0 %v1457, 28
      %v1829 = vpop.permute.xlu0 %1828
      %1830 = vrot.lane.b32.xlu0 %v1458, 28
      %v1831 = vpop.permute.xlu0 %1830
      %1832 = vrot.lane.b32.xlu0 %v1459, 28
      %v1833 = vpop.permute.xlu0 %1832
      %1834 = vrot.lane.b32.xlu0 %v1460, 28
      %v1835 = vpop.permute.xlu0 %1834
      %1836 = vrot.lane.b32.xlu0 %v1461, 28
      %v1837 = vpop.permute.xlu0 %1836
      %1838 = vrot.lane.b32.xlu0 %v1462, 28
      %v1839 = vpop.permute.xlu0 %1838
      %1840 = vrot.lane.b32.xlu0 %v1463, 28
      %v1841 = vpop.permute.xlu0 %1840
      %1842 = vrot.lane.b32.xlu0 %v1464, 28
      %v1843 = vpop.permute.xlu0 %1842
      %1844 = vrot.lane.b32.xlu0 %v1465, 28
      %v1845 = vpop.permute.xlu0 %1844
      %1846 = vrot.lane.b32.xlu0 %v1466, 28
      %v1847 = vpop.permute.xlu0 %1846
      %1848 = vrot.lane.b32.xlu0 %v1467, 28
      %v1849 = vpop.permute.xlu0 %1848
      %1850 = vrot.lane.b32.xlu0 %v1468, 28
      %v1851 = vpop.permute.xlu0 %1850
      %1852 = vrot.lane.b32.xlu0 %v1469, 28
      %v1853 = vpop.permute.xlu0 %1852
      %1886 = vrot.lane.b32.xlu0 %v1470, 32
      %v1887 = vpop.permute.xlu0 %1886
      %1888 = vrot.lane.b32.xlu0 %v1471, 32
      %v1889 = vpop.permute.xlu0 %1888
      %1890 = vrot.lane.b32.xlu0 %v1472, 32
      %v1891 = vpop.permute.xlu0 %1890
      %1892 = vrot.lane.b32.xlu0 %v1473, 32
      %v1893 = vpop.permute.xlu0 %1892
      %1894 = vrot.lane.b32.xlu0 %v1474, 32
      %v1895 = vpop.permute.xlu0 %1894
      %1896 = vrot.lane.b32.xlu0 %v1475, 32
      %v1897 = vpop.permute.xlu0 %1896
      %1898 = vrot.lane.b32.xlu0 %v1476, 32
      %v1899 = vpop.permute.xlu0 %1898
      %1900 = vrot.lane.b32.xlu0 %v1477, 32
      %v1901 = vpop.permute.xlu0 %1900
      %1902 = vrot.lane.b32.xlu0 %v1478, 32
      %v1903 = vpop.permute.xlu0 %1902
      %1904 = vrot.lane.b32.xlu0 %v1479, 32
      %v1905 = vpop.permute.xlu0 %1904
      %1906 = vrot.lane.b32.xlu0 %v1480, 32
      %v1907 = vpop.permute.xlu0 %1906
      %1908 = vrot.lane.b32.xlu0 %v1481, 32
      %v1909 = vpop.permute.xlu0 %1908
      %1910 = vrot.lane.b32.xlu0 %v1482, 32
      %v1911 = vpop.permute.xlu0 %1910
      %1912 = vrot.lane.b32.xlu0 %v1483, 32
      %v1913 = vpop.permute.xlu0 %1912
      %1914 = vrot.lane.b32.xlu0 %v1484, 32
      %v1915 = vpop.permute.xlu0 %1914
      %1916 = vrot.lane.b32.xlu0 %v1485, 32
      %v1917 = vpop.permute.xlu0 %1916
      %v1934 = vsel %vm314, %v1355, %v1503
      %v1935 = vsel %vm314, %v1356, %v1505
      %v1936 = vsel %vm314, %v1357, %v1507
      %v1937 = vsel %vm314, %v1358, %v1509
      %v1938 = vsel %vm314, %v1359, %v1511
      %v1939 = vsel %vm314, %v1360, %v1513
      %v1940 = vsel %vm314, %v1361, %v1515
      %v1941 = vsel %vm314, %v1362, %v1517
      %v1942 = vsel %vm314, %v1363, %v1519
      %v1943 = vsel %vm314, %v1364, %v1521
      %v1944 = vsel %vm314, %v1365, %v1523
      %v1945 = vsel %vm314, %v1366, %v1525
      %v1946 = vsel %vm314, %v1367, %v1527
      %v1947 = vsel %vm314, %v1368, %v1529
      %v1948 = vsel %vm314, %v1369, %v1531
      %v1949 = vsel %vm314, %v1370, %v1533
      %v1950 = vsel %vm1094, %v1934, %v1567
      %v1951 = vsel %vm1094, %v1935, %v1569
      %v1952 = vsel %vm1094, %v1936, %v1571
      %v1953 = vsel %vm1094, %v1937, %v1573
      %v1954 = vsel %vm1094, %v1938, %v1575
      %v1955 = vsel %vm1094, %v1939, %v1577
      %v1956 = vsel %vm1094, %v1940, %v1579
      %v1957 = vsel %vm1094, %v1941, %v1581
      %v1958 = vsel %vm1094, %v1942, %v1583
      %v1959 = vsel %vm1094, %v1943, %v1585
      %v1960 = vsel %vm1094, %v1944, %v1587
      %v1961 = vsel %vm1094, %v1945, %v1589
      %v1962 = vsel %vm1094, %v1946, %v1591
      %v1963 = vsel %vm1094, %v1947, %v1593
      %v1964 = vsel %vm1094, %v1948, %v1595
      %v1965 = vsel %vm1094, %v1949, %v1597
      %v1966 = vsel %vm1111, %v1950, %v1631
      %v1967 = vsel %vm1111, %v1951, %v1633
      %v1968 = vsel %vm1111, %v1952, %v1635
      %v1969 = vsel %vm1111, %v1953, %v1637
      %v1970 = vsel %vm1111, %v1954, %v1639
      %v1971 = vsel %vm1111, %v1955, %v1641
      %v1972 = vsel %vm1111, %v1956, %v1643
      %v1973 = vsel %vm1111, %v1957, %v1645
      %v1974 = vsel %vm1111, %v1958, %v1647
      %v1975 = vsel %vm1111, %v1959, %v1649
      %v1976 = vsel %vm1111, %v1960, %v1651
      %v1977 = vsel %vm1111, %v1961, %v1653
      %v1978 = vsel %vm1111, %v1962, %v1655
      %v1979 = vsel %vm1111, %v1963, %v1657
      %v1980 = vsel %vm1111, %v1964, %v1659
      %v1981 = vsel %vm1111, %v1965, %v1661
      %v1982 = vsel %vm1128, %v1966, %v775
      %v1983 = vsel %vm1128, %v1967, %v777
      %v1984 = vsel %vm1128, %v1968, %v779
      %v1985 = vsel %vm1128, %v1969, %v781
      %v1986 = vsel %vm1128, %v1970, %v783
      %v1987 = vsel %vm1128, %v1971, %v785
      %v1988 = vsel %vm1128, %v1972, %v787
      %v1989 = vsel %vm1128, %v1973, %v789
      %v1990 = vsel %vm1128, %v1974, %v791
      %v1991 = vsel %vm1128, %v1975, %v793
      %v1992 = vsel %vm1128, %v1976, %v795
      %v1993 = vsel %vm1128, %v1977, %v797
      %v1994 = vsel %vm1128, %v1978, %v799
      %v1995 = vsel %vm1128, %v1979, %v801
      %v1996 = vsel %vm1128, %v1980, %v803
      %v1997 = vsel %vm1128, %v1981, %v805
      %v1998 = vsel %vm1145, %v1982, %v1695
      %v1999 = vsel %vm1145, %v1983, %v1697
      %v2000 = vsel %vm1145, %v1984, %v1699
      %v2001 = vsel %vm1145, %v1985, %v1701
      %v2002 = vsel %vm1145, %v1986, %v1703
      %v2003 = vsel %vm1145, %v1987, %v1705
      %v2004 = vsel %vm1145, %v1988, %v1707
      %v2005 = vsel %vm1145, %v1989, %v1709
      %v2006 = vsel %vm1145, %v1990, %v1711
      %v2007 = vsel %vm1145, %v1991, %v1713
      %v2008 = vsel %vm1145, %v1992, %v1715
      %v2009 = vsel %vm1145, %v1993, %v1717
      %v2010 = vsel %vm1145, %v1994, %v1719
      %v2011 = vsel %vm1145, %v1995, %v1721
      %v2012 = vsel %vm1145, %v1996, %v1723
      %v2013 = vsel %vm1145, %v1997, %v1725
      %v2014 = vsel %vm1162, %v1998, %v1759
      %v2015 = vsel %vm1162, %v1999, %v1761
      %v2016 = vsel %vm1162, %v2000, %v1763
      %v2017 = vsel %vm1162, %v2001, %v1765
      %v2018 = vsel %vm1162, %v2002, %v1767
      %v2019 = vsel %vm1162, %v2003, %v1769
      %v2020 = vsel %vm1162, %v2004, %v1771
      %v2021 = vsel %vm1162, %v2005, %v1773
      %v2022 = vsel %vm1162, %v2006, %v1775
      %v2023 = vsel %vm1162, %v2007, %v1777
      %v2024 = vsel %vm1162, %v2008, %v1779
      %v2025 = vsel %vm1162, %v2009, %v1781
      %v2026 = vsel %vm1162, %v2010, %v1783
      %v2027 = vsel %vm1162, %v2011, %v1785
      %v2028 = vsel %vm1162, %v2012, %v1787
      %v2029 = vsel %vm1162, %v2013, %v1789
      %v2030 = vsel %vm1179, %v2014, %v1823
      %v2031 = vsel %vm1179, %v2015, %v1825
      %v2032 = vsel %vm1179, %v2016, %v1827
      %v2033 = vsel %vm1179, %v2017, %v1829
      %v2034 = vsel %vm1179, %v2018, %v1831
      %v2035 = vsel %vm1179, %v2019, %v1833
      %v2036 = vsel %vm1179, %v2020, %v1835
      %v2037 = vsel %vm1179, %v2021, %v1837
      %v2038 = vsel %vm1179, %v2022, %v1839
      %v2039 = vsel %vm1179, %v2023, %v1841
      %v2040 = vsel %vm1179, %v2024, %v1843
      %v2041 = vsel %vm1179, %v2025, %v1845
      %v2042 = vsel %vm1179, %v2026, %v1847
      %v2043 = vsel %vm1179, %v2027, %v1849
      %v2044 = vsel %vm1179, %v2028, %v1851
      %v2045 = vsel %vm1179, %v2029, %v1853
      %v2046 = vsel %vm1196, %v2030, %v1887
      %v2047 = vsel %vm1196, %v2031, %v1889
      %v2048 = vsel %vm1196, %v2032, %v1891
      %v2049 = vsel %vm1196, %v2033, %v1893
      %v2050 = vsel %vm1196, %v2034, %v1895
      %v2051 = vsel %vm1196, %v2035, %v1897
      %v2052 = vsel %vm1196, %v2036, %v1899
      %v2053 = vsel %vm1196, %v2037, %v1901
      %v2054 = vsel %vm1196, %v2038, %v1903
      %v2055 = vsel %vm1196, %v2039, %v1905
      %v2056 = vsel %vm1196, %v2040, %v1907
      %v2057 = vsel %vm1196, %v2041, %v1909
      %v2058 = vsel %vm1196, %v2042, %v1911
      %v2059 = vsel %vm1196, %v2043, %v1913
      %v2060 = vsel %vm1196, %v2044, %v1915
      %v2061 = vsel %vm1196, %v2045, %v1917
      %s2062 = scalar_lea.vmem %s2, 40
      %v2063 = vld [vmem:[%s2062] sm:$0xff]
      %v2064 = vld [vmem:[%s2062 + $0x8] sm:$0xff]
      %v2065 = vld [vmem:[%s2062 + $0x10] sm:$0xff]
      %v2066 = vld [vmem:[%s2062 + $0x18] sm:$0xff]
      %v2067 = vld [vmem:[%s2062 + $0x20] sm:$0xf]
      %v2068 = vperm.slane %v293, 2
      %v2070 = vsel %vm1219, %v2046, 0
      %v2073 = vsel %vm1219, %v2047, 0
      %v2076 = vsel %vm1219, %v2048, 0
      %v2079 = vsel %vm1219, %v2049, 0
      %v2082 = vsel %vm1219, %v2050, 0
      %v2085 = vsel %vm1219, %v2051, 0
      %v2088 = vsel %vm1219, %v2052, 0
      %v2091 = vsel %vm1219, %v2053, 0
      %v2094 = vsel %vm1219, %v2054, 0
      %v2097 = vsel %vm1219, %v2055, 0
      %v2100 = vsel %vm1219, %v2056, 0
      %v2103 = vsel %vm1219, %v2057, 0
      %v2106 = vsel %vm1219, %v2058, 0
      %v2109 = vsel %vm1219, %v2059, 0
      %v2112 = vsel %vm1219, %v2060, 0
      %v2115 = vsel %vm1219, %v2061, 0
      %v2118 = vsel %vm363, %v2067, 0
      %2120 = vmatpush.msra.mxu0 0.0
      %2121 = vmatpush.msra.mxu0 0.0
      %2122 = vmatpush.msra.mxu0 0.0
      %2123 = vmatpush.msra.mxu0 0.0
      %2124 = vmatpush.msra.mxu0 0.0
      %2125 = vmatpush.msra.mxu0 0.0
      %2126 = vmatpush.msra.mxu0 0.0
      %2127 = vmatpush.msra.mxu0 0.0
      %2128 = vmatpush.msra.mxu0 0.0
      %2129 = vmatpush.msra.mxu0 0.0
      %2130 = vmatpush.msra.mxu0 0.0
      %2131 = vmatpush.msra.mxu0 %v2118
      %2132 = vmatpush.msra.mxu0 %v2066
      %2133 = vmatpush.msra.mxu0 %v2065
      %2134 = vmatpush.msra.mxu0 %v2064
      %2135 = vmatpush.msra.mxu0 %v2063
      %2136 = vmatmul.f32.gmra.mxu0 %v2070
      %v2137 = vpop.f32.mrf.mxu0
      %v2138 = vadd.f32 %v2068, %v2137
      %2139 = vmatmul.f32.gmra.mxu0 %v2073
      %v2140 = vpop.f32.mrf.mxu0
      %v2141 = vadd.f32 %v2068, %v2140
      %2142 = vmatmul.f32.gmra.mxu0 %v2076
      %v2143 = vpop.f32.mrf.mxu0
      %v2144 = vadd.f32 %v2068, %v2143
      %2145 = vmatmul.f32.gmra.mxu0 %v2079
      %v2146 = vpop.f32.mrf.mxu0
      %v2147 = vadd.f32 %v2068, %v2146
      %2148 = vmatmul.f32.gmra.mxu0 %v2082
      %v2149 = vpop.f32.mrf.mxu0
      %v2150 = vadd.f32 %v2068, %v2149
      %2151 = vmatmul.f32.gmra.mxu0 %v2085
      %v2152 = vpop.f32.mrf.mxu0
      %v2153 = vadd.f32 %v2068, %v2152
      %2154 = vmatmul.f32.gmra.mxu0 %v2088
      %v2155 = vpop.f32.mrf.mxu0
      %v2156 = vadd.f32 %v2068, %v2155
      %2157 = vmatmul.f32.gmra.mxu0 %v2091
      %v2158 = vpop.f32.mrf.mxu0
      %v2159 = vadd.f32 %v2068, %v2158
      %2160 = vmatmul.f32.gmra.mxu0 %v2094
      %v2161 = vpop.f32.mrf.mxu0
      %v2162 = vadd.f32 %v2068, %v2161
      %2163 = vmatmul.f32.gmra.mxu0 %v2097
      %v2164 = vpop.f32.mrf.mxu0
      %v2165 = vadd.f32 %v2068, %v2164
      %2166 = vmatmul.f32.gmra.mxu0 %v2100
      %v2167 = vpop.f32.mrf.mxu0
      %v2168 = vadd.f32 %v2068, %v2167
      %2169 = vmatmul.f32.gmra.mxu0 %v2103
      %v2170 = vpop.f32.mrf.mxu0
      %v2171 = vadd.f32 %v2068, %v2170
      %2172 = vmatmul.f32.gmra.mxu0 %v2106
      %v2173 = vpop.f32.mrf.mxu0
      %v2174 = vadd.f32 %v2068, %v2173
      %2175 = vmatmul.f32.gmra.mxu0 %v2109
      %v2176 = vpop.f32.mrf.mxu0
      %v2177 = vadd.f32 %v2068, %v2176
      %2178 = vmatmul.f32.gmra.mxu0 %v2112
      %v2179 = vpop.f32.mrf.mxu0
      %v2180 = vadd.f32 %v2068, %v2179
      %2181 = vmatmul.f32.gmra.mxu0 %v2115
      %v2182 = vpop.f32.mrf.mxu0
      %v2183 = vadd.f32 %v2068, %v2182
      %2184 = vdwg.mxu0
      %v2185 = vmax.f32 %v2138, 0.0
      %v2186 = vmax.f32 %v2141, 0.0
      %v2187 = vmax.f32 %v2144, 0.0
      %v2188 = vmax.f32 %v2147, 0.0
      %v2189 = vmax.f32 %v2150, 0.0
      %v2190 = vmax.f32 %v2153, 0.0
      %v2191 = vmax.f32 %v2156, 0.0
      %v2192 = vmax.f32 %v2159, 0.0
      %v2193 = vmax.f32 %v2162, 0.0
      %v2194 = vmax.f32 %v2165, 0.0
      %v2195 = vmax.f32 %v2168, 0.0
      %v2196 = vmax.f32 %v2171, 0.0
      %v2197 = vmax.f32 %v2174, 0.0
      %v2198 = vmax.f32 %v2177, 0.0
      %v2199 = vmax.f32 %v2180, 0.0
      %v2200 = vmax.f32 %v2183, 0.0
      %s2201 = smul.u32 %s291, 56
      %s2202 = scalar_lea.vmem %s276, %s2201
      %v2203 = vld [vmem:[%s2202] sm:$0xff]
      %v2204 = vld [vmem:[%s2202 + $0x8] sm:$0xff]
      %v2205 = vld [vmem:[%s2202 + $0x38] sm:$0xff]
      %v2206 = vld [vmem:[%s2202 + $0x40] sm:$0xff]
      %v2207 = vld [vmem:[%s2202 + $0x70] sm:$0xff]
      %v2208 = vld [vmem:[%s2202 + $0x78] sm:$0xff]
      %v2209 = vld [vmem:[%s2202 + $0xa8] sm:$0xff]
      %v2210 = vld [vmem:[%s2202 + $0xb0] sm:$0xff]
      %v2211 = vld [vmem:[%s2202 + $0xe0] sm:$0xff]
      %v2212 = vld [vmem:[%s2202 + $0xe8] sm:$0xff]
      %v2213 = vld [vmem:[%s2202 + $0x118] sm:$0xff]
      %v2214 = vld [vmem:[%s2202 + $0x120] sm:$0xff]
      %v2215 = vld [vmem:[%s2202 + $0x150] sm:$0xff]
      %v2216 = vld [vmem:[%s2202 + $0x158] sm:$0xff]
      %v2217 = vld [vmem:[%s2202 + $0x188] sm:$0xff]
      %v2218 = vld [vmem:[%s2202 + $0x190] sm:$0xff]
      %v2219 = vld [vmem:[%s2202 + $0x12] sm:$0xff]
      %v2220 = vld [vmem:[%s2202 + $0x1a] sm:$0xff]
      %v2221 = vld [vmem:[%s2202 + $0x4a] sm:$0xff]
      %v2222 = vld [vmem:[%s2202 + $0x52] sm:$0xff]
      %v2223 = vld [vmem:[%s2202 + $0x82] sm:$0xff]
      %v2224 = vld [vmem:[%s2202 + $0x8a] sm:$0xff]
      %v2225 = vld [vmem:[%s2202 + $0xba] sm:$0xff]
      %v2226 = vld [vmem:[%s2202 + $0xc2] sm:$0xff]
      %v2227 = vld [vmem:[%s2202 + $0xf2] sm:$0xff]
      %v2228 = vld [vmem:[%s2202 + $0xfa] sm:$0xff]
      %v2229 = vld [vmem:[%s2202 + $0x12a] sm:$0xff]
      %v2230 = vld [vmem:[%s2202 + $0x132] sm:$0xff]
      %v2231 = vld [vmem:[%s2202 + $0x162] sm:$0xff]
      %v2232 = vld [vmem:[%s2202 + $0x16a] sm:$0xff]
      %v2233 = vld [vmem:[%s2202 + $0x19a] sm:$0xff]
      %v2234 = vld [vmem:[%s2202 + $0x1a2] sm:$0xff]
      %v2235 = vld [vmem:[%s2202 + $0x24] sm:$0xff]
      %v2236 = vld [vmem:[%s2202 + $0x2c] sm:$0xff]
      %v2237 = vld [vmem:[%s2202 + $0x5c] sm:$0xff]
      %v2238 = vld [vmem:[%s2202 + $0x64] sm:$0xff]
      %v2239 = vld [vmem:[%s2202 + $0x94] sm:$0xff]
      %v2240 = vld [vmem:[%s2202 + $0x9c] sm:$0xff]
      %v2241 = vld [vmem:[%s2202 + $0xcc] sm:$0xff]
      %v2242 = vld [vmem:[%s2202 + $0xd4] sm:$0xff]
      %v2243 = vld [vmem:[%s2202 + $0x104] sm:$0xff]
      %v2244 = vld [vmem:[%s2202 + $0x10c] sm:$0xff]
      %v2245 = vld [vmem:[%s2202 + $0x13c] sm:$0xff]
      %v2246 = vld [vmem:[%s2202 + $0x144] sm:$0xff]
      %v2247 = vld [vmem:[%s2202 + $0x174] sm:$0xff]
      %v2248 = vld [vmem:[%s2202 + $0x17c] sm:$0xff]
      %v2249 = vld [vmem:[%s2202 + $0x1ac] sm:$0xff]
      %v2250 = vld [vmem:[%s2202 + $0x1b4] sm:$0xff]
      %v2251 = vld [vmem:[%s295] sm:$0xff]
      %v2252 = vld [vmem:[%s295 + $0x8] sm:$0xff]
      %v2253 = vld [vmem:[%s295 + $0x38] sm:$0xff]
      %v2254 = vld [vmem:[%s295 + $0x40] sm:$0xff]
      %v2255 = vld [vmem:[%s295 + $0x70] sm:$0xff]
      %v2256 = vld [vmem:[%s295 + $0x78] sm:$0xff]
      %v2257 = vld [vmem:[%s295 + $0xa8] sm:$0xff]
      %v2258 = vld [vmem:[%s295 + $0xb0] sm:$0xff]
      %v2259 = vld [vmem:[%s295 + $0xe0] sm:$0xff]
      %v2260 = vld [vmem:[%s295 + $0xe8] sm:$0xff]
      %v2261 = vld [vmem:[%s295 + $0x118] sm:$0xff]
      %v2262 = vld [vmem:[%s295 + $0x120] sm:$0xff]
      %v2263 = vld [vmem:[%s295 + $0x150] sm:$0xff]
      %v2264 = vld [vmem:[%s295 + $0x158] sm:$0xff]
      %v2265 = vld [vmem:[%s295 + $0x188] sm:$0xff]
      %v2266 = vld [vmem:[%s295 + $0x190] sm:$0xff]
      %v2267 = vld [vmem:[%s295 + $0x24] sm:$0xff]
      %v2268 = vld [vmem:[%s295 + $0x2c] sm:$0xff]
      %v2269 = vld [vmem:[%s295 + $0x5c] sm:$0xff]
      %v2270 = vld [vmem:[%s295 + $0x64] sm:$0xff]
      %v2271 = vld [vmem:[%s295 + $0x94] sm:$0xff]
      %v2272 = vld [vmem:[%s295 + $0x9c] sm:$0xff]
      %v2273 = vld [vmem:[%s295 + $0xcc] sm:$0xff]
      %v2274 = vld [vmem:[%s295 + $0xd4] sm:$0xff]
      %v2275 = vld [vmem:[%s295 + $0x104] sm:$0xff]
      %v2276 = vld [vmem:[%s295 + $0x10c] sm:$0xff]
      %v2277 = vld [vmem:[%s295 + $0x13c] sm:$0xff]
      %v2278 = vld [vmem:[%s295 + $0x144] sm:$0xff]
      %v2279 = vld [vmem:[%s295 + $0x174] sm:$0xff]
      %v2280 = vld [vmem:[%s295 + $0x17c] sm:$0xff]
      %v2281 = vld [vmem:[%s295 + $0x1ac] sm:$0xff]
      %v2282 = vld [vmem:[%s295 + $0x1b4] sm:$0xff]
      %s2283 = sadd.s32 %s291, 36
      %s2284 = smul.u32 %s2283, 56
      %s2285 = scalar_lea.vmem %s276, %s2284
      %v2286 = vld [vmem:[%s2285] sm:$0xff]
      %v2287 = vld [vmem:[%s2285 + $0x8] sm:$0xff]
      %v2288 = vld [vmem:[%s2285 + $0x38] sm:$0xff]
      %v2289 = vld [vmem:[%s2285 + $0x40] sm:$0xff]
      %v2290 = vld [vmem:[%s2285 + $0x70] sm:$0xff]
      %v2291 = vld [vmem:[%s2285 + $0x78] sm:$0xff]
      %v2292 = vld [vmem:[%s2285 + $0xa8] sm:$0xff]
      %v2293 = vld [vmem:[%s2285 + $0xb0] sm:$0xff]
      %v2294 = vld [vmem:[%s2285 + $0xe0] sm:$0xff]
      %v2295 = vld [vmem:[%s2285 + $0xe8] sm:$0xff]
      %v2296 = vld [vmem:[%s2285 + $0x118] sm:$0xff]
      %v2297 = vld [vmem:[%s2285 + $0x120] sm:$0xff]
      %v2298 = vld [vmem:[%s2285 + $0x150] sm:$0xff]
      %v2299 = vld [vmem:[%s2285 + $0x158] sm:$0xff]
      %v2300 = vld [vmem:[%s2285 + $0x188] sm:$0xff]
      %v2301 = vld [vmem:[%s2285 + $0x190] sm:$0xff]
      %v2302 = vld [vmem:[%s2285 + $0x12] sm:$0xff]
      %v2303 = vld [vmem:[%s2285 + $0x1a] sm:$0xff]
      %v2304 = vld [vmem:[%s2285 + $0x4a] sm:$0xff]
      %v2305 = vld [vmem:[%s2285 + $0x52] sm:$0xff]
      %v2306 = vld [vmem:[%s2285 + $0x82] sm:$0xff]
      %v2307 = vld [vmem:[%s2285 + $0x8a] sm:$0xff]
      %v2308 = vld [vmem:[%s2285 + $0xba] sm:$0xff]
      %v2309 = vld [vmem:[%s2285 + $0xc2] sm:$0xff]
      %v2310 = vld [vmem:[%s2285 + $0xf2] sm:$0xff]
      %v2311 = vld [vmem:[%s2285 + $0xfa] sm:$0xff]
      %v2312 = vld [vmem:[%s2285 + $0x12a] sm:$0xff]
      %v2313 = vld [vmem:[%s2285 + $0x132] sm:$0xff]
      %v2314 = vld [vmem:[%s2285 + $0x162] sm:$0xff]
      %v2315 = vld [vmem:[%s2285 + $0x16a] sm:$0xff]
      %v2316 = vld [vmem:[%s2285 + $0x19a] sm:$0xff]
      %v2317 = vld [vmem:[%s2285 + $0x1a2] sm:$0xff]
      %v2318 = vld [vmem:[%s2285 + $0x24] sm:$0xff]
      %v2319 = vld [vmem:[%s2285 + $0x2c] sm:$0xff]
      %v2320 = vld [vmem:[%s2285 + $0x5c] sm:$0xff]
      %v2321 = vld [vmem:[%s2285 + $0x64] sm:$0xff]
      %v2322 = vld [vmem:[%s2285 + $0x94] sm:$0xff]
      %v2323 = vld [vmem:[%s2285 + $0x9c] sm:$0xff]
      %v2324 = vld [vmem:[%s2285 + $0xcc] sm:$0xff]
      %v2325 = vld [vmem:[%s2285 + $0xd4] sm:$0xff]
      %v2326 = vld [vmem:[%s2285 + $0x104] sm:$0xff]
      %v2327 = vld [vmem:[%s2285 + $0x10c] sm:$0xff]
      %v2328 = vld [vmem:[%s2285 + $0x13c] sm:$0xff]
      %v2329 = vld [vmem:[%s2285 + $0x144] sm:$0xff]
      %v2330 = vld [vmem:[%s2285 + $0x174] sm:$0xff]
      %v2331 = vld [vmem:[%s2285 + $0x17c] sm:$0xff]
      %v2332 = vld [vmem:[%s2285 + $0x1ac] sm:$0xff]
      %v2333 = vld [vmem:[%s2285 + $0x1b4] sm:$0xff]
      %2350 = vrot.lane.b32.xlu0 %v2219, 4
      %v2351 = vpop.permute.xlu0 %2350
      %2352 = vrot.lane.b32.xlu0 %v2220, 4
      %v2353 = vpop.permute.xlu0 %2352
      %2354 = vrot.lane.b32.xlu0 %v2221, 4
      %v2355 = vpop.permute.xlu0 %2354
      %2356 = vrot.lane.b32.xlu0 %v2222, 4
      %v2357 = vpop.permute.xlu0 %2356
      %2358 = vrot.lane.b32.xlu0 %v2223, 4
      %v2359 = vpop.permute.xlu0 %2358
      %2360 = vrot.lane.b32.xlu0 %v2224, 4
      %v2361 = vpop.permute.xlu0 %2360
      %2362 = vrot.lane.b32.xlu0 %v2225, 4
      %v2363 = vpop.permute.xlu0 %2362
      %2364 = vrot.lane.b32.xlu0 %v2226, 4
      %v2365 = vpop.permute.xlu0 %2364
      %2366 = vrot.lane.b32.xlu0 %v2227, 4
      %v2367 = vpop.permute.xlu0 %2366
      %2368 = vrot.lane.b32.xlu0 %v2228, 4
      %v2369 = vpop.permute.xlu0 %2368
      %2370 = vrot.lane.b32.xlu0 %v2229, 4
      %v2371 = vpop.permute.xlu0 %2370
      %2372 = vrot.lane.b32.xlu0 %v2230, 4
      %v2373 = vpop.permute.xlu0 %2372
      %2374 = vrot.lane.b32.xlu0 %v2231, 4
      %v2375 = vpop.permute.xlu0 %2374
      %2376 = vrot.lane.b32.xlu0 %v2232, 4
      %v2377 = vpop.permute.xlu0 %2376
      %2378 = vrot.lane.b32.xlu0 %v2233, 4
      %v2379 = vpop.permute.xlu0 %2378
      %2380 = vrot.lane.b32.xlu0 %v2234, 4
      %v2381 = vpop.permute.xlu0 %2380
      %2414 = vrot.lane.b32.xlu0 %v2235, 8
      %v2415 = vpop.permute.xlu0 %2414
      %2416 = vrot.lane.b32.xlu0 %v2236, 8
      %v2417 = vpop.permute.xlu0 %2416
      %2418 = vrot.lane.b32.xlu0 %v2237, 8
      %v2419 = vpop.permute.xlu0 %2418
      %2420 = vrot.lane.b32.xlu0 %v2238, 8
      %v2421 = vpop.permute.xlu0 %2420
      %2422 = vrot.lane.b32.xlu0 %v2239, 8
      %v2423 = vpop.permute.xlu0 %2422
      %2424 = vrot.lane.b32.xlu0 %v2240, 8
      %v2425 = vpop.permute.xlu0 %2424
      %2426 = vrot.lane.b32.xlu0 %v2241, 8
      %v2427 = vpop.permute.xlu0 %2426
      %2428 = vrot.lane.b32.xlu0 %v2242, 8
      %v2429 = vpop.permute.xlu0 %2428
      %2430 = vrot.lane.b32.xlu0 %v2243, 8
      %v2431 = vpop.permute.xlu0 %2430
      %2432 = vrot.lane.b32.xlu0 %v2244, 8
      %v2433 = vpop.permute.xlu0 %2432
      %2434 = vrot.lane.b32.xlu0 %v2245, 8
      %v2435 = vpop.permute.xlu0 %2434
      %2436 = vrot.lane.b32.xlu0 %v2246, 8
      %v2437 = vpop.permute.xlu0 %2436
      %2438 = vrot.lane.b32.xlu0 %v2247, 8
      %v2439 = vpop.permute.xlu0 %2438
      %2440 = vrot.lane.b32.xlu0 %v2248, 8
      %v2441 = vpop.permute.xlu0 %2440
      %2442 = vrot.lane.b32.xlu0 %v2249, 8
      %v2443 = vpop.permute.xlu0 %2442
      %2444 = vrot.lane.b32.xlu0 %v2250, 8
      %v2445 = vpop.permute.xlu0 %2444
      %2478 = vrot.lane.b32.xlu0 %v2251, 12
      %v2479 = vpop.permute.xlu0 %2478
      %2480 = vrot.lane.b32.xlu0 %v2252, 12
      %v2481 = vpop.permute.xlu0 %2480
      %2482 = vrot.lane.b32.xlu0 %v2253, 12
      %v2483 = vpop.permute.xlu0 %2482
      %2484 = vrot.lane.b32.xlu0 %v2254, 12
      %v2485 = vpop.permute.xlu0 %2484
      %2486 = vrot.lane.b32.xlu0 %v2255, 12
      %v2487 = vpop.permute.xlu0 %2486
      %2488 = vrot.lane.b32.xlu0 %v2256, 12
      %v2489 = vpop.permute.xlu0 %2488
      %2490 = vrot.lane.b32.xlu0 %v2257, 12
      %v2491 = vpop.permute.xlu0 %2490
      %2492 = vrot.lane.b32.xlu0 %v2258, 12
      %v2493 = vpop.permute.xlu0 %2492
      %2494 = vrot.lane.b32.xlu0 %v2259, 12
      %v2495 = vpop.permute.xlu0 %2494
      %2496 = vrot.lane.b32.xlu0 %v2260, 12
      %v2497 = vpop.permute.xlu0 %2496
      %2498 = vrot.lane.b32.xlu0 %v2261, 12
      %v2499 = vpop.permute.xlu0 %2498
      %2500 = vrot.lane.b32.xlu0 %v2262, 12
      %v2501 = vpop.permute.xlu0 %2500
      %2502 = vrot.lane.b32.xlu0 %v2263, 12
      %v2503 = vpop.permute.xlu0 %2502
      %2504 = vrot.lane.b32.xlu0 %v2264, 12
      %v2505 = vpop.permute.xlu0 %2504
      %2506 = vrot.lane.b32.xlu0 %v2265, 12
      %v2507 = vpop.permute.xlu0 %2506
      %2508 = vrot.lane.b32.xlu0 %v2266, 12
      %v2509 = vpop.permute.xlu0 %2508
      %2542 = vrot.lane.b32.xlu0 %v2267, 20
      %v2543 = vpop.permute.xlu0 %2542
      %2544 = vrot.lane.b32.xlu0 %v2268, 20
      %v2545 = vpop.permute.xlu0 %2544
      %2546 = vrot.lane.b32.xlu0 %v2269, 20
      %v2547 = vpop.permute.xlu0 %2546
      %2548 = vrot.lane.b32.xlu0 %v2270, 20
      %v2549 = vpop.permute.xlu0 %2548
      %2550 = vrot.lane.b32.xlu0 %v2271, 20
      %v2551 = vpop.permute.xlu0 %2550
      %2552 = vrot.lane.b32.xlu0 %v2272, 20
      %v2553 = vpop.permute.xlu0 %2552
      %2554 = vrot.lane.b32.xlu0 %v2273, 20
      %v2555 = vpop.permute.xlu0 %2554
      %2556 = vrot.lane.b32.xlu0 %v2274, 20
      %v2557 = vpop.permute.xlu0 %2556
      %2558 = vrot.lane.b32.xlu0 %v2275, 20
      %v2559 = vpop.permute.xlu0 %2558
      %2560 = vrot.lane.b32.xlu0 %v2276, 20
      %v2561 = vpop.permute.xlu0 %2560
      %2562 = vrot.lane.b32.xlu0 %v2277, 20
      %v2563 = vpop.permute.xlu0 %2562
      %2564 = vrot.lane.b32.xlu0 %v2278, 20
      %v2565 = vpop.permute.xlu0 %2564
      %2566 = vrot.lane.b32.xlu0 %v2279, 20
      %v2567 = vpop.permute.xlu0 %2566
      %2568 = vrot.lane.b32.xlu0 %v2280, 20
      %v2569 = vpop.permute.xlu0 %2568
      %2570 = vrot.lane.b32.xlu0 %v2281, 20
      %v2571 = vpop.permute.xlu0 %2570
      %2572 = vrot.lane.b32.xlu0 %v2282, 20
      %v2573 = vpop.permute.xlu0 %2572
      %2606 = vrot.lane.b32.xlu0 %v2286, 24
      %v2607 = vpop.permute.xlu0 %2606
      %2608 = vrot.lane.b32.xlu0 %v2287, 24
      %v2609 = vpop.permute.xlu0 %2608
      %2610 = vrot.lane.b32.xlu0 %v2288, 24
      %v2611 = vpop.permute.xlu0 %2610
      %2612 = vrot.lane.b32.xlu0 %v2289, 24
      %v2613 = vpop.permute.xlu0 %2612
      %2614 = vrot.lane.b32.xlu0 %v2290, 24
      %v2615 = vpop.permute.xlu0 %2614
      %2616 = vrot.lane.b32.xlu0 %v2291, 24
      %v2617 = vpop.permute.xlu0 %2616
      %2618 = vrot.lane.b32.xlu0 %v2292, 24
      %v2619 = vpop.permute.xlu0 %2618
      %2620 = vrot.lane.b32.xlu0 %v2293, 24
      %v2621 = vpop.permute.xlu0 %2620
      %2622 = vrot.lane.b32.xlu0 %v2294, 24
      %v2623 = vpop.permute.xlu0 %2622
      %2624 = vrot.lane.b32.xlu0 %v2295, 24
      %v2625 = vpop.permute.xlu0 %2624
      %2626 = vrot.lane.b32.xlu0 %v2296, 24
      %v2627 = vpop.permute.xlu0 %2626
      %2628 = vrot.lane.b32.xlu0 %v2297, 24
      %v2629 = vpop.permute.xlu0 %2628
      %2630 = vrot.lane.b32.xlu0 %v2298, 24
      %v2631 = vpop.permute.xlu0 %2630
      %2632 = vrot.lane.b32.xlu0 %v2299, 24
      %v2633 = vpop.permute.xlu0 %2632
      %2634 = vrot.lane.b32.xlu0 %v2300, 24
      %v2635 = vpop.permute.xlu0 %2634
      %2636 = vrot.lane.b32.xlu0 %v2301, 24
      %v2637 = vpop.permute.xlu0 %2636
      %2670 = vrot.lane.b32.xlu0 %v2302, 28
      %v2671 = vpop.permute.xlu0 %2670
      %2672 = vrot.lane.b32.xlu0 %v2303, 28
      %v2673 = vpop.permute.xlu0 %2672
      %2674 = vrot.lane.b32.xlu0 %v2304, 28
      %v2675 = vpop.permute.xlu0 %2674
      %2676 = vrot.lane.b32.xlu0 %v2305, 28
      %v2677 = vpop.permute.xlu0 %2676
      %2678 = vrot.lane.b32.xlu0 %v2306, 28
      %v2679 = vpop.permute.xlu0 %2678
      %2680 = vrot.lane.b32.xlu0 %v2307, 28
      %v2681 = vpop.permute.xlu0 %2680
      %2682 = vrot.lane.b32.xlu0 %v2308, 28
      %v2683 = vpop.permute.xlu0 %2682
      %2684 = vrot.lane.b32.xlu0 %v2309, 28
      %v2685 = vpop.permute.xlu0 %2684
      %2686 = vrot.lane.b32.xlu0 %v2310, 28
      %v2687 = vpop.permute.xlu0 %2686
      %2688 = vrot.lane.b32.xlu0 %v2311, 28
      %v2689 = vpop.permute.xlu0 %2688
      %2690 = vrot.lane.b32.xlu0 %v2312, 28
      %v2691 = vpop.permute.xlu0 %2690
      %2692 = vrot.lane.b32.xlu0 %v2313, 28
      %v2693 = vpop.permute.xlu0 %2692
      %2694 = vrot.lane.b32.xlu0 %v2314, 28
      %v2695 = vpop.permute.xlu0 %2694
      %2696 = vrot.lane.b32.xlu0 %v2315, 28
      %v2697 = vpop.permute.xlu0 %2696
      %2698 = vrot.lane.b32.xlu0 %v2316, 28
      %v2699 = vpop.permute.xlu0 %2698
      %2700 = vrot.lane.b32.xlu0 %v2317, 28
      %v2701 = vpop.permute.xlu0 %2700
      %2734 = vrot.lane.b32.xlu0 %v2318, 32
      %v2735 = vpop.permute.xlu0 %2734
      %2736 = vrot.lane.b32.xlu0 %v2319, 32
      %v2737 = vpop.permute.xlu0 %2736
      %2738 = vrot.lane.b32.xlu0 %v2320, 32
      %v2739 = vpop.permute.xlu0 %2738
      %2740 = vrot.lane.b32.xlu0 %v2321, 32
      %v2741 = vpop.permute.xlu0 %2740
      %2742 = vrot.lane.b32.xlu0 %v2322, 32
      %v2743 = vpop.permute.xlu0 %2742
      %2744 = vrot.lane.b32.xlu0 %v2323, 32
      %v2745 = vpop.permute.xlu0 %2744
      %2746 = vrot.lane.b32.xlu0 %v2324, 32
      %v2747 = vpop.permute.xlu0 %2746
      %2748 = vrot.lane.b32.xlu0 %v2325, 32
      %v2749 = vpop.permute.xlu0 %2748
      %2750 = vrot.lane.b32.xlu0 %v2326, 32
      %v2751 = vpop.permute.xlu0 %2750
      %2752 = vrot.lane.b32.xlu0 %v2327, 32
      %v2753 = vpop.permute.xlu0 %2752
      %2754 = vrot.lane.b32.xlu0 %v2328, 32
      %v2755 = vpop.permute.xlu0 %2754
      %2756 = vrot.lane.b32.xlu0 %v2329, 32
      %v2757 = vpop.permute.xlu0 %2756
      %2758 = vrot.lane.b32.xlu0 %v2330, 32
      %v2759 = vpop.permute.xlu0 %2758
      %2760 = vrot.lane.b32.xlu0 %v2331, 32
      %v2761 = vpop.permute.xlu0 %2760
      %2762 = vrot.lane.b32.xlu0 %v2332, 32
      %v2763 = vpop.permute.xlu0 %2762
      %2764 = vrot.lane.b32.xlu0 %v2333, 32
      %v2765 = vpop.permute.xlu0 %2764
      %v2782 = vsel %vm314, %v2203, %v2351
      %v2783 = vsel %vm314, %v2204, %v2353
      %v2784 = vsel %vm314, %v2205, %v2355
      %v2785 = vsel %vm314, %v2206, %v2357
      %v2786 = vsel %vm314, %v2207, %v2359
      %v2787 = vsel %vm314, %v2208, %v2361
      %v2788 = vsel %vm314, %v2209, %v2363
      %v2789 = vsel %vm314, %v2210, %v2365
      %v2790 = vsel %vm314, %v2211, %v2367
      %v2791 = vsel %vm314, %v2212, %v2369
      %v2792 = vsel %vm314, %v2213, %v2371
      %v2793 = vsel %vm314, %v2214, %v2373
      %v2794 = vsel %vm314, %v2215, %v2375
      %v2795 = vsel %vm314, %v2216, %v2377
      %v2796 = vsel %vm314, %v2217, %v2379
      %v2797 = vsel %vm314, %v2218, %v2381
      %v2798 = vsel %vm1094, %v2782, %v2415
      %v2799 = vsel %vm1094, %v2783, %v2417
      %v2800 = vsel %vm1094, %v2784, %v2419
      %v2801 = vsel %vm1094, %v2785, %v2421
      %v2802 = vsel %vm1094, %v2786, %v2423
      %v2803 = vsel %vm1094, %v2787, %v2425
      %v2804 = vsel %vm1094, %v2788, %v2427
      %v2805 = vsel %vm1094, %v2789, %v2429
      %v2806 = vsel %vm1094, %v2790, %v2431
      %v2807 = vsel %vm1094, %v2791, %v2433
      %v2808 = vsel %vm1094, %v2792, %v2435
      %v2809 = vsel %vm1094, %v2793, %v2437
      %v2810 = vsel %vm1094, %v2794, %v2439
      %v2811 = vsel %vm1094, %v2795, %v2441
      %v2812 = vsel %vm1094, %v2796, %v2443
      %v2813 = vsel %vm1094, %v2797, %v2445
      %v2814 = vsel %vm1111, %v2798, %v2479
      %v2815 = vsel %vm1111, %v2799, %v2481
      %v2816 = vsel %vm1111, %v2800, %v2483
      %v2817 = vsel %vm1111, %v2801, %v2485
      %v2818 = vsel %vm1111, %v2802, %v2487
      %v2819 = vsel %vm1111, %v2803, %v2489
      %v2820 = vsel %vm1111, %v2804, %v2491
      %v2821 = vsel %vm1111, %v2805, %v2493
      %v2822 = vsel %vm1111, %v2806, %v2495
      %v2823 = vsel %vm1111, %v2807, %v2497
      %v2824 = vsel %vm1111, %v2808, %v2499
      %v2825 = vsel %vm1111, %v2809, %v2501
      %v2826 = vsel %vm1111, %v2810, %v2503
      %v2827 = vsel %vm1111, %v2811, %v2505
      %v2828 = vsel %vm1111, %v2812, %v2507
      %v2829 = vsel %vm1111, %v2813, %v2509
      %v2830 = vsel %vm1128, %v2814, %v775
      %v2831 = vsel %vm1128, %v2815, %v777
      %v2832 = vsel %vm1128, %v2816, %v779
      %v2833 = vsel %vm1128, %v2817, %v781
      %v2834 = vsel %vm1128, %v2818, %v783
      %v2835 = vsel %vm1128, %v2819, %v785
      %v2836 = vsel %vm1128, %v2820, %v787
      %v2837 = vsel %vm1128, %v2821, %v789
      %v2838 = vsel %vm1128, %v2822, %v791
      %v2839 = vsel %vm1128, %v2823, %v793
      %v2840 = vsel %vm1128, %v2824, %v795
      %v2841 = vsel %vm1128, %v2825, %v797
      %v2842 = vsel %vm1128, %v2826, %v799
      %v2843 = vsel %vm1128, %v2827, %v801
      %v2844 = vsel %vm1128, %v2828, %v803
      %v2845 = vsel %vm1128, %v2829, %v805
      %v2846 = vsel %vm1145, %v2830, %v2543
      %v2847 = vsel %vm1145, %v2831, %v2545
      %v2848 = vsel %vm1145, %v2832, %v2547
      %v2849 = vsel %vm1145, %v2833, %v2549
      %v2850 = vsel %vm1145, %v2834, %v2551
      %v2851 = vsel %vm1145, %v2835, %v2553
      %v2852 = vsel %vm1145, %v2836, %v2555
      %v2853 = vsel %vm1145, %v2837, %v2557
      %v2854 = vsel %vm1145, %v2838, %v2559
      %v2855 = vsel %vm1145, %v2839, %v2561
      %v2856 = vsel %vm1145, %v2840, %v2563
      %v2857 = vsel %vm1145, %v2841, %v2565
      %v2858 = vsel %vm1145, %v2842, %v2567
      %v2859 = vsel %vm1145, %v2843, %v2569
      %v2860 = vsel %vm1145, %v2844, %v2571
      %v2861 = vsel %vm1145, %v2845, %v2573
      %v2862 = vsel %vm1162, %v2846, %v2607
      %v2863 = vsel %vm1162, %v2847, %v2609
      %v2864 = vsel %vm1162, %v2848, %v2611
      %v2865 = vsel %vm1162, %v2849, %v2613
      %v2866 = vsel %vm1162, %v2850, %v2615
      %v2867 = vsel %vm1162, %v2851, %v2617
      %v2868 = vsel %vm1162, %v2852, %v2619
      %v2869 = vsel %vm1162, %v2853, %v2621
      %v2870 = vsel %vm1162, %v2854, %v2623
      %v2871 = vsel %vm1162, %v2855, %v2625
      %v2872 = vsel %vm1162, %v2856, %v2627
      %v2873 = vsel %vm1162, %v2857, %v2629
      %v2874 = vsel %vm1162, %v2858, %v2631
      %v2875 = vsel %vm1162, %v2859, %v2633
      %v2876 = vsel %vm1162, %v2860, %v2635
      %v2877 = vsel %vm1162, %v2861, %v2637
      %v2878 = vsel %vm1179, %v2862, %v2671
      %v2879 = vsel %vm1179, %v2863, %v2673
      %v2880 = vsel %vm1179, %v2864, %v2675
      %v2881 = vsel %vm1179, %v2865, %v2677
      %v2882 = vsel %vm1179, %v2866, %v2679
      %v2883 = vsel %vm1179, %v2867, %v2681
      %v2884 = vsel %vm1179, %v2868, %v2683
      %v2885 = vsel %vm1179, %v2869, %v2685
      %v2886 = vsel %vm1179, %v2870, %v2687
      %v2887 = vsel %vm1179, %v2871, %v2689
      %v2888 = vsel %vm1179, %v2872, %v2691
      %v2889 = vsel %vm1179, %v2873, %v2693
      %v2890 = vsel %vm1179, %v2874, %v2695
      %v2891 = vsel %vm1179, %v2875, %v2697
      %v2892 = vsel %vm1179, %v2876, %v2699
      %v2893 = vsel %vm1179, %v2877, %v2701
      %v2894 = vsel %vm1196, %v2878, %v2735
      %v2895 = vsel %vm1196, %v2879, %v2737
      %v2896 = vsel %vm1196, %v2880, %v2739
      %v2897 = vsel %vm1196, %v2881, %v2741
      %v2898 = vsel %vm1196, %v2882, %v2743
      %v2899 = vsel %vm1196, %v2883, %v2745
      %v2900 = vsel %vm1196, %v2884, %v2747
      %v2901 = vsel %vm1196, %v2885, %v2749
      %v2902 = vsel %vm1196, %v2886, %v2751
      %v2903 = vsel %vm1196, %v2887, %v2753
      %v2904 = vsel %vm1196, %v2888, %v2755
      %v2905 = vsel %vm1196, %v2889, %v2757
      %v2906 = vsel %vm1196, %v2890, %v2759
      %v2907 = vsel %vm1196, %v2891, %v2761
      %v2908 = vsel %vm1196, %v2892, %v2763
      %v2909 = vsel %vm1196, %v2893, %v2765
      %s2910 = scalar_lea.vmem %s2, 80
      %v2911 = vld [vmem:[%s2910] sm:$0xff]
      %v2912 = vld [vmem:[%s2910 + $0x8] sm:$0xff]
      %v2913 = vld [vmem:[%s2910 + $0x10] sm:$0xff]
      %v2914 = vld [vmem:[%s2910 + $0x18] sm:$0xff]
      %v2915 = vld [vmem:[%s2910 + $0x20] sm:$0xf]
      %v2916 = vperm.slane %v293, 3
      %v2918 = vsel %vm1219, %v2894, 0
      %v2921 = vsel %vm1219, %v2895, 0
      %v2924 = vsel %vm1219, %v2896, 0
      %v2927 = vsel %vm1219, %v2897, 0
      %v2930 = vsel %vm1219, %v2898, 0
      %v2933 = vsel %vm1219, %v2899, 0
      %v2936 = vsel %vm1219, %v2900, 0
      %v2939 = vsel %vm1219, %v2901, 0
      %v2942 = vsel %vm1219, %v2902, 0
      %v2945 = vsel %vm1219, %v2903, 0
      %v2948 = vsel %vm1219, %v2904, 0
      %v2951 = vsel %vm1219, %v2905, 0
      %v2954 = vsel %vm1219, %v2906, 0
      %v2957 = vsel %vm1219, %v2907, 0
      %v2960 = vsel %vm1219, %v2908, 0
      %v2963 = vsel %vm1219, %v2909, 0
      %v2966 = vsel %vm363, %v2915, 0
      %2968 = vmatpush.msra.mxu0 0.0
      %2969 = vmatpush.msra.mxu0 0.0
      %2970 = vmatpush.msra.mxu0 0.0
      %2971 = vmatpush.msra.mxu0 0.0
      %2972 = vmatpush.msra.mxu0 0.0
      %2973 = vmatpush.msra.mxu0 0.0
      %2974 = vmatpush.msra.mxu0 0.0
      %2975 = vmatpush.msra.mxu0 0.0
      %2976 = vmatpush.msra.mxu0 0.0
      %2977 = vmatpush.msra.mxu0 0.0
      %2978 = vmatpush.msra.mxu0 0.0
      %2979 = vmatpush.msra.mxu0 %v2966
      %2980 = vmatpush.msra.mxu0 %v2914
      %2981 = vmatpush.msra.mxu0 %v2913
      %2982 = vmatpush.msra.mxu0 %v2912
      %2983 = vmatpush.msra.mxu0 %v2911
      %2984 = vmatmul.f32.gmra.mxu0 %v2918
      %v2985 = vpop.f32.mrf.mxu0
      %v2986 = vadd.f32 %v2916, %v2985
      %2987 = vmatmul.f32.gmra.mxu0 %v2921
      %v2988 = vpop.f32.mrf.mxu0
      %v2989 = vadd.f32 %v2916, %v2988
      %2990 = vmatmul.f32.gmra.mxu0 %v2924
      %v2991 = vpop.f32.mrf.mxu0
      %v2992 = vadd.f32 %v2916, %v2991
      %2993 = vmatmul.f32.gmra.mxu0 %v2927
      %v2994 = vpop.f32.mrf.mxu0
      %v2995 = vadd.f32 %v2916, %v2994
      %2996 = vmatmul.f32.gmra.mxu0 %v2930
      %v2997 = vpop.f32.mrf.mxu0
      %v2998 = vadd.f32 %v2916, %v2997
      %2999 = vmatmul.f32.gmra.mxu0 %v2933
      %v3000 = vpop.f32.mrf.mxu0
      %v3001 = vadd.f32 %v2916, %v3000
      %3002 = vmatmul.f32.gmra.mxu0 %v2936
      %v3003 = vpop.f32.mrf.mxu0
      %v3004 = vadd.f32 %v2916, %v3003
      %3005 = vmatmul.f32.gmra.mxu0 %v2939
      %v3006 = vpop.f32.mrf.mxu0
      %v3007 = vadd.f32 %v2916, %v3006
      %3008 = vmatmul.f32.gmra.mxu0 %v2942
      %v3009 = vpop.f32.mrf.mxu0
      %v3010 = vadd.f32 %v2916, %v3009
      %3011 = vmatmul.f32.gmra.mxu0 %v2945
      %v3012 = vpop.f32.mrf.mxu0
      %v3013 = vadd.f32 %v2916, %v3012
      %3014 = vmatmul.f32.gmra.mxu0 %v2948
      %v3015 = vpop.f32.mrf.mxu0
      %v3016 = vadd.f32 %v2916, %v3015
      %3017 = vmatmul.f32.gmra.mxu0 %v2951
      %v3018 = vpop.f32.mrf.mxu0
      %v3019 = vadd.f32 %v2916, %v3018
      %3020 = vmatmul.f32.gmra.mxu0 %v2954
      %v3021 = vpop.f32.mrf.mxu0
      %v3022 = vadd.f32 %v2916, %v3021
      %3023 = vmatmul.f32.gmra.mxu0 %v2957
      %v3024 = vpop.f32.mrf.mxu0
      %v3025 = vadd.f32 %v2916, %v3024
      %3026 = vmatmul.f32.gmra.mxu0 %v2960
      %v3027 = vpop.f32.mrf.mxu0
      %v3028 = vadd.f32 %v2916, %v3027
      %3029 = vmatmul.f32.gmra.mxu0 %v2963
      %v3030 = vpop.f32.mrf.mxu0
      %v3031 = vadd.f32 %v2916, %v3030
      %3032 = vdwg.mxu0
      %v3033 = vmax.f32 %v2986, 0.0
      %v3034 = vmax.f32 %v2989, 0.0
      %v3035 = vmax.f32 %v2992, 0.0
      %v3036 = vmax.f32 %v2995, 0.0
      %v3037 = vmax.f32 %v2998, 0.0
      %v3038 = vmax.f32 %v3001, 0.0
      %v3039 = vmax.f32 %v3004, 0.0
      %v3040 = vmax.f32 %v3007, 0.0
      %v3041 = vmax.f32 %v3010, 0.0
      %v3042 = vmax.f32 %v3013, 0.0
      %v3043 = vmax.f32 %v3016, 0.0
      %v3044 = vmax.f32 %v3019, 0.0
      %v3045 = vmax.f32 %v3022, 0.0
      %v3046 = vmax.f32 %v3025, 0.0
      %v3047 = vmax.f32 %v3028, 0.0
      %v3048 = vmax.f32 %v3031, 0.0
      %3065 = vrot.lane.b32.xlu0 %v1336, 8
      %v3066 = vpop.permute.xlu0 %3065
      %3067 = vrot.lane.b32.xlu0 %v1337, 8
      %v3068 = vpop.permute.xlu0 %3067
      %3069 = vrot.lane.b32.xlu0 %v1338, 8
      %v3070 = vpop.permute.xlu0 %3069
      %3071 = vrot.lane.b32.xlu0 %v1339, 8
      %v3072 = vpop.permute.xlu0 %3071
      %3073 = vrot.lane.b32.xlu0 %v1340, 8
      %v3074 = vpop.permute.xlu0 %3073
      %3075 = vrot.lane.b32.xlu0 %v1341, 8
      %v3076 = vpop.permute.xlu0 %3075
      %3077 = vrot.lane.b32.xlu0 %v1342, 8
      %v3078 = vpop.permute.xlu0 %3077
      %3079 = vrot.lane.b32.xlu0 %v1343, 8
      %v3080 = vpop.permute.xlu0 %3079
      %3081 = vrot.lane.b32.xlu0 %v1344, 8
      %v3082 = vpop.permute.xlu0 %3081
      %3083 = vrot.lane.b32.xlu0 %v1345, 8
      %v3084 = vpop.permute.xlu0 %3083
      %3085 = vrot.lane.b32.xlu0 %v1346, 8
      %v3086 = vpop.permute.xlu0 %3085
      %3087 = vrot.lane.b32.xlu0 %v1347, 8
      %v3088 = vpop.permute.xlu0 %3087
      %3089 = vrot.lane.b32.xlu0 %v1348, 8
      %v3090 = vpop.permute.xlu0 %3089
      %3091 = vrot.lane.b32.xlu0 %v1349, 8
      %v3092 = vpop.permute.xlu0 %3091
      %3093 = vrot.lane.b32.xlu0 %v1350, 8
      %v3094 = vpop.permute.xlu0 %3093
      %3095 = vrot.lane.b32.xlu0 %v1351, 8
      %v3096 = vpop.permute.xlu0 %3095
      %3129 = vrot.lane.b32.xlu0 %v2185, 16
      %v3130 = vpop.permute.xlu0 %3129
      %3131 = vrot.lane.b32.xlu0 %v2186, 16
      %v3132 = vpop.permute.xlu0 %3131
      %3133 = vrot.lane.b32.xlu0 %v2187, 16
      %v3134 = vpop.permute.xlu0 %3133
      %3135 = vrot.lane.b32.xlu0 %v2188, 16
      %v3136 = vpop.permute.xlu0 %3135
      %3137 = vrot.lane.b32.xlu0 %v2189, 16
      %v3138 = vpop.permute.xlu0 %3137
      %3139 = vrot.lane.b32.xlu0 %v2190, 16
      %v3140 = vpop.permute.xlu0 %3139
      %3141 = vrot.lane.b32.xlu0 %v2191, 16
      %v3142 = vpop.permute.xlu0 %3141
      %3143 = vrot.lane.b32.xlu0 %v2192, 16
      %v3144 = vpop.permute.xlu0 %3143
      %3145 = vrot.lane.b32.xlu0 %v2193, 16
      %v3146 = vpop.permute.xlu0 %3145
      %3147 = vrot.lane.b32.xlu0 %v2194, 16
      %v3148 = vpop.permute.xlu0 %3147
      %3149 = vrot.lane.b32.xlu0 %v2195, 16
      %v3150 = vpop.permute.xlu0 %3149
      %3151 = vrot.lane.b32.xlu0 %v2196, 16
      %v3152 = vpop.permute.xlu0 %3151
      %3153 = vrot.lane.b32.xlu0 %v2197, 16
      %v3154 = vpop.permute.xlu0 %3153
      %3155 = vrot.lane.b32.xlu0 %v2198, 16
      %v3156 = vpop.permute.xlu0 %3155
      %3157 = vrot.lane.b32.xlu0 %v2199, 16
      %v3158 = vpop.permute.xlu0 %3157
      %3159 = vrot.lane.b32.xlu0 %v2200, 16
      %v3160 = vpop.permute.xlu0 %3159
      %3193 = vrot.lane.b32.xlu0 %v3033, 24
      %v3194 = vpop.permute.xlu0 %3193
      %3195 = vrot.lane.b32.xlu0 %v3034, 24
      %v3196 = vpop.permute.xlu0 %3195
      %3197 = vrot.lane.b32.xlu0 %v3035, 24
      %v3198 = vpop.permute.xlu0 %3197
      %3199 = vrot.lane.b32.xlu0 %v3036, 24
      %v3200 = vpop.permute.xlu0 %3199
      %3201 = vrot.lane.b32.xlu0 %v3037, 24
      %v3202 = vpop.permute.xlu0 %3201
      %3203 = vrot.lane.b32.xlu0 %v3038, 24
      %v3204 = vpop.permute.xlu0 %3203
      %3205 = vrot.lane.b32.xlu0 %v3039, 24
      %v3206 = vpop.permute.xlu0 %3205
      %3207 = vrot.lane.b32.xlu0 %v3040, 24
      %v3208 = vpop.permute.xlu0 %3207
      %3209 = vrot.lane.b32.xlu0 %v3041, 24
      %v3210 = vpop.permute.xlu0 %3209
      %3211 = vrot.lane.b32.xlu0 %v3042, 24
      %v3212 = vpop.permute.xlu0 %3211
      %3213 = vrot.lane.b32.xlu0 %v3043, 24
      %v3214 = vpop.permute.xlu0 %3213
      %3215 = vrot.lane.b32.xlu0 %v3044, 24
      %v3216 = vpop.permute.xlu0 %3215
      %3217 = vrot.lane.b32.xlu0 %v3045, 24
      %v3218 = vpop.permute.xlu0 %3217
      %3219 = vrot.lane.b32.xlu0 %v3046, 24
      %v3220 = vpop.permute.xlu0 %3219
      %3221 = vrot.lane.b32.xlu0 %v3047, 24
      %v3222 = vpop.permute.xlu0 %3221
      %3223 = vrot.lane.b32.xlu0 %v3048, 24
      %v3224 = vpop.permute.xlu0 %3223
      %v3241 = vsel %vm1094, %v432, %v3066
      %v3242 = vsel %vm1094, %v433, %v3068
      %v3243 = vsel %vm1094, %v434, %v3070
      %v3244 = vsel %vm1094, %v435, %v3072
      %v3245 = vsel %vm1094, %v436, %v3074
      %v3246 = vsel %vm1094, %v437, %v3076
      %v3247 = vsel %vm1094, %v438, %v3078
      %v3248 = vsel %vm1094, %v439, %v3080
      %v3249 = vsel %vm1094, %v440, %v3082
      %v3250 = vsel %vm1094, %v441, %v3084
      %v3251 = vsel %vm1094, %v442, %v3086
      %v3252 = vsel %vm1094, %v443, %v3088
      %v3253 = vsel %vm1094, %v444, %v3090
      %v3254 = vsel %vm1094, %v445, %v3092
      %v3255 = vsel %vm1094, %v446, %v3094
      %v3256 = vsel %vm1094, %v447, %v3096
      %v3257 = vsel %vm1128, %v3241, %v3130
      %v3258 = vsel %vm1128, %v3242, %v3132
      %v3259 = vsel %vm1128, %v3243, %v3134
      %v3260 = vsel %vm1128, %v3244, %v3136
      %v3261 = vsel %vm1128, %v3245, %v3138
      %v3262 = vsel %vm1128, %v3246, %v3140
      %v3263 = vsel %vm1128, %v3247, %v3142
      %v3264 = vsel %vm1128, %v3248, %v3144
      %v3265 = vsel %vm1128, %v3249, %v3146
      %v3266 = vsel %vm1128, %v3250, %v3148
      %v3267 = vsel %vm1128, %v3251, %v3150
      %v3268 = vsel %vm1128, %v3252, %v3152
      %v3269 = vsel %vm1128, %v3253, %v3154
      %v3270 = vsel %vm1128, %v3254, %v3156
      %v3271 = vsel %vm1128, %v3255, %v3158
      %v3272 = vsel %vm1128, %v3256, %v3160
      %v3273 = vsel %vm1162, %v3257, %v3194
      %v3274 = vsel %vm1162, %v3258, %v3196
      %v3275 = vsel %vm1162, %v3259, %v3198
      %v3276 = vsel %vm1162, %v3260, %v3200
      %v3277 = vsel %vm1162, %v3261, %v3202
      %v3278 = vsel %vm1162, %v3262, %v3204
      %v3279 = vsel %vm1162, %v3263, %v3206
      %v3280 = vsel %vm1162, %v3264, %v3208
      %v3281 = vsel %vm1162, %v3265, %v3210
      %v3282 = vsel %vm1162, %v3266, %v3212
      %v3283 = vsel %vm1162, %v3267, %v3214
      %v3284 = vsel %vm1162, %v3268, %v3216
      %v3285 = vsel %vm1162, %v3269, %v3218
      %v3286 = vsel %vm1162, %v3270, %v3220
      %v3287 = vsel %vm1162, %v3271, %v3222
      %v3288 = vsel %vm1162, %v3272, %v3224
      %v3289 = vld [vmem:[%s3] sm:$0xff]
      %v3290 = vld [vmem:[%s3 + $0x8] sm:$0xff]
      %v3291 = vld [vmem:[%s3 + $0x10] sm:$0xff]
      %v3292 = vld [vmem:[%s3 + $0x18] sm:$0xff]
      %v3293 = vld [vmem:[%s279] sm:$0x1]
      %v3295 = vperm.slane %v3293, 0
      %v3298 = vsel %vm1196, %v3273, 0
      %v3301 = vsel %vm1196, %v3274, 0
      %v3304 = vsel %vm1196, %v3275, 0
      %v3307 = vsel %vm1196, %v3276, 0
      %v3310 = vsel %vm1196, %v3277, 0
      %v3313 = vsel %vm1196, %v3278, 0
      %v3316 = vsel %vm1196, %v3279, 0
      %v3319 = vsel %vm1196, %v3280, 0
      %v3322 = vsel %vm1196, %v3281, 0
      %v3325 = vsel %vm1196, %v3282, 0
      %v3328 = vsel %vm1196, %v3283, 0
      %v3331 = vsel %vm1196, %v3284, 0
      %v3334 = vsel %vm1196, %v3285, 0
      %v3337 = vsel %vm1196, %v3286, 0
      %v3340 = vsel %vm1196, %v3287, 0
      %v3343 = vsel %vm1196, %v3288, 0
      %3345 = vmatpush.msra.mxu0 0.0
      %3346 = vmatpush.msra.mxu0 0.0
      %3347 = vmatpush.msra.mxu0 0.0
      %3348 = vmatpush.msra.mxu0 0.0
      %3349 = vmatpush.msra.mxu0 0.0
      %3350 = vmatpush.msra.mxu0 0.0
      %3351 = vmatpush.msra.mxu0 0.0
      %3352 = vmatpush.msra.mxu0 0.0
      %3353 = vmatpush.msra.mxu0 0.0
      %3354 = vmatpush.msra.mxu0 0.0
      %3355 = vmatpush.msra.mxu0 0.0
      %3356 = vmatpush.msra.mxu0 0.0
      %3357 = vmatpush.msra.mxu0 %v3292
      %3358 = vmatpush.msra.mxu0 %v3291
      %3359 = vmatpush.msra.mxu0 %v3290
      %3360 = vmatpush.msra.mxu0 %v3289
      %3361 = vmatmul.f32.gmra.mxu0 %v3298
      %v3362 = vpop.f32.mrf.mxu0
      %v3363 = vadd.f32 %v3295, %v3362
      %3364 = vmatmul.f32.gmra.mxu0 %v3301
      %v3365 = vpop.f32.mrf.mxu0
      %v3366 = vadd.f32 %v3295, %v3365
      %3367 = vmatmul.f32.gmra.mxu0 %v3304
      %v3368 = vpop.f32.mrf.mxu0
      %v3369 = vadd.f32 %v3295, %v3368
      %3370 = vmatmul.f32.gmra.mxu0 %v3307
      %v3371 = vpop.f32.mrf.mxu0
      %v3372 = vadd.f32 %v3295, %v3371
      %3373 = vmatmul.f32.gmra.mxu0 %v3310
      %v3374 = vpop.f32.mrf.mxu0
      %v3375 = vadd.f32 %v3295, %v3374
      %3376 = vmatmul.f32.gmra.mxu0 %v3313
      %v3377 = vpop.f32.mrf.mxu0
      %v3378 = vadd.f32 %v3295, %v3377
      %3379 = vmatmul.f32.gmra.mxu0 %v3316
      %v3380 = vpop.f32.mrf.mxu0
      %v3381 = vadd.f32 %v3295, %v3380
      %3382 = vmatmul.f32.gmra.mxu0 %v3319
      %v3383 = vpop.f32.mrf.mxu0
      %v3384 = vadd.f32 %v3295, %v3383
      %3385 = vmatmul.f32.gmra.mxu0 %v3322
      %v3386 = vpop.f32.mrf.mxu0
      %v3387 = vadd.f32 %v3295, %v3386
      %3388 = vmatmul.f32.gmra.mxu0 %v3325
      %v3389 = vpop.f32.mrf.mxu0
      %v3390 = vadd.f32 %v3295, %v3389
      %3391 = vmatmul.f32.gmra.mxu0 %v3328
      %v3392 = vpop.f32.mrf.mxu0
      %v3393 = vadd.f32 %v3295, %v3392
      %3394 = vmatmul.f32.gmra.mxu0 %v3331
      %v3395 = vpop.f32.mrf.mxu0
      %v3396 = vadd.f32 %v3295, %v3395
      %3397 = vmatmul.f32.gmra.mxu0 %v3334
      %v3398 = vpop.f32.mrf.mxu0
      %v3399 = vadd.f32 %v3295, %v3398
      %3400 = vmatmul.f32.gmra.mxu0 %v3337
      %v3401 = vpop.f32.mrf.mxu0
      %v3402 = vadd.f32 %v3295, %v3401
      %3403 = vmatmul.f32.gmra.mxu0 %v3340
      %v3404 = vpop.f32.mrf.mxu0
      %v3405 = vadd.f32 %v3295, %v3404
      %3406 = vmatmul.f32.gmra.mxu0 %v3343
      %v3407 = vpop.f32.mrf.mxu0
      %v3408 = vadd.f32 %v3295, %v3407
      %3409 = vdwg.mxu0
      %v3410 = vmax.f32 %v3363, 0.0
      %v3411 = vmax.f32 %v3366, 0.0
      %v3412 = vmax.f32 %v3369, 0.0
      %v3413 = vmax.f32 %v3372, 0.0
      %v3414 = vmax.f32 %v3375, 0.0
      %v3415 = vmax.f32 %v3378, 0.0
      %v3416 = vmax.f32 %v3381, 0.0
      %v3417 = vmax.f32 %v3384, 0.0
      %v3418 = vmax.f32 %v3387, 0.0
      %v3419 = vmax.f32 %v3390, 0.0
      %v3420 = vmax.f32 %v3393, 0.0
      %v3421 = vmax.f32 %v3396, 0.0
      %v3422 = vmax.f32 %v3399, 0.0
      %v3423 = vmax.f32 %v3402, 0.0
      %v3424 = vmax.f32 %v3405, 0.0
      %v3425 = vmax.f32 %v3408, 0.0
      %3426 = vst.msk [vmem:[%s289] sm:$0xff] %vm1094, %v3410
      %3427 = vst.msk [vmem:[%s289 + $0x8] sm:$0xff] %vm1094, %v3411
      %3428 = vst.msk [vmem:[%s289 + $0x10] sm:$0xff] %vm1094, %v3412
      %3429 = vst.msk [vmem:[%s289 + $0x18] sm:$0xff] %vm1094, %v3413
      %3430 = vst.msk [vmem:[%s289 + $0x20] sm:$0xff] %vm1094, %v3414
      %3431 = vst.msk [vmem:[%s289 + $0x28] sm:$0xff] %vm1094, %v3415
      %3432 = vst.msk [vmem:[%s289 + $0x30] sm:$0xff] %vm1094, %v3416
      %3433 = vst.msk [vmem:[%s289 + $0x38] sm:$0xff] %vm1094, %v3417
      %3434 = vst.msk [vmem:[%s289 + $0x40] sm:$0xff] %vm1094, %v3418
      %3435 = vst.msk [vmem:[%s289 + $0x48] sm:$0xff] %vm1094, %v3419
      %3436 = vst.msk [vmem:[%s289 + $0x50] sm:$0xff] %vm1094, %v3420
      %3437 = vst.msk [vmem:[%s289 + $0x58] sm:$0xff] %vm1094, %v3421
      %3438 = vst.msk [vmem:[%s289 + $0x60] sm:$0xff] %vm1094, %v3422
      %3439 = vst.msk [vmem:[%s289 + $0x68] sm:$0xff] %vm1094, %v3423
      %3440 = vst.msk [vmem:[%s289 + $0x70] sm:$0xff] %vm1094, %v3424
      %3441 = vst.msk [vmem:[%s289 + $0x78] sm:$0xff] %vm1094, %v3425
      %s3442 = smul.u32 8, %s22
      %p3443 = scmp.lt.s32.totalorder %s21, 1
      %s3444 = scalar_select %p3443, %s21, 1
      %p3445 = scmp.lt.s32.totalorder %s3442, 15
      %s3446 = scalar_select %p3445, %s3442, 15
      %s3447 = smul.addr %s3446, 2
      %s3448 = smul.addr %s3444, 32
      %s3449 = sadd.s32 %s3447, %s3448
      %s3450 = smul.addr %s3449, 8
      %s3451 = scalar_lea.vmem %s6, %s3450
      // Predicated region
      $region45: #{aspp_pallas.1} parent=43 // pred_check
        %p3452 = pneg %p185
      $region46: #{aspp_pallas.1} parent=43 // pred_check_branch
        %3454 = sbr.rel (%p3452) target = $region48
      $region47: #{aspp_pallas.1} parent=43 // pred_region
        %s3455 = smul.u32 8, %s22
      $region48: #{aspp_pallas.1} parent=43 // pred_fallthru
        _
    $region44: #{aspp_pallas.1} parent=5 // pred_fallthru
      _
    %p3456 = scmp.le.s32.totalorder 2, %s12
    // Predicated region
    $region49: #{aspp_pallas.1} parent=5 // pred_check
      %p3457 = pneg %p3456
    $region50: #{aspp_pallas.1} parent=5 // pred_check_branch
      %3459 = sbr.rel (%p3457) target = $region52
    $region51: #{aspp_pallas.1} parent=5 // pred_region
      %s3460 = ssub.s32 %s12, 2
      // Predicated region
      $region53: #{aspp_pallas.1} parent=51 // pred_check
        %p3461 = pneg %p191
      $region54: #{aspp_pallas.1} parent=51 // pred_check_branch
        %3463 = sbr.rel (%p3461) target = $region56
      $region55: #{aspp_pallas.1} parent=51 // pred_region
        %s3464 = smul.u32 8, %s24
        %p3465 = scmp.lt.s32.totalorder %s23, 1
        %s3466 = scalar_select %p3465, %s23, 1
        %p3467 = scmp.lt.s32.totalorder %s3464, 15
        %s3468 = scalar_select %p3467, %s3464, 15
        %s3469 = smul.addr %s3468, 2
        %s3470 = smul.addr %s3466, 32
        %s3471 = sadd.s32 %s3469, %s3470
        %s3472 = smul.addr %s3471, 8
        %s3473 = scalar_lea.vmem %s6, %s3472
      $region56: #{aspp_pallas.1} parent=51 // pred_fallthru
        _
    $region52: #{aspp_pallas.1} parent=5 // pred_fallthru
      _
  $region6: #{aspp_pallas.1} parent=0 // loop_footer
    %s16 = sadd.s32 1, %s12
  $region7: #{aspp_pallas.1} parent=0 // loop_footer_branch
    %11 = sbr.rel target = $region3
  $region8: #{aspp_pallas.1} parent=0 // loop_exit
    _

</llo_original>
